<compile_context>
chip_gen: v6e
topology: v6e:2x2x1
jax: 0.10.0
libtpu: 0.0.40
codegen_flags: <defaults>
</compile_context>

<pallas_src>
import functools

import numpy as np
import jax
import jax.numpy as jnp
from jax.experimental import pallas as pl
from jax.experimental.pallas import tpu as pltpu


def _make_quantizer_params(nq: int, qmin: float, qmax: float):
    """Deterministic Conv1d weight/bias exactly as in APLoss.__init__."""
    gap = qmax - qmin
    assert isinstance(nq, int) and 2 <= nq <= 100
    assert gap > 0
    a = (nq - 1) / gap
    w = np.zeros(2 * nq, dtype=np.float32)
    b = np.zeros(2 * nq, dtype=np.float32)
    w[:nq] = -a
    b[:nq] = a * qmin + np.arange(nq, 0, -1)
    w[nq:] = a
    b[nq:] = np.arange(2 - nq, 2, 1) - a * qmin
    w[0] = w[-1] = 0.0
    b[0] = b[-1] = 1.0
    return w, b


def _round_up(x: int, m: int) -> int:
    return (x + m - 1) // m * m


def _ap_loss_kernel(col_ref, row_ref, tgt_ref, out_ref, rec_acc, nbs_acc,
                    *, nq, a, b1, b2, corr, m_chunk, compute_dtype):
    mi = pl.program_id(1)
    nm = pl.num_programs(1)

    @pl.when(mi == 0)
    def _init():
        rec_acc[...] = jnp.zeros_like(rec_acc)
        nbs_acc[...] = jnp.zeros_like(nbs_acc)

    col = col_ref[...]                                   # (Nt, 1) f32 query values
    col_s = (a * col).astype(compute_dtype)              # hoisted quantizer scale
    m_t = row_ref.shape[1]
    assert m_t % m_chunk == 0

    # Chunk the M tile so the (Nt, m_chunk) s/label planes stay register-resident
    # across the whole bin loop (no VMEM spill/reload per bin).
    for c in range(m_t // m_chunk):
        lo = c * m_chunk
        row_c = row_ref[:, lo:lo + m_chunk]              # (1, mc) gallery values (0.0 on pads)
        tgt_c = tgt_ref[:, lo:lo + m_chunk]              # (1, mc) targets (NaN on pads)
        label = col == tgt_c                             # (Nt, mc) bool, exact f32 equality
        s = col_s * row_c.astype(compute_dtype)          # (Nt, mc) = a * (col @ row.T)

        # Soft quantizer bins: relu(min(-a*x + b1[k], a*x + b2[k])); edge bins k=0 /
        # k=nq-1 have a zero weight and constant bias 1 (baked into b1[0] / b2[nq-1]).
        # No padding mask here: padded lanes contribute the constant q_k(0) to nbs,
        # which is removed via `corr` in the finalize step.
        for k in range(nq):
            if k == 0:
                qk = jnp.minimum(s + b2[0], b1[0])
            elif k == nq - 1:
                qk = jnp.minimum(b1[k] - s, b2[k])
            else:
                qk = jnp.minimum(b1[k] - s, s + b2[k])
            qk = jnp.maximum(qk, 0.0)
            rec_part = jnp.where(label, qk, 0.0)
            nbs_k = jnp.sum(qk.astype(jnp.float32), axis=-1, keepdims=True)      # (Nt, 1)
            rec_k = jnp.sum(rec_part.astype(jnp.float32), axis=-1, keepdims=True)
            nbs_acc[:, k:k + 1] = nbs_acc[:, k:k + 1] + nbs_k
            rec_acc[:, k:k + 1] = rec_acc[:, k:k + 1] + rec_k

    @pl.when(mi == nm - 1)
    def _finalize():
        zero = jnp.zeros((rec_acc.shape[0], 1), jnp.float32)
        run_rec = zero
        run_nbs = zero
        run_ap = zero
        for k in range(nq):
            rec_k = rec_acc[:, k:k + 1]
            nbs_k = nbs_acc[:, k:k + 1]
            if corr[k] != 0.0:                 # remove padded-lane contribution (constant)
                nbs_k = nbs_k - corr[k]
            run_rec = run_rec + rec_k
            run_nbs = run_nbs + nbs_k
            prec_k = run_rec / (1e-16 + run_nbs)
            run_ap = run_ap + prec_k * rec_k
        # ap = sum_k prec_k * rec_k / rec_total   (0/0 -> NaN, same as the reference)
        out_ref[...] = run_ap / run_rec


def ap_loss(inputs_col, targets_col, inputs_row, target_row,
            *, nq=20, qmin=0.0, qmax=1.0,
            n_tile=64, m_tile=2048, m_chunk=256, compute_dtype=jnp.float32):
    del targets_col  # unused by the reference forward
    N, D = inputs_col.shape
    M, D2 = inputs_row.shape
    # Mirrors the reference `assert x.shape == label.shape` (requires D == 1).
    assert D == 1 and D2 == 1, "reference APLoss.forward requires feature dim D == 1"
    assert isinstance(nq, int) and 2 <= nq <= 100

    col = inputs_col.astype(jnp.float32).reshape(N, 1)
    row = inputs_row.astype(jnp.float32).reshape(1, M)
    tgt = jnp.reshape(target_row, (1, M)).astype(jnp.float32)

    # --- N tiling (sublanes): ensure >= 2 "parallel" N grid steps when possible so the
    # first grid axis shards across both TensorCores on v7x (no-op on v5e/v6e).
    n_tile = max(8, min(_round_up(n_tile, 8), _round_up(N, 8)))
    if N > 8 and _round_up(N, n_tile) // n_tile < 2:
        n_tile = _round_up((N + 1) // 2, 8)
    n_pad = _round_up(N, n_tile)

    # --- M tiling (lanes): large DMA tile, processed in 128*k-lane chunks inside the kernel.
    m_chunk = max(128, _round_up(m_chunk, 128))
    m_tile = max(m_chunk, _round_up(m_tile, m_chunk))
    m_fit = _round_up(M, m_chunk)
    if m_fit < m_tile:
        m_tile = m_fit
    m_pad = _round_up(M, m_tile)

    if n_pad != N:
        col = jnp.pad(col, ((0, n_pad - N), (0, 0)))
    pad_m = m_pad - M
    if pad_m:
        # Padded gallery lanes: value 0.0 (finite -> each adds the constant q_k(0) to nbs,
        # removed via `corr`); target NaN so `label` is False there (rec untouched).
        row = jnp.pad(row, ((0, 0), (0, pad_m)), constant_values=0.0)
        tgt = jnp.pad(tgt, ((0, 0), (0, pad_m)), constant_values=float("nan"))

    w_np, b_np = _make_quantizer_params(nq, qmin, qmax)
    a = float((nq - 1) / (qmax - qmin))
    b1 = tuple(float(v) for v in b_np[:nq])
    b2 = tuple(float(v) for v in b_np[nq:])
    # Per-bin nbs contribution of a single zero-valued (padded) gallery lane:
    # q_k(0) = relu(min(b1[k], b2[k]))  (edge-bin constants already folded into b).
    qk0 = np.maximum(np.minimum(b_np[:nq], b_np[nq:]), 0.0)
    corr = tuple(float(pad_m) * float(v) for v in qk0)

    kernel = functools.partial(
        _ap_loss_kernel, nq=nq, a=a, b1=b1, b2=b2, corr=corr,
        m_chunk=m_chunk, compute_dtype=compute_dtype)

    grid = (n_pad // n_tile, m_pad // m_tile)
    ap = pl.pallas_call(
        kernel,
        out_shape=jax.ShapeDtypeStruct((n_pad, 1), jnp.float32),
        grid=grid,
        in_specs=[
            pl.BlockSpec((n_tile, 1), lambda i, j: (i, 0)),      # query values
            pl.BlockSpec((1, m_tile), lambda i, j: (0, j)),      # gallery values
            pl.BlockSpec((1, m_tile), lambda i, j: (0, j)),      # target_row
        ],
        out_specs=pl.BlockSpec((n_tile, 1), lambda i, j: (i, 0)),
        scratch_shapes=[
            pltpu.VMEM((n_tile, 128), jnp.float32),   # per-bin rec accumulator (nq <= 100)
            pltpu.VMEM((n_tile, 128), jnp.float32),   # per-bin nbs accumulator
        ],
        compiler_params=pltpu.CompilerParams(
            dimension_semantics=("parallel", "arbitrary")),
    )(col, row, tgt)

    # Final mean over the true N rows (padded rows are discarded).
    return 1.0 - jnp.mean(ap[:N, 0])


def ap_loss_ref(inputs_col, targets_col, inputs_row, target_row,
                *, nq=20, qmin=0.0, qmax=1.0):
    """Pure-JAX reference reproducing the PyTorch forward (for validation)."""
    del targets_col
    x = inputs_col @ inputs_row.T
    col = jnp.reshape(inputs_col, (-1, 1))
    tr = jnp.reshape(target_row, (1, -1))
    label = (col == tr).astype(jnp.float32)
    w, b = _make_quantizer_params(nq, qmin, qmax)
    q = w[:, None] * x[:, None, :] + b[:, None]           # (N, 2nq, M)
    q = jnp.maximum(jnp.minimum(q[:, :nq], q[:, nq:]), 0.0)
    nbs = q.sum(-1)
    rec = (q * label[:, None, :]).sum(-1)
    prec = jnp.cumsum(rec, -1) / (1e-16 + jnp.cumsum(nbs, -1))
    rec = rec / rec.sum(-1, keepdims=True)
    ap = (prec * rec).sum(-1)
    return 1.0 - ap.mean()


if __name__ == "__main__":
    key = jax.random.PRNGKey(0)
    N, M, D = 24, 300, 1
    NQ, QMIN, QMAX = 20, 0.0, 1.0

    # Discrete feature levels so the reference's float-equality label matrix is
    # non-trivial and every query value appears in target_row (no 0/0 rows).
    levels = jnp.array([0.25, 0.5, 0.75, 1.0], jnp.float32)
    k1, k2, k3 = jax.random.split(key, 3)
    inputs_col = levels[jax.random.randint(k1, (N,), 0, 4)].reshape(N, D)
    inputs_row = levels[jax.random.randint(k2, (M,), 0, 4)].reshape(M, D)
    target_row = levels[jnp.mod(jnp.arange(M), 4)]                        # (M,)
    targets_col = jax.random.randint(k3, (N,), 0, 4).astype(jnp.float32)  # unused, as in ref

    ref = ap_loss_ref(inputs_col, targets_col, inputs_row, target_row,
                      nq=NQ, qmin=QMIN, qmax=QMAX)

    # Default config: 2 N tiles (v7x rule), 1 M tile of 512 lanes (2x256 chunks),
    # 212 padded gallery lanes exercised via the zero-pad + constant-correction path.
    loss_default = jax.block_until_ready(
        ap_loss(inputs_col, targets_col, inputs_row, target_row,
                nq=NQ, qmin=QMIN, qmax=QMAX))

    # Multi-step config: 3 N tiles x 2 M tiles, 128-lane chunks — exercises accumulation
    # across M grid steps plus the padding correction.
    loss_tiled = jax.block_until_ready(
        ap_loss(inputs_col, targets_col, inputs_row, target_row,
                nq=NQ, qmin=QMIN, qmax=QMAX, n_tile=8, m_tile=256, m_chunk=128))

    # Optional bf16 elementwise path (intended for v6e/v7x); reductions/accumulators
    # and the label equality stay float32.
    loss_bf16 = jax.block_until_ready(
        ap_loss(inputs_col, targets_col, inputs_row, target_row,
                nq=NQ, qmin=QMIN, qmax=QMAX, compute_dtype=jnp.bfloat16))

    assert jnp.isfinite(loss_default), loss_default
    assert jnp.isfinite(loss_tiled), loss_tiled
    assert jnp.isfinite(loss_bf16), loss_bf16
    assert abs(float(loss_default) - float(ref)) < 2e-4, (float(loss_default), float(ref))
    assert abs(float(loss_tiled) - float(ref)) < 2e-4, (float(loss_tiled), float(ref))
    assert abs(float(loss_bf16) - float(ref)) < 5e-3, (float(loss_bf16), float(ref))
    print("KERNEL_OK")
</pallas_src>

<mosaic_0001>
module attributes {stable_mosaic.version = 11 : i64} {
  func.func @_ap_loss_kernel(%arg0: i32, %arg1: i32, %arg2: memref<16x1xf32, #tpu.memory_space<vmem>>, %arg3: memref<1x512xf32, #tpu.memory_space<vmem>>, %arg4: memref<1x512xf32, #tpu.memory_space<vmem>>, %arg5: memref<16x1xf32, #tpu.memory_space<vmem>>, %arg6: memref<16x128xf32, #tpu.memory_space<vmem>>, %arg7: memref<16x128xf32, #tpu.memory_space<vmem>>) attributes {dimension_semantics = [#tpu.dimension_semantics<parallel>, #tpu.dimension_semantics<arbitrary>], iteration_bounds = array<i64: 2, 1>, scalar_prefetch = 0 : i64, scratch_operands = 2 : i64, tpu.core_type = #tpu.core_type<tc>, window_params = [{transform_indices = @transform_0, window_bounds = array<i64: 16, 1>}, {transform_indices = @transform_1, window_bounds = array<i64: 1, 512>}, {transform_indices = @transform_2, window_bounds = array<i64: 1, 512>}, {transform_indices = @transform_3, window_bounds = array<i64: 16, 1>}]} {
    %c0_i32 = arith.constant 0 : i32
    %0 = arith.cmpi eq, %arg1, %c0_i32 : i32
    %1 = arith.extui %0 : i1 to i32
    %c0_i32_0 = arith.constant 0 : i32
    %2 = arith.cmpi ne, %1, %c0_i32_0 : i32
    scf.if %2 {
      %cst_552 = arith.constant 0.000000e+00 : f32
      %781 = vector.broadcast %cst_552 : f32 to vector<16x128xf32>
      %c0_553 = arith.constant 0 : index
      %c0_554 = arith.constant 0 : index
      %782 = vector.load %arg6[%c0_553, %c0_554] : memref<16x128xf32, #tpu.memory_space<vmem>>, vector<16x128xf32>
      tpu.vector_store %arg6[%c0_553, %c0_554], %781 {strides = array<i32>} : memref<16x128xf32, #tpu.memory_space<vmem>>, vector<16x128xf32>,
      %cst_555 = arith.constant 0.000000e+00 : f32
      %783 = vector.broadcast %cst_555 : f32 to vector<16x128xf32>
      %c0_556 = arith.constant 0 : index
      %c0_557 = arith.constant 0 : index
      %784 = vector.load %arg7[%c0_556, %c0_557] : memref<16x128xf32, #tpu.memory_space<vmem>>, vector<16x128xf32>
      tpu.vector_store %arg7[%c0_556, %c0_557], %783 {strides = array<i32>} : memref<16x128xf32, #tpu.memory_space<vmem>>, vector<16x128xf32>,
    } else {
    }
    %c0 = arith.constant 0 : index
    %c0_1 = arith.constant 0 : index
    %3 = vector.load %arg2[%c0, %c0_1] : memref<16x1xf32, #tpu.memory_space<vmem>>, vector<16x1xf32>
    %cst = arith.constant 1.900000e+01 : f32
    %4 = vector.broadcast %cst : f32 to vector<16x1xf32>
    %5 = arith.mulf %4, %3 : vector<16x1xf32>
    %c0_2 = arith.constant 0 : index
    %c0_3 = arith.constant 0 : index
    %6 = vector.load %arg3[%c0_2, %c0_3] : memref<1x512xf32, #tpu.memory_space<vmem>>, vector<1x256xf32>
    %c0_4 = arith.constant 0 : index
    %c0_5 = arith.constant 0 : index
    %7 = vector.load %arg4[%c0_4, %c0_5] : memref<1x512xf32, #tpu.memory_space<vmem>>, vector<1x256xf32>
    %8 = vector.broadcast %3 : vector<16x1xf32> to vector<16x256xf32>
    %9 = vector.broadcast %7 : vector<1x256xf32> to vector<16x256xf32>
    %10 = arith.cmpf oeq, %8, %9 : vector<16x256xf32>
    %11 = vector.broadcast %5 : vector<16x1xf32> to vector<16x256xf32>
    %12 = vector.broadcast %6 : vector<1x256xf32> to vector<16x256xf32>
    %13 = arith.mulf %11, %12 : vector<16x256xf32>
    %cst_6 = arith.constant -1.800000e+01 : f32
    %14 = vector.broadcast %cst_6 : f32 to vector<16x256xf32>
    %15 = arith.addf %13, %14 : vector<16x256xf32>
    %cst_7 = arith.constant 1.000000e+00 : f32
    %16 = vector.broadcast %cst_7 : f32 to vector<16x256xf32>
    %17 = arith.minimumf %15, %16 : vector<16x256xf32>
    %cst_8 = arith.constant 0.000000e+00 : f32
    %18 = vector.broadcast %cst_8 : f32 to vector<16x256xf32>
    %19 = arith.maximumf %17, %18 : vector<16x256xf32>
    %cst_9 = arith.constant 0.000000e+00 : f32
    %20 = vector.broadcast %cst_9 : f32 to vector<16x256xf32>
    %21 = arith.select %10, %19, %20 : vector<16x256xi1>, vector<16x256xf32>
    %cst_10 = arith.constant dense<0.000000e+00> : vector<16xf32>
    %22 = vector.multi_reduction <add>, %19, %cst_10 [1] : vector<16x256xf32> to vector<16xf32>
    %23 = vector.shape_cast %22 : vector<16xf32> to vector<16x1xf32>
    %cst_11 = arith.constant dense<0.000000e+00> : vector<16xf32>
    %24 = vector.multi_reduction <add>, %21, %cst_11 [1] : vector<16x256xf32> to vector<16xf32>
    %25 = vector.shape_cast %24 : vector<16xf32> to vector<16x1xf32>
    %c0_12 = arith.constant 0 : index
    %c0_13 = arith.constant 0 : index
    %26 = vector.load %arg7[%c0_12, %c0_13] : memref<16x128xf32, #tpu.memory_space<vmem>>, vector<16x1xf32>
    %27 = arith.addf %26, %23 : vector<16x1xf32>
    %c0_14 = arith.constant 0 : index
    %c0_15 = arith.constant 0 : index
    %28 = vector.load %arg7[%c0_14, %c0_15] : memref<16x128xf32, #tpu.memory_space<vmem>>, vector<16x1xf32>
    tpu.vector_store %arg7[%c0_14, %c0_15], %27 {strides = array<i32>} : memref<16x128xf32, #tpu.memory_space<vmem>>, vector<16x1xf32>,
    %c0_16 = arith.constant 0 : index
    %c0_17 = arith.constant 0 : index
    %29 = vector.load %arg6[%c0_16, %c0_17] : memref<16x128xf32, #tpu.memory_space<vmem>>, vector<16x1xf32>
    %30 = arith.addf %29, %25 : vector<16x1xf32>
    %c0_18 = arith.constant 0 : index
    %c0_19 = arith.constant 0 : index
    %31 = vector.load %arg6[%c0_18, %c0_19] : memref<16x128xf32, #tpu.memory_space<vmem>>, vector<16x1xf32>
    tpu.vector_store %arg6[%c0_18, %c0_19], %30 {strides = array<i32>} : memref<16x128xf32, #tpu.memory_space<vmem>>, vector<16x1xf32>,
    %cst_20 = arith.constant 1.900000e+01 : f32
    %32 = vector.broadcast %cst_20 : f32 to vector<16x256xf32>
    %33 = arith.subf %32, %13 : vector<16x256xf32>
    %cst_21 = arith.constant -1.700000e+01 : f32
    %34 = vector.broadcast %cst_21 : f32 to vector<16x256xf32>
    %35 = arith.addf %13, %34 : vector<16x256xf32>
    %36 = arith.minimumf %33, %35 : vector<16x256xf32>
    %cst_22 = arith.constant 0.000000e+00 : f32
    %37 = vector.broadcast %cst_22 : f32 to vector<16x256xf32>
    %38 = arith.maximumf %36, %37 : vector<16x256xf32>
    %cst_23 = arith.constant 0.000000e+00 : f32
    %39 = vector.broadcast %cst_23 : f32 to vector<16x256xf32>
    %40 = arith.select %10, %38, %39 : vector<16x256xi1>, vector<16x256xf32>
    %cst_24 = arith.constant dense<0.000000e+00> : vector<16xf32>
    %41 = vector.multi_reduction <add>, %38, %cst_24 [1] : vector<16x256xf32> to vector<16xf32>
    %42 = vector.shape_cast %41 : vector<16xf32> to vector<16x1xf32>
    %cst_25 = arith.constant dense<0.000000e+00> : vector<16xf32>
    %43 = vector.multi_reduction <add>, %40, %cst_25 [1] : vector<16x256xf32> to vector<16xf32>
    %44 = vector.shape_cast %43 : vector<16xf32> to vector<16x1xf32>
    %c0_26 = arith.constant 0 : index
    %c1 = arith.constant 1 : index
    %45 = vector.load %arg7[%c0_26, %c1] : memref<16x128xf32, #tpu.memory_space<vmem>>, vector<16x1xf32>
    %46 = arith.addf %45, %42 : vector<16x1xf32>
    %c0_27 = arith.constant 0 : index
    %c1_28 = arith.constant 1 : index
    %47 = vector.load %arg7[%c0_27, %c1_28] : memref<16x128xf32, #tpu.memory_space<vmem>>, vector<16x1xf32>
    tpu.vector_store %arg7[%c0_27, %c1_28], %46 {strides = array<i32>} : memref<16x128xf32, #tpu.memory_space<vmem>>, vector<16x1xf32>,
    %c0_29 = arith.constant 0 : index
    %c1_30 = arith.constant 1 : index
    %48 = vector.load %arg6[%c0_29, %c1_30] : memref<16x128xf32, #tpu.memory_space<vmem>>, vector<16x1xf32>
    %49 = arith.addf %48, %44 : vector<16x1xf32>
    %c0_31 = arith.constant 0 : index
    %c1_32 = arith.constant 1 : index
    %50 = vector.load %arg6[%c0_31, %c1_32] : memref<16x128xf32, #tpu.memory_space<vmem>>, vector<16x1xf32>
    tpu.vector_store %arg6[%c0_31, %c1_32], %49 {strides = array<i32>} : memref<16x128xf32, #tpu.memory_space<vmem>>, vector<16x1xf32>,
    %cst_33 = arith.constant 1.800000e+01 : f32
    %51 = vector.broadcast %cst_33 : f32 to vector<16x256xf32>
    %52 = arith.subf %51, %13 : vector<16x256xf32>
    %cst_34 = arith.constant -1.600000e+01 : f32
    %53 = vector.broadcast %cst_34 : f32 to vector<16x256xf32>
    %54 = arith.addf %13, %53 : vector<16x256xf32>
    %55 = arith.minimumf %52, %54 : vector<16x256xf32>
    %cst_35 = arith.constant 0.000000e+00 : f32
    %56 = vector.broadcast %cst_35 : f32 to vector<16x256xf32>
    %57 = arith.maximumf %55, %56 : vector<16x256xf32>
    %cst_36 = arith.constant 0.000000e+00 : f32
    %58 = vector.broadcast %cst_36 : f32 to vector<16x256xf32>
    %59 = arith.select %10, %57, %58 : vector<16x256xi1>, vector<16x256xf32>
    %cst_37 = arith.constant dense<0.000000e+00> : vector<16xf32>
    %60 = vector.multi_reduction <add>, %57, %cst_37 [1] : vector<16x256xf32> to vector<16xf32>
    %61 = vector.shape_cast %60 : vector<16xf32> to vector<16x1xf32>
    %cst_38 = arith.constant dense<0.000000e+00> : vector<16xf32>
    %62 = vector.multi_reduction <add>, %59, %cst_38 [1] : vector<16x256xf32> to vector<16xf32>
    %63 = vector.shape_cast %62 : vector<16xf32> to vector<16x1xf32>
    %c0_39 = arith.constant 0 : index
    %c2 = arith.constant 2 : index
    %64 = vector.load %arg7[%c0_39, %c2] : memref<16x128xf32, #tpu.memory_space<vmem>>, vector<16x1xf32>
    %65 = arith.addf %64, %61 : vector<16x1xf32>
    %c0_40 = arith.constant 0 : index
    %c2_41 = arith.constant 2 : index
    %66 = vector.load %arg7[%c0_40, %c2_41] : memref<16x128xf32, #tpu.memory_space<vmem>>, vector<16x1xf32>
    tpu.vector_store %arg7[%c0_40, %c2_41], %65 {strides = array<i32>} : memref<16x128xf32, #tpu.memory_space<vmem>>, vector<16x1xf32>,
    %c0_42 = arith.constant 0 : index
    %c2_43 = arith.constant 2 : index
    %67 = vector.load %arg6[%c0_42, %c2_43] : memref<16x128xf32, #tpu.memory_space<vmem>>, vector<16x1xf32>
    %68 = arith.addf %67, %63 : vector<16x1xf32>
    %c0_44 = arith.constant 0 : index
    %c2_45 = arith.constant 2 : index
    %69 = vector.load %arg6[%c0_44, %c2_45] : memref<16x128xf32, #tpu.memory_space<vmem>>, vector<16x1xf32>
    tpu.vector_store %arg6[%c0_44, %c2_45], %68 {strides = array<i32>} : memref<16x128xf32, #tpu.memory_space<vmem>>, vector<16x1xf32>,
    %cst_46 = arith.constant 1.700000e+01 : f32
    %70 = vector.broadcast %cst_46 : f32 to vector<16x256xf32>
    %71 = arith.subf %70, %13 : vector<16x256xf32>
    %cst_47 = arith.constant -1.500000e+01 : f32
    %72 = vector.broadcast %cst_47 : f32 to vector<16x256xf32>
    %73 = arith.addf %13, %72 : vector<16x256xf32>
    %74 = arith.minimumf %71, %73 : vector<16x256xf32>
    %cst_48 = arith.constant 0.000000e+00 : f32
    %75 = vector.broadcast %cst_48 : f32 to vector<16x256xf32>
    %76 = arith.maximumf %74, %75 : vector<16x256xf32>
    %cst_49 = arith.constant 0.000000e+00 : f32
    %77 = vector.broadcast %cst_49 : f32 to vector<16x256xf32>
    %78 = arith.select %10, %76, %77 : vector<16x256xi1>, vector<16x256xf32>
    %cst_50 = arith.constant dense<0.000000e+00> : vector<16xf32>
    %79 = vector.multi_reduction <add>, %76, %cst_50 [1] : vector<16x256xf32> to vector<16xf32>
    %80 = vector.shape_cast %79 : vector<16xf32> to vector<16x1xf32>
    %cst_51 = arith.constant dense<0.000000e+00> : vector<16xf32>
    %81 = vector.multi_reduction <add>, %78, %cst_51 [1] : vector<16x256xf32> to vector<16xf32>
    %82 = vector.shape_cast %81 : vector<16xf32> to vector<16x1xf32>
    %c0_52 = arith.constant 0 : index
    %c3 = arith.constant 3 : index
    %83 = vector.load %arg7[%c0_52, %c3] : memref<16x128xf32, #tpu.memory_space<vmem>>, vector<16x1xf32>
    %84 = arith.addf %83, %80 : vector<16x1xf32>
    %c0_53 = arith.constant 0 : index
    %c3_54 = arith.constant 3 : index
    %85 = vector.load %arg7[%c0_53, %c3_54] : memref<16x128xf32, #tpu.memory_space<vmem>>, vector<16x1xf32>
    tpu.vector_store %arg7[%c0_53, %c3_54], %84 {strides = array<i32>} : memref<16x128xf32, #tpu.memory_space<vmem>>, vector<16x1xf32>,
    %c0_55 = arith.constant 0 : index
    %c3_56 = arith.constant 3 : index
    %86 = vector.load %arg6[%c0_55, %c3_56] : memref<16x128xf32, #tpu.memory_space<vmem>>, vector<16x1xf32>
    %87 = arith.addf %86, %82 : vector<16x1xf32>
    %c0_57 = arith.constant 0 : index
    %c3_58 = arith.constant 3 : index
    %88 = vector.load %arg6[%c0_57, %c3_58] : memref<16x128xf32, #tpu.memory_space<vmem>>, vector<16x1xf32>
    tpu.vector_store %arg6[%c0_57, %c3_58], %87 {strides = array<i32>} : memref<16x128xf32, #tpu.memory_space<vmem>>, vector<16x1xf32>,
    %cst_59 = arith.constant 1.600000e+01 : f32
    %89 = vector.broadcast %cst_59 : f32 to vector<16x256xf32>
    %90 = arith.subf %89, %13 : vector<16x256xf32>
    %cst_60 = arith.constant -1.400000e+01 : f32
    %91 = vector.broadcast %cst_60 : f32 to vector<16x256xf32>
    %92 = arith.addf %13, %91 : vector<16x256xf32>
    %93 = arith.minimumf %90, %92 : vector<16x256xf32>
    %cst_61 = arith.constant 0.000000e+00 : f32
    %94 = vector.broadcast %cst_61 : f32 to vector<16x256xf32>
    %95 = arith.maximumf %93, %94 : vector<16x256xf32>
    %cst_62 = arith.constant 0.000000e+00 : f32
    %96 = vector.broadcast %cst_62 : f32 to vector<16x256xf32>
    %97 = arith.select %10, %95, %96 : vector<16x256xi1>, vector<16x256xf32>
    %cst_63 = arith.constant dense<0.000000e+00> : vector<16xf32>
    %98 = vector.multi_reduction <add>, %95, %cst_63 [1] : vector<16x256xf32> to vector<16xf32>
    %99 = vector.shape_cast %98 : vector<16xf32> to vector<16x1xf32>
    %cst_64 = arith.constant dense<0.000000e+00> : vector<16xf32>
    %100 = vector.multi_reduction <add>, %97, %cst_64 [1] : vector<16x256xf32> to vector<16xf32>
    %101 = vector.shape_cast %100 : vector<16xf32> to vector<16x1xf32>
    %c0_65 = arith.constant 0 : index
    %c4 = arith.constant 4 : index
    %102 = vector.load %arg7[%c0_65, %c4] : memref<16x128xf32, #tpu.memory_space<vmem>>, vector<16x1xf32>
    %103 = arith.addf %102, %99 : vector<16x1xf32>
    %c0_66 = arith.constant 0 : index
    %c4_67 = arith.constant 4 : index
    %104 = vector.load %arg7[%c0_66, %c4_67] : memref<16x128xf32, #tpu.memory_space<vmem>>, vector<16x1xf32>
    tpu.vector_store %arg7[%c0_66, %c4_67], %103 {strides = array<i32>} : memref<16x128xf32, #tpu.memory_space<vmem>>, vector<16x1xf32>,
    %c0_68 = arith.constant 0 : index
    %c4_69 = arith.constant 4 : index
    %105 = vector.load %arg6[%c0_68, %c4_69] : memref<16x128xf32, #tpu.memory_space<vmem>>, vector<16x1xf32>
    %106 = arith.addf %105, %101 : vector<16x1xf32>
    %c0_70 = arith.constant 0 : index
    %c4_71 = arith.constant 4 : index
    %107 = vector.load %arg6[%c0_70, %c4_71] : memref<16x128xf32, #tpu.memory_space<vmem>>, vector<16x1xf32>
    tpu.vector_store %arg6[%c0_70, %c4_71], %106 {strides = array<i32>} : memref<16x128xf32, #tpu.memory_space<vmem>>, vector<16x1xf32>,
    %cst_72 = arith.constant 1.500000e+01 : f32
    %108 = vector.broadcast %cst_72 : f32 to vector<16x256xf32>
    %109 = arith.subf %108, %13 : vector<16x256xf32>
    %cst_73 = arith.constant -1.300000e+01 : f32
    %110 = vector.broadcast %cst_73 : f32 to vector<16x256xf32>
    %111 = arith.addf %13, %110 : vector<16x256xf32>
    %112 = arith.minimumf %109, %111 : vector<16x256xf32>
    %cst_74 = arith.constant 0.000000e+00 : f32
    %113 = vector.broadcast %cst_74 : f32 to vector<16x256xf32>
    %114 = arith.maximumf %112, %113 : vector<16x256xf32>
    %cst_75 = arith.constant 0.000000e+00 : f32
    %115 = vector.broadcast %cst_75 : f32 to vector<16x256xf32>
    %116 = arith.select %10, %114, %115 : vector<16x256xi1>, vector<16x256xf32>
    %cst_76 = arith.constant dense<0.000000e+00> : vector<16xf32>
    %117 = vector.multi_reduction <add>, %114, %cst_76 [1] : vector<16x256xf32> to vector<16xf32>
    %118 = vector.shape_cast %117 : vector<16xf32> to vector<16x1xf32>
    %cst_77 = arith.constant dense<0.000000e+00> : vector<16xf32>
    %119 = vector.multi_reduction <add>, %116, %cst_77 [1] : vector<16x256xf32> to vector<16xf32>
    %120 = vector.shape_cast %119 : vector<16xf32> to vector<16x1xf32>
    %c0_78 = arith.constant 0 : index
    %c5 = arith.constant 5 : index
    %121 = vector.load %arg7[%c0_78, %c5] : memref<16x128xf32, #tpu.memory_space<vmem>>, vector<16x1xf32>
    %122 = arith.addf %121, %118 : vector<16x1xf32>
    %c0_79 = arith.constant 0 : index
    %c5_80 = arith.constant 5 : index
    %123 = vector.load %arg7[%c0_79, %c5_80] : memref<16x128xf32, #tpu.memory_space<vmem>>, vector<16x1xf32>
    tpu.vector_store %arg7[%c0_79, %c5_80], %122 {strides = array<i32>} : memref<16x128xf32, #tpu.memory_space<vmem>>, vector<16x1xf32>,
    %c0_81 = arith.constant 0 : index
    %c5_82 = arith.constant 5 : index
    %124 = vector.load %arg6[%c0_81, %c5_82] : memref<16x128xf32, #tpu.memory_space<vmem>>, vector<16x1xf32>
    %125 = arith.addf %124, %120 : vector<16x1xf32>
    %c0_83 = arith.constant 0 : index
    %c5_84 = arith.constant 5 : index
    %126 = vector.load %arg6[%c0_83, %c5_84] : memref<16x128xf32, #tpu.memory_space<vmem>>, vector<16x1xf32>
    tpu.vector_store %arg6[%c0_83, %c5_84], %125 {strides = array<i32>} : memref<16x128xf32, #tpu.memory_space<vmem>>, vector<16x1xf32>,
    %cst_85 = arith.constant 1.400000e+01 : f32
    %127 = vector.broadcast %cst_85 : f32 to vector<16x256xf32>
    %128 = arith.subf %127, %13 : vector<16x256xf32>
    %cst_86 = arith.constant -1.200000e+01 : f32
    %129 = vector.broadcast %cst_86 : f32 to vector<16x256xf32>
    %130 = arith.addf %13, %129 : vector<16x256xf32>
    %131 = arith.minimumf %128, %130 : vector<16x256xf32>
    %cst_87 = arith.constant 0.000000e+00 : f32
    %132 = vector.broadcast %cst_87 : f32 to vector<16x256xf32>
    %133 = arith.maximumf %131, %132 : vector<16x256xf32>
    %cst_88 = arith.constant 0.000000e+00 : f32
    %134 = vector.broadcast %cst_88 : f32 to vector<16x256xf32>
    %135 = arith.select %10, %133, %134 : vector<16x256xi1>, vector<16x256xf32>
    %cst_89 = arith.constant dense<0.000000e+00> : vector<16xf32>
    %136 = vector.multi_reduction <add>, %133, %cst_89 [1] : vector<16x256xf32> to vector<16xf32>
    %137 = vector.shape_cast %136 : vector<16xf32> to vector<16x1xf32>
    %cst_90 = arith.constant dense<0.000000e+00> : vector<16xf32>
    %138 = vector.multi_reduction <add>, %135, %cst_90 [1] : vector<16x256xf32> to vector<16xf32>
    %139 = vector.shape_cast %138 : vector<16xf32> to vector<16x1xf32>
    %c0_91 = arith.constant 0 : index
    %c6 = arith.constant 6 : index
    %140 = vector.load %arg7[%c0_91, %c6] : memref<16x128xf32, #tpu.memory_space<vmem>>, vector<16x1xf32>
    %141 = arith.addf %140, %137 : vector<16x1xf32>
    %c0_92 = arith.constant 0 : index
    %c6_93 = arith.constant 6 : index
    %142 = vector.load %arg7[%c0_92, %c6_93] : memref<16x128xf32, #tpu.memory_space<vmem>>, vector<16x1xf32>
    tpu.vector_store %arg7[%c0_92, %c6_93], %141 {strides = array<i32>} : memref<16x128xf32, #tpu.memory_space<vmem>>, vector<16x1xf32>,
    %c0_94 = arith.constant 0 : index
    %c6_95 = arith.constant 6 : index
    %143 = vector.load %arg6[%c0_94, %c6_95] : memref<16x128xf32, #tpu.memory_space<vmem>>, vector<16x1xf32>
    %144 = arith.addf %143, %139 : vector<16x1xf32>
    %c0_96 = arith.constant 0 : index
    %c6_97 = arith.constant 6 : index
    %145 = vector.load %arg6[%c0_96, %c6_97] : memref<16x128xf32, #tpu.memory_space<vmem>>, vector<16x1xf32>
    tpu.vector_store %arg6[%c0_96, %c6_97], %144 {strides = array<i32>} : memref<16x128xf32, #tpu.memory_space<vmem>>, vector<16x1xf32>,
    %cst_98 = arith.constant 1.300000e+01 : f32
    %146 = vector.broadcast %cst_98 : f32 to vector<16x256xf32>
    %147 = arith.subf %146, %13 : vector<16x256xf32>
    %cst_99 = arith.constant -1.100000e+01 : f32
    %148 = vector.broadcast %cst_99 : f32 to vector<16x256xf32>
    %149 = arith.addf %13, %148 : vector<16x256xf32>
    %150 = arith.minimumf %147, %149 : vector<16x256xf32>
    %cst_100 = arith.constant 0.000000e+00 : f32
    %151 = vector.broadcast %cst_100 : f32 to vector<16x256xf32>
    %152 = arith.maximumf %150, %151 : vector<16x256xf32>
    %cst_101 = arith.constant 0.000000e+00 : f32
    %153 = vector.broadcast %cst_101 : f32 to vector<16x256xf32>
    %154 = arith.select %10, %152, %153 : vector<16x256xi1>, vector<16x256xf32>
    %cst_102 = arith.constant dense<0.000000e+00> : vector<16xf32>
    %155 = vector.multi_reduction <add>, %152, %cst_102 [1] : vector<16x256xf32> to vector<16xf32>
    %156 = vector.shape_cast %155 : vector<16xf32> to vector<16x1xf32>
    %cst_103 = arith.constant dense<0.000000e+00> : vector<16xf32>
    %157 = vector.multi_reduction <add>, %154, %cst_103 [1] : vector<16x256xf32> to vector<16xf32>
    %158 = vector.shape_cast %157 : vector<16xf32> to vector<16x1xf32>
    %c0_104 = arith.constant 0 : index
    %c7 = arith.constant 7 : index
    %159 = vector.load %arg7[%c0_104, %c7] : memref<16x128xf32, #tpu.memory_space<vmem>>, vector<16x1xf32>
    %160 = arith.addf %159, %156 : vector<16x1xf32>
    %c0_105 = arith.constant 0 : index
    %c7_106 = arith.constant 7 : index
    %161 = vector.load %arg7[%c0_105, %c7_106] : memref<16x128xf32, #tpu.memory_space<vmem>>, vector<16x1xf32>
    tpu.vector_store %arg7[%c0_105, %c7_106], %160 {strides = array<i32>} : memref<16x128xf32, #tpu.memory_space<vmem>>, vector<16x1xf32>,
    %c0_107 = arith.constant 0 : index
    %c7_108 = arith.constant 7 : index
    %162 = vector.load %arg6[%c0_107, %c7_108] : memref<16x128xf32, #tpu.memory_space<vmem>>, vector<16x1xf32>
    %163 = arith.addf %162, %158 : vector<16x1xf32>
    %c0_109 = arith.constant 0 : index
    %c7_110 = arith.constant 7 : index
    %164 = vector.load %arg6[%c0_109, %c7_110] : memref<16x128xf32, #tpu.memory_space<vmem>>, vector<16x1xf32>
    tpu.vector_store %arg6[%c0_109, %c7_110], %163 {strides = array<i32>} : memref<16x128xf32, #tpu.memory_space<vmem>>, vector<16x1xf32>,
    %cst_111 = arith.constant 1.200000e+01 : f32
    %165 = vector.broadcast %cst_111 : f32 to vector<16x256xf32>
    %166 = arith.subf %165, %13 : vector<16x256xf32>
    %cst_112 = arith.constant -1.000000e+01 : f32
    %167 = vector.broadcast %cst_112 : f32 to vector<16x256xf32>
    %168 = arith.addf %13, %167 : vector<16x256xf32>
    %169 = arith.minimumf %166, %168 : vector<16x256xf32>
    %cst_113 = arith.constant 0.000000e+00 : f32
    %170 = vector.broadcast %cst_113 : f32 to vector<16x256xf32>
    %171 = arith.maximumf %169, %170 : vector<16x256xf32>
    %cst_114 = arith.constant 0.000000e+00 : f32
    %172 = vector.broadcast %cst_114 : f32 to vector<16x256xf32>
    %173 = arith.select %10, %171, %172 : vector<16x256xi1>, vector<16x256xf32>
    %cst_115 = arith.constant dense<0.000000e+00> : vector<16xf32>
    %174 = vector.multi_reduction <add>, %171, %cst_115 [1] : vector<16x256xf32> to vector<16xf32>
    %175 = vector.shape_cast %174 : vector<16xf32> to vector<16x1xf32>
    %cst_116 = arith.constant dense<0.000000e+00> : vector<16xf32>
    %176 = vector.multi_reduction <add>, %173, %cst_116 [1] : vector<16x256xf32> to vector<16xf32>
    %177 = vector.shape_cast %176 : vector<16xf32> to vector<16x1xf32>
    %c0_117 = arith.constant 0 : index
    %c8 = arith.constant 8 : index
    %178 = vector.load %arg7[%c0_117, %c8] : memref<16x128xf32, #tpu.memory_space<vmem>>, vector<16x1xf32>
    %179 = arith.addf %178, %175 : vector<16x1xf32>
    %c0_118 = arith.constant 0 : index
    %c8_119 = arith.constant 8 : index
    %180 = vector.load %arg7[%c0_118, %c8_119] : memref<16x128xf32, #tpu.memory_space<vmem>>, vector<16x1xf32>
    tpu.vector_store %arg7[%c0_118, %c8_119], %179 {strides = array<i32>} : memref<16x128xf32, #tpu.memory_space<vmem>>, vector<16x1xf32>,
    %c0_120 = arith.constant 0 : index
    %c8_121 = arith.constant 8 : index
    %181 = vector.load %arg6[%c0_120, %c8_121] : memref<16x128xf32, #tpu.memory_space<vmem>>, vector<16x1xf32>
    %182 = arith.addf %181, %177 : vector<16x1xf32>
    %c0_122 = arith.constant 0 : index
    %c8_123 = arith.constant 8 : index
    %183 = vector.load %arg6[%c0_122, %c8_123] : memref<16x128xf32, #tpu.memory_space<vmem>>, vector<16x1xf32>
    tpu.vector_store %arg6[%c0_122, %c8_123], %182 {strides = array<i32>} : memref<16x128xf32, #tpu.memory_space<vmem>>, vector<16x1xf32>,
    %cst_124 = arith.constant 1.100000e+01 : f32
    %184 = vector.broadcast %cst_124 : f32 to vector<16x256xf32>
    %185 = arith.subf %184, %13 : vector<16x256xf32>
    %cst_125 = arith.constant -9.000000e+00 : f32
    %186 = vector.broadcast %cst_125 : f32 to vector<16x256xf32>
    %187 = arith.addf %13, %186 : vector<16x256xf32>
    %188 = arith.minimumf %185, %187 : vector<16x256xf32>
    %cst_126 = arith.constant 0.000000e+00 : f32
    %189 = vector.broadcast %cst_126 : f32 to vector<16x256xf32>
    %190 = arith.maximumf %188, %189 : vector<16x256xf32>
    %cst_127 = arith.constant 0.000000e+00 : f32
    %191 = vector.broadcast %cst_127 : f32 to vector<16x256xf32>
    %192 = arith.select %10, %190, %191 : vector<16x256xi1>, vector<16x256xf32>
    %cst_128 = arith.constant dense<0.000000e+00> : vector<16xf32>
    %193 = vector.multi_reduction <add>, %190, %cst_128 [1] : vector<16x256xf32> to vector<16xf32>
    %194 = vector.shape_cast %193 : vector<16xf32> to vector<16x1xf32>
    %cst_129 = arith.constant dense<0.000000e+00> : vector<16xf32>
    %195 = vector.multi_reduction <add>, %192, %cst_129 [1] : vector<16x256xf32> to vector<16xf32>
    %196 = vector.shape_cast %195 : vector<16xf32> to vector<16x1xf32>
    %c0_130 = arith.constant 0 : index
    %c9 = arith.constant 9 : index
    %197 = vector.load %arg7[%c0_130, %c9] : memref<16x128xf32, #tpu.memory_space<vmem>>, vector<16x1xf32>
    %198 = arith.addf %197, %194 : vector<16x1xf32>
    %c0_131 = arith.constant 0 : index
    %c9_132 = arith.constant 9 : index
    %199 = vector.load %arg7[%c0_131, %c9_132] : memref<16x128xf32, #tpu.memory_space<vmem>>, vector<16x1xf32>
    tpu.vector_store %arg7[%c0_131, %c9_132], %198 {strides = array<i32>} : memref<16x128xf32, #tpu.memory_space<vmem>>, vector<16x1xf32>,
    %c0_133 = arith.constant 0 : index
    %c9_134 = arith.constant 9 : index
    %200 = vector.load %arg6[%c0_133, %c9_134] : memref<16x128xf32, #tpu.memory_space<vmem>>, vector<16x1xf32>
    %201 = arith.addf %200, %196 : vector<16x1xf32>
    %c0_135 = arith.constant 0 : index
    %c9_136 = arith.constant 9 : index
    %202 = vector.load %arg6[%c0_135, %c9_136] : memref<16x128xf32, #tpu.memory_space<vmem>>, vector<16x1xf32>
    tpu.vector_store %arg6[%c0_135, %c9_136], %201 {strides = array<i32>} : memref<16x128xf32, #tpu.memory_space<vmem>>, vector<16x1xf32>,
    %cst_137 = arith.constant 1.000000e+01 : f32
    %203 = vector.broadcast %cst_137 : f32 to vector<16x256xf32>
    %204 = arith.subf %203, %13 : vector<16x256xf32>
    %cst_138 = arith.constant -8.000000e+00 : f32
    %205 = vector.broadcast %cst_138 : f32 to vector<16x256xf32>
    %206 = arith.addf %13, %205 : vector<16x256xf32>
    %207 = arith.minimumf %204, %206 : vector<16x256xf32>
    %cst_139 = arith.constant 0.000000e+00 : f32
    %208 = vector.broadcast %cst_139 : f32 to vector<16x256xf32>
    %209 = arith.maximumf %207, %208 : vector<16x256xf32>
    %cst_140 = arith.constant 0.000000e+00 : f32
    %210 = vector.broadcast %cst_140 : f32 to vector<16x256xf32>
    %211 = arith.select %10, %209, %210 : vector<16x256xi1>, vector<16x256xf32>
    %cst_141 = arith.constant dense<0.000000e+00> : vector<16xf32>
    %212 = vector.multi_reduction <add>, %209, %cst_141 [1] : vector<16x256xf32> to vector<16xf32>
    %213 = vector.shape_cast %212 : vector<16xf32> to vector<16x1xf32>
    %cst_142 = arith.constant dense<0.000000e+00> : vector<16xf32>
    %214 = vector.multi_reduction <add>, %211, %cst_142 [1] : vector<16x256xf32> to vector<16xf32>
    %215 = vector.shape_cast %214 : vector<16xf32> to vector<16x1xf32>
    %c0_143 = arith.constant 0 : index
    %c10 = arith.constant 10 : index
    %216 = vector.load %arg7[%c0_143, %c10] : memref<16x128xf32, #tpu.memory_space<vmem>>, vector<16x1xf32>
    %217 = arith.addf %216, %213 : vector<16x1xf32>
    %c0_144 = arith.constant 0 : index
    %c10_145 = arith.constant 10 : index
    %218 = vector.load %arg7[%c0_144, %c10_145] : memref<16x128xf32, #tpu.memory_space<vmem>>, vector<16x1xf32>
    tpu.vector_store %arg7[%c0_144, %c10_145], %217 {strides = array<i32>} : memref<16x128xf32, #tpu.memory_space<vmem>>, vector<16x1xf32>,
    %c0_146 = arith.constant 0 : index
    %c10_147 = arith.constant 10 : index
    %219 = vector.load %arg6[%c0_146, %c10_147] : memref<16x128xf32, #tpu.memory_space<vmem>>, vector<16x1xf32>
    %220 = arith.addf %219, %215 : vector<16x1xf32>
    %c0_148 = arith.constant 0 : index
    %c10_149 = arith.constant 10 : index
    %221 = vector.load %arg6[%c0_148, %c10_149] : memref<16x128xf32, #tpu.memory_space<vmem>>, vector<16x1xf32>
    tpu.vector_store %arg6[%c0_148, %c10_149], %220 {strides = array<i32>} : memref<16x128xf32, #tpu.memory_space<vmem>>, vector<16x1xf32>,
    %cst_150 = arith.constant 9.000000e+00 : f32
    %222 = vector.broadcast %cst_150 : f32 to vector<16x256xf32>
    %223 = arith.subf %222, %13 : vector<16x256xf32>
    %cst_151 = arith.constant -7.000000e+00 : f32
    %224 = vector.broadcast %cst_151 : f32 to vector<16x256xf32>
    %225 = arith.addf %13, %224 : vector<16x256xf32>
    %226 = arith.minimumf %223, %225 : vector<16x256xf32>
    %cst_152 = arith.constant 0.000000e+00 : f32
    %227 = vector.broadcast %cst_152 : f32 to vector<16x256xf32>
    %228 = arith.maximumf %226, %227 : vector<16x256xf32>
    %cst_153 = arith.constant 0.000000e+00 : f32
    %229 = vector.broadcast %cst_153 : f32 to vector<16x256xf32>
    %230 = arith.select %10, %228, %229 : vector<16x256xi1>, vector<16x256xf32>
    %cst_154 = arith.constant dense<0.000000e+00> : vector<16xf32>
    %231 = vector.multi_reduction <add>, %228, %cst_154 [1] : vector<16x256xf32> to vector<16xf32>
    %232 = vector.shape_cast %231 : vector<16xf32> to vector<16x1xf32>
    %cst_155 = arith.constant dense<0.000000e+00> : vector<16xf32>
    %233 = vector.multi_reduction <add>, %230, %cst_155 [1] : vector<16x256xf32> to vector<16xf32>
    %234 = vector.shape_cast %233 : vector<16xf32> to vector<16x1xf32>
    %c0_156 = arith.constant 0 : index
    %c11 = arith.constant 11 : index
    %235 = vector.load %arg7[%c0_156, %c11] : memref<16x128xf32, #tpu.memory_space<vmem>>, vector<16x1xf32>
    %236 = arith.addf %235, %232 : vector<16x1xf32>
    %c0_157 = arith.constant 0 : index
    %c11_158 = arith.constant 11 : index
    %237 = vector.load %arg7[%c0_157, %c11_158] : memref<16x128xf32, #tpu.memory_space<vmem>>, vector<16x1xf32>
    tpu.vector_store %arg7[%c0_157, %c11_158], %236 {strides = array<i32>} : memref<16x128xf32, #tpu.memory_space<vmem>>, vector<16x1xf32>,
    %c0_159 = arith.constant 0 : index
    %c11_160 = arith.constant 11 : index
    %238 = vector.load %arg6[%c0_159, %c11_160] : memref<16x128xf32, #tpu.memory_space<vmem>>, vector<16x1xf32>
    %239 = arith.addf %238, %234 : vector<16x1xf32>
    %c0_161 = arith.constant 0 : index
    %c11_162 = arith.constant 11 : index
    %240 = vector.load %arg6[%c0_161, %c11_162] : memref<16x128xf32, #tpu.memory_space<vmem>>, vector<16x1xf32>
    tpu.vector_store %arg6[%c0_161, %c11_162], %239 {strides = array<i32>} : memref<16x128xf32, #tpu.memory_space<vmem>>, vector<16x1xf32>,
    %cst_163 = arith.constant 8.000000e+00 : f32
    %241 = vector.broadcast %cst_163 : f32 to vector<16x256xf32>
    %242 = arith.subf %241, %13 : vector<16x256xf32>
    %cst_164 = arith.constant -6.000000e+00 : f32
    %243 = vector.broadcast %cst_164 : f32 to vector<16x256xf32>
    %244 = arith.addf %13, %243 : vector<16x256xf32>
    %245 = arith.minimumf %242, %244 : vector<16x256xf32>
    %cst_165 = arith.constant 0.000000e+00 : f32
    %246 = vector.broadcast %cst_165 : f32 to vector<16x256xf32>
    %247 = arith.maximumf %245, %246 : vector<16x256xf32>
    %cst_166 = arith.constant 0.000000e+00 : f32
    %248 = vector.broadcast %cst_166 : f32 to vector<16x256xf32>
    %249 = arith.select %10, %247, %248 : vector<16x256xi1>, vector<16x256xf32>
    %cst_167 = arith.constant dense<0.000000e+00> : vector<16xf32>
    %250 = vector.multi_reduction <add>, %247, %cst_167 [1] : vector<16x256xf32> to vector<16xf32>
    %251 = vector.shape_cast %250 : vector<16xf32> to vector<16x1xf32>
    %cst_168 = arith.constant dense<0.000000e+00> : vector<16xf32>
    %252 = vector.multi_reduction <add>, %249, %cst_168 [1] : vector<16x256xf32> to vector<16xf32>
    %253 = vector.shape_cast %252 : vector<16xf32> to vector<16x1xf32>
    %c0_169 = arith.constant 0 : index
    %c12 = arith.constant 12 : index
    %254 = vector.load %arg7[%c0_169, %c12] : memref<16x128xf32, #tpu.memory_space<vmem>>, vector<16x1xf32>
    %255 = arith.addf %254, %251 : vector<16x1xf32>
    %c0_170 = arith.constant 0 : index
    %c12_171 = arith.constant 12 : index
    %256 = vector.load %arg7[%c0_170, %c12_171] : memref<16x128xf32, #tpu.memory_space<vmem>>, vector<16x1xf32>
    tpu.vector_store %arg7[%c0_170, %c12_171], %255 {strides = array<i32>} : memref<16x128xf32, #tpu.memory_space<vmem>>, vector<16x1xf32>,
    %c0_172 = arith.constant 0 : index
    %c12_173 = arith.constant 12 : index
    %257 = vector.load %arg6[%c0_172, %c12_173] : memref<16x128xf32, #tpu.memory_space<vmem>>, vector<16x1xf32>
    %258 = arith.addf %257, %253 : vector<16x1xf32>
    %c0_174 = arith.constant 0 : index
    %c12_175 = arith.constant 12 : index
    %259 = vector.load %arg6[%c0_174, %c12_175] : memref<16x128xf32, #tpu.memory_space<vmem>>, vector<16x1xf32>
    tpu.vector_store %arg6[%c0_174, %c12_175], %258 {strides = array<i32>} : memref<16x128xf32, #tpu.memory_space<vmem>>, vector<16x1xf32>,
    %cst_176 = arith.constant 7.000000e+00 : f32
    %260 = vector.broadcast %cst_176 : f32 to vector<16x256xf32>
    %261 = arith.subf %260, %13 : vector<16x256xf32>
    %cst_177 = arith.constant -5.000000e+00 : f32
    %262 = vector.broadcast %cst_177 : f32 to vector<16x256xf32>
    %263 = arith.addf %13, %262 : vector<16x256xf32>
    %264 = arith.minimumf %261, %263 : vector<16x256xf32>
    %cst_178 = arith.constant 0.000000e+00 : f32
    %265 = vector.broadcast %cst_178 : f32 to vector<16x256xf32>
    %266 = arith.maximumf %264, %265 : vector<16x256xf32>
    %cst_179 = arith.constant 0.000000e+00 : f32
    %267 = vector.broadcast %cst_179 : f32 to vector<16x256xf32>
    %268 = arith.select %10, %266, %267 : vector<16x256xi1>, vector<16x256xf32>
    %cst_180 = arith.constant dense<0.000000e+00> : vector<16xf32>
    %269 = vector.multi_reduction <add>, %266, %cst_180 [1] : vector<16x256xf32> to vector<16xf32>
    %270 = vector.shape_cast %269 : vector<16xf32> to vector<16x1xf32>
    %cst_181 = arith.constant dense<0.000000e+00> : vector<16xf32>
    %271 = vector.multi_reduction <add>, %268, %cst_181 [1] : vector<16x256xf32> to vector<16xf32>
    %272 = vector.shape_cast %271 : vector<16xf32> to vector<16x1xf32>
    %c0_182 = arith.constant 0 : index
    %c13 = arith.constant 13 : index
    %273 = vector.load %arg7[%c0_182, %c13] : memref<16x128xf32, #tpu.memory_space<vmem>>, vector<16x1xf32>
    %274 = arith.addf %273, %270 : vector<16x1xf32>
    %c0_183 = arith.constant 0 : index
    %c13_184 = arith.constant 13 : index
    %275 = vector.load %arg7[%c0_183, %c13_184] : memref<16x128xf32, #tpu.memory_space<vmem>>, vector<16x1xf32>
    tpu.vector_store %arg7[%c0_183, %c13_184], %274 {strides = array<i32>} : memref<16x128xf32, #tpu.memory_space<vmem>>, vector<16x1xf32>,
    %c0_185 = arith.constant 0 : index
    %c13_186 = arith.constant 13 : index
    %276 = vector.load %arg6[%c0_185, %c13_186] : memref<16x128xf32, #tpu.memory_space<vmem>>, vector<16x1xf32>
    %277 = arith.addf %276, %272 : vector<16x1xf32>
    %c0_187 = arith.constant 0 : index
    %c13_188 = arith.constant 13 : index
    %278 = vector.load %arg6[%c0_187, %c13_188] : memref<16x128xf32, #tpu.memory_space<vmem>>, vector<16x1xf32>
    tpu.vector_store %arg6[%c0_187, %c13_188], %277 {strides = array<i32>} : memref<16x128xf32, #tpu.memory_space<vmem>>, vector<16x1xf32>,
    %cst_189 = arith.constant 6.000000e+00 : f32
    %279 = vector.broadcast %cst_189 : f32 to vector<16x256xf32>
    %280 = arith.subf %279, %13 : vector<16x256xf32>
    %cst_190 = arith.constant -4.000000e+00 : f32
    %281 = vector.broadcast %cst_190 : f32 to vector<16x256xf32>
    %282 = arith.addf %13, %281 : vector<16x256xf32>
    %283 = arith.minimumf %280, %282 : vector<16x256xf32>
    %cst_191 = arith.constant 0.000000e+00 : f32
    %284 = vector.broadcast %cst_191 : f32 to vector<16x256xf32>
    %285 = arith.maximumf %283, %284 : vector<16x256xf32>
    %cst_192 = arith.constant 0.000000e+00 : f32
    %286 = vector.broadcast %cst_192 : f32 to vector<16x256xf32>
    %287 = arith.select %10, %285, %286 : vector<16x256xi1>, vector<16x256xf32>
    %cst_193 = arith.constant dense<0.000000e+00> : vector<16xf32>
    %288 = vector.multi_reduction <add>, %285, %cst_193 [1] : vector<16x256xf32> to vector<16xf32>
    %289 = vector.shape_cast %288 : vector<16xf32> to vector<16x1xf32>
    %cst_194 = arith.constant dense<0.000000e+00> : vector<16xf32>
    %290 = vector.multi_reduction <add>, %287, %cst_194 [1] : vector<16x256xf32> to vector<16xf32>
    %291 = vector.shape_cast %290 : vector<16xf32> to vector<16x1xf32>
    %c0_195 = arith.constant 0 : index
    %c14 = arith.constant 14 : index
    %292 = vector.load %arg7[%c0_195, %c14] : memref<16x128xf32, #tpu.memory_space<vmem>>, vector<16x1xf32>
    %293 = arith.addf %292, %289 : vector<16x1xf32>
    %c0_196 = arith.constant 0 : index
    %c14_197 = arith.constant 14 : index
    %294 = vector.load %arg7[%c0_196, %c14_197] : memref<16x128xf32, #tpu.memory_space<vmem>>, vector<16x1xf32>
    tpu.vector_store %arg7[%c0_196, %c14_197], %293 {strides = array<i32>} : memref<16x128xf32, #tpu.memory_space<vmem>>, vector<16x1xf32>,
    %c0_198 = arith.constant 0 : index
    %c14_199 = arith.constant 14 : index
    %295 = vector.load %arg6[%c0_198, %c14_199] : memref<16x128xf32, #tpu.memory_space<vmem>>, vector<16x1xf32>
    %296 = arith.addf %295, %291 : vector<16x1xf32>
    %c0_200 = arith.constant 0 : index
    %c14_201 = arith.constant 14 : index
    %297 = vector.load %arg6[%c0_200, %c14_201] : memref<16x128xf32, #tpu.memory_space<vmem>>, vector<16x1xf32>
    tpu.vector_store %arg6[%c0_200, %c14_201], %296 {strides = array<i32>} : memref<16x128xf32, #tpu.memory_space<vmem>>, vector<16x1xf32>,
    %cst_202 = arith.constant 5.000000e+00 : f32
    %298 = vector.broadcast %cst_202 : f32 to vector<16x256xf32>
    %299 = arith.subf %298, %13 : vector<16x256xf32>
    %cst_203 = arith.constant -3.000000e+00 : f32
    %300 = vector.broadcast %cst_203 : f32 to vector<16x256xf32>
    %301 = arith.addf %13, %300 : vector<16x256xf32>
    %302 = arith.minimumf %299, %301 : vector<16x256xf32>
    %cst_204 = arith.constant 0.000000e+00 : f32
    %303 = vector.broadcast %cst_204 : f32 to vector<16x256xf32>
    %304 = arith.maximumf %302, %303 : vector<16x256xf32>
    %cst_205 = arith.constant 0.000000e+00 : f32
    %305 = vector.broadcast %cst_205 : f32 to vector<16x256xf32>
    %306 = arith.select %10, %304, %305 : vector<16x256xi1>, vector<16x256xf32>
    %cst_206 = arith.constant dense<0.000000e+00> : vector<16xf32>
    %307 = vector.multi_reduction <add>, %304, %cst_206 [1] : vector<16x256xf32> to vector<16xf32>
    %308 = vector.shape_cast %307 : vector<16xf32> to vector<16x1xf32>
    %cst_207 = arith.constant dense<0.000000e+00> : vector<16xf32>
    %309 = vector.multi_reduction <add>, %306, %cst_207 [1] : vector<16x256xf32> to vector<16xf32>
    %310 = vector.shape_cast %309 : vector<16xf32> to vector<16x1xf32>
    %c0_208 = arith.constant 0 : index
    %c15 = arith.constant 15 : index
    %311 = vector.load %arg7[%c0_208, %c15] : memref<16x128xf32, #tpu.memory_space<vmem>>, vector<16x1xf32>
    %312 = arith.addf %311, %308 : vector<16x1xf32>
    %c0_209 = arith.constant 0 : index
    %c15_210 = arith.constant 15 : index
    %313 = vector.load %arg7[%c0_209, %c15_210] : memref<16x128xf32, #tpu.memory_space<vmem>>, vector<16x1xf32>
    tpu.vector_store %arg7[%c0_209, %c15_210], %312 {strides = array<i32>} : memref<16x128xf32, #tpu.memory_space<vmem>>, vector<16x1xf32>,
    %c0_211 = arith.constant 0 : index
    %c15_212 = arith.constant 15 : index
    %314 = vector.load %arg6[%c0_211, %c15_212] : memref<16x128xf32, #tpu.memory_space<vmem>>, vector<16x1xf32>
    %315 = arith.addf %314, %310 : vector<16x1xf32>
    %c0_213 = arith.constant 0 : index
    %c15_214 = arith.constant 15 : index
    %316 = vector.load %arg6[%c0_213, %c15_214] : memref<16x128xf32, #tpu.memory_space<vmem>>, vector<16x1xf32>
    tpu.vector_store %arg6[%c0_213, %c15_214], %315 {strides = array<i32>} : memref<16x128xf32, #tpu.memory_space<vmem>>, vector<16x1xf32>,
    %cst_215 = arith.constant 4.000000e+00 : f32
    %317 = vector.broadcast %cst_215 : f32 to vector<16x256xf32>
    %318 = arith.subf %317, %13 : vector<16x256xf32>
    %cst_216 = arith.constant -2.000000e+00 : f32
    %319 = vector.broadcast %cst_216 : f32 to vector<16x256xf32>
    %320 = arith.addf %13, %319 : vector<16x256xf32>
    %321 = arith.minimumf %318, %320 : vector<16x256xf32>
    %cst_217 = arith.constant 0.000000e+00 : f32
    %322 = vector.broadcast %cst_217 : f32 to vector<16x256xf32>
    %323 = arith.maximumf %321, %322 : vector<16x256xf32>
    %cst_218 = arith.constant 0.000000e+00 : f32
    %324 = vector.broadcast %cst_218 : f32 to vector<16x256xf32>
    %325 = arith.select %10, %323, %324 : vector<16x256xi1>, vector<16x256xf32>
    %cst_219 = arith.constant dense<0.000000e+00> : vector<16xf32>
    %326 = vector.multi_reduction <add>, %323, %cst_219 [1] : vector<16x256xf32> to vector<16xf32>
    %327 = vector.shape_cast %326 : vector<16xf32> to vector<16x1xf32>
    %cst_220 = arith.constant dense<0.000000e+00> : vector<16xf32>
    %328 = vector.multi_reduction <add>, %325, %cst_220 [1] : vector<16x256xf32> to vector<16xf32>
    %329 = vector.shape_cast %328 : vector<16xf32> to vector<16x1xf32>
    %c0_221 = arith.constant 0 : index
    %c16 = arith.constant 16 : index
    %330 = vector.load %arg7[%c0_221, %c16] : memref<16x128xf32, #tpu.memory_space<vmem>>, vector<16x1xf32>
    %331 = arith.addf %330, %327 : vector<16x1xf32>
    %c0_222 = arith.constant 0 : index
    %c16_223 = arith.constant 16 : index
    %332 = vector.load %arg7[%c0_222, %c16_223] : memref<16x128xf32, #tpu.memory_space<vmem>>, vector<16x1xf32>
    tpu.vector_store %arg7[%c0_222, %c16_223], %331 {strides = array<i32>} : memref<16x128xf32, #tpu.memory_space<vmem>>, vector<16x1xf32>,
    %c0_224 = arith.constant 0 : index
    %c16_225 = arith.constant 16 : index
    %333 = vector.load %arg6[%c0_224, %c16_225] : memref<16x128xf32, #tpu.memory_space<vmem>>, vector<16x1xf32>
    %334 = arith.addf %333, %329 : vector<16x1xf32>
    %c0_226 = arith.constant 0 : index
    %c16_227 = arith.constant 16 : index
    %335 = vector.load %arg6[%c0_226, %c16_227] : memref<16x128xf32, #tpu.memory_space<vmem>>, vector<16x1xf32>
    tpu.vector_store %arg6[%c0_226, %c16_227], %334 {strides = array<i32>} : memref<16x128xf32, #tpu.memory_space<vmem>>, vector<16x1xf32>,
    %cst_228 = arith.constant 3.000000e+00 : f32
    %336 = vector.broadcast %cst_228 : f32 to vector<16x256xf32>
    %337 = arith.subf %336, %13 : vector<16x256xf32>
    %cst_229 = arith.constant -1.000000e+00 : f32
    %338 = vector.broadcast %cst_229 : f32 to vector<16x256xf32>
    %339 = arith.addf %13, %338 : vector<16x256xf32>
    %340 = arith.minimumf %337, %339 : vector<16x256xf32>
    %cst_230 = arith.constant 0.000000e+00 : f32
    %341 = vector.broadcast %cst_230 : f32 to vector<16x256xf32>
    %342 = arith.maximumf %340, %341 : vector<16x256xf32>
    %cst_231 = arith.constant 0.000000e+00 : f32
    %343 = vector.broadcast %cst_231 : f32 to vector<16x256xf32>
    %344 = arith.select %10, %342, %343 : vector<16x256xi1>, vector<16x256xf32>
    %cst_232 = arith.constant dense<0.000000e+00> : vector<16xf32>
    %345 = vector.multi_reduction <add>, %342, %cst_232 [1] : vector<16x256xf32> to vector<16xf32>
    %346 = vector.shape_cast %345 : vector<16xf32> to vector<16x1xf32>
    %cst_233 = arith.constant dense<0.000000e+00> : vector<16xf32>
    %347 = vector.multi_reduction <add>, %344, %cst_233 [1] : vector<16x256xf32> to vector<16xf32>
    %348 = vector.shape_cast %347 : vector<16xf32> to vector<16x1xf32>
    %c0_234 = arith.constant 0 : index
    %c17 = arith.constant 17 : index
    %349 = vector.load %arg7[%c0_234, %c17] : memref<16x128xf32, #tpu.memory_space<vmem>>, vector<16x1xf32>
    %350 = arith.addf %349, %346 : vector<16x1xf32>
    %c0_235 = arith.constant 0 : index
    %c17_236 = arith.constant 17 : index
    %351 = vector.load %arg7[%c0_235, %c17_236] : memref<16x128xf32, #tpu.memory_space<vmem>>, vector<16x1xf32>
    tpu.vector_store %arg7[%c0_235, %c17_236], %350 {strides = array<i32>} : memref<16x128xf32, #tpu.memory_space<vmem>>, vector<16x1xf32>,
    %c0_237 = arith.constant 0 : index
    %c17_238 = arith.constant 17 : index
    %352 = vector.load %arg6[%c0_237, %c17_238] : memref<16x128xf32, #tpu.memory_space<vmem>>, vector<16x1xf32>
    %353 = arith.addf %352, %348 : vector<16x1xf32>
    %c0_239 = arith.constant 0 : index
    %c17_240 = arith.constant 17 : index
    %354 = vector.load %arg6[%c0_239, %c17_240] : memref<16x128xf32, #tpu.memory_space<vmem>>, vector<16x1xf32>
    tpu.vector_store %arg6[%c0_239, %c17_240], %353 {strides = array<i32>} : memref<16x128xf32, #tpu.memory_space<vmem>>, vector<16x1xf32>,
    %cst_241 = arith.constant 2.000000e+00 : f32
    %355 = vector.broadcast %cst_241 : f32 to vector<16x256xf32>
    %356 = arith.subf %355, %13 : vector<16x256xf32>
    %cst_242 = arith.constant 0.000000e+00 : f32
    %357 = vector.broadcast %cst_242 : f32 to vector<16x256xf32>
    %358 = arith.addf %13, %357 : vector<16x256xf32>
    %359 = arith.minimumf %356, %358 : vector<16x256xf32>
    %cst_243 = arith.constant 0.000000e+00 : f32
    %360 = vector.broadcast %cst_243 : f32 to vector<16x256xf32>
    %361 = arith.maximumf %359, %360 : vector<16x256xf32>
    %cst_244 = arith.constant 0.000000e+00 : f32
    %362 = vector.broadcast %cst_244 : f32 to vector<16x256xf32>
    %363 = arith.select %10, %361, %362 : vector<16x256xi1>, vector<16x256xf32>
    %cst_245 = arith.constant dense<0.000000e+00> : vector<16xf32>
    %364 = vector.multi_reduction <add>, %361, %cst_245 [1] : vector<16x256xf32> to vector<16xf32>
    %365 = vector.shape_cast %364 : vector<16xf32> to vector<16x1xf32>
    %cst_246 = arith.constant dense<0.000000e+00> : vector<16xf32>
    %366 = vector.multi_reduction <add>, %363, %cst_246 [1] : vector<16x256xf32> to vector<16xf32>
    %367 = vector.shape_cast %366 : vector<16xf32> to vector<16x1xf32>
    %c0_247 = arith.constant 0 : index
    %c18 = arith.constant 18 : index
    %368 = vector.load %arg7[%c0_247, %c18] : memref<16x128xf32, #tpu.memory_space<vmem>>, vector<16x1xf32>
    %369 = arith.addf %368, %365 : vector<16x1xf32>
    %c0_248 = arith.constant 0 : index
    %c18_249 = arith.constant 18 : index
    %370 = vector.load %arg7[%c0_248, %c18_249] : memref<16x128xf32, #tpu.memory_space<vmem>>, vector<16x1xf32>
    tpu.vector_store %arg7[%c0_248, %c18_249], %369 {strides = array<i32>} : memref<16x128xf32, #tpu.memory_space<vmem>>, vector<16x1xf32>,
    %c0_250 = arith.constant 0 : index
    %c18_251 = arith.constant 18 : index
    %371 = vector.load %arg6[%c0_250, %c18_251] : memref<16x128xf32, #tpu.memory_space<vmem>>, vector<16x1xf32>
    %372 = arith.addf %371, %367 : vector<16x1xf32>
    %c0_252 = arith.constant 0 : index
    %c18_253 = arith.constant 18 : index
    %373 = vector.load %arg6[%c0_252, %c18_253] : memref<16x128xf32, #tpu.memory_space<vmem>>, vector<16x1xf32>
    tpu.vector_store %arg6[%c0_252, %c18_253], %372 {strides = array<i32>} : memref<16x128xf32, #tpu.memory_space<vmem>>, vector<16x1xf32>,
    %cst_254 = arith.constant 1.000000e+00 : f32
    %374 = vector.broadcast %cst_254 : f32 to vector<16x256xf32>
    %375 = arith.subf %374, %13 : vector<16x256xf32>
    %cst_255 = arith.constant 1.000000e+00 : f32
    %376 = vector.broadcast %cst_255 : f32 to vector<16x256xf32>
    %377 = arith.minimumf %375, %376 : vector<16x256xf32>
    %cst_256 = arith.constant 0.000000e+00 : f32
    %378 = vector.broadcast %cst_256 : f32 to vector<16x256xf32>
    %379 = arith.maximumf %377, %378 : vector<16x256xf32>
    %cst_257 = arith.constant 0.000000e+00 : f32
    %380 = vector.broadcast %cst_257 : f32 to vector<16x256xf32>
    %381 = arith.select %10, %379, %380 : vector<16x256xi1>, vector<16x256xf32>
    %cst_258 = arith.constant dense<0.000000e+00> : vector<16xf32>
    %382 = vector.multi_reduction <add>, %379, %cst_258 [1] : vector<16x256xf32> to vector<16xf32>
    %383 = vector.shape_cast %382 : vector<16xf32> to vector<16x1xf32>
    %cst_259 = arith.constant dense<0.000000e+00> : vector<16xf32>
    %384 = vector.multi_reduction <add>, %381, %cst_259 [1] : vector<16x256xf32> to vector<16xf32>
    %385 = vector.shape_cast %384 : vector<16xf32> to vector<16x1xf32>
    %c0_260 = arith.constant 0 : index
    %c19 = arith.constant 19 : index
    %386 = vector.load %arg7[%c0_260, %c19] : memref<16x128xf32, #tpu.memory_space<vmem>>, vector<16x1xf32>
    %387 = arith.addf %386, %383 : vector<16x1xf32>
    %c0_261 = arith.constant 0 : index
    %c19_262 = arith.constant 19 : index
    %388 = vector.load %arg7[%c0_261, %c19_262] : memref<16x128xf32, #tpu.memory_space<vmem>>, vector<16x1xf32>
    tpu.vector_store %arg7[%c0_261, %c19_262], %387 {strides = array<i32>} : memref<16x128xf32, #tpu.memory_space<vmem>>, vector<16x1xf32>,
    %c0_263 = arith.constant 0 : index
    %c19_264 = arith.constant 19 : index
    %389 = vector.load %arg6[%c0_263, %c19_264] : memref<16x128xf32, #tpu.memory_space<vmem>>, vector<16x1xf32>
    %390 = arith.addf %389, %385 : vector<16x1xf32>
    %c0_265 = arith.constant 0 : index
    %c19_266 = arith.constant 19 : index
    %391 = vector.load %arg6[%c0_265, %c19_266] : memref<16x128xf32, #tpu.memory_space<vmem>>, vector<16x1xf32>
    tpu.vector_store %arg6[%c0_265, %c19_266], %390 {strides = array<i32>} : memref<16x128xf32, #tpu.memory_space<vmem>>, vector<16x1xf32>,
    %c0_267 = arith.constant 0 : index
    %c256 = arith.constant 256 : index
    %392 = vector.load %arg3[%c0_267, %c256] : memref<1x512xf32, #tpu.memory_space<vmem>>, vector<1x256xf32>
    %c0_268 = arith.constant 0 : index
    %c256_269 = arith.constant 256 : index
    %393 = vector.load %arg4[%c0_268, %c256_269] : memref<1x512xf32, #tpu.memory_space<vmem>>, vector<1x256xf32>
    %394 = vector.broadcast %3 : vector<16x1xf32> to vector<16x256xf32>
    %395 = vector.broadcast %393 : vector<1x256xf32> to vector<16x256xf32>
    %396 = arith.cmpf oeq, %394, %395 : vector<16x256xf32>
    %397 = vector.broadcast %5 : vector<16x1xf32> to vector<16x256xf32>
    %398 = vector.broadcast %392 : vector<1x256xf32> to vector<16x256xf32>
    %399 = arith.mulf %397, %398 : vector<16x256xf32>
    %cst_270 = arith.constant -1.800000e+01 : f32
    %400 = vector.broadcast %cst_270 : f32 to vector<16x256xf32>
    %401 = arith.addf %399, %400 : vector<16x256xf32>
    %cst_271 = arith.constant 1.000000e+00 : f32
    %402 = vector.broadcast %cst_271 : f32 to vector<16x256xf32>
    %403 = arith.minimumf %401, %402 : vector<16x256xf32>
    %cst_272 = arith.constant 0.000000e+00 : f32
    %404 = vector.broadcast %cst_272 : f32 to vector<16x256xf32>
    %405 = arith.maximumf %403, %404 : vector<16x256xf32>
    %cst_273 = arith.constant 0.000000e+00 : f32
    %406 = vector.broadcast %cst_273 : f32 to vector<16x256xf32>
    %407 = arith.select %396, %405, %406 : vector<16x256xi1>, vector<16x256xf32>
    %cst_274 = arith.constant dense<0.000000e+00> : vector<16xf32>
    %408 = vector.multi_reduction <add>, %405, %cst_274 [1] : vector<16x256xf32> to vector<16xf32>
    %409 = vector.shape_cast %408 : vector<16xf32> to vector<16x1xf32>
    %cst_275 = arith.constant dense<0.000000e+00> : vector<16xf32>
    %410 = vector.multi_reduction <add>, %407, %cst_275 [1] : vector<16x256xf32> to vector<16xf32>
    %411 = vector.shape_cast %410 : vector<16xf32> to vector<16x1xf32>
    %c0_276 = arith.constant 0 : index
    %c0_277 = arith.constant 0 : index
    %412 = vector.load %arg7[%c0_276, %c0_277] : memref<16x128xf32, #tpu.memory_space<vmem>>, vector<16x1xf32>
    %413 = arith.addf %412, %409 : vector<16x1xf32>
    %c0_278 = arith.constant 0 : index
    %c0_279 = arith.constant 0 : index
    %414 = vector.load %arg7[%c0_278, %c0_279] : memref<16x128xf32, #tpu.memory_space<vmem>>, vector<16x1xf32>
    tpu.vector_store %arg7[%c0_278, %c0_279], %413 {strides = array<i32>} : memref<16x128xf32, #tpu.memory_space<vmem>>, vector<16x1xf32>,
    %c0_280 = arith.constant 0 : index
    %c0_281 = arith.constant 0 : index
    %415 = vector.load %arg6[%c0_280, %c0_281] : memref<16x128xf32, #tpu.memory_space<vmem>>, vector<16x1xf32>
    %416 = arith.addf %415, %411 : vector<16x1xf32>
    %c0_282 = arith.constant 0 : index
    %c0_283 = arith.constant 0 : index
    %417 = vector.load %arg6[%c0_282, %c0_283] : memref<16x128xf32, #tpu.memory_space<vmem>>, vector<16x1xf32>
    tpu.vector_store %arg6[%c0_282, %c0_283], %416 {strides = array<i32>} : memref<16x128xf32, #tpu.memory_space<vmem>>, vector<16x1xf32>,
    %cst_284 = arith.constant 1.900000e+01 : f32
    %418 = vector.broadcast %cst_284 : f32 to vector<16x256xf32>
    %419 = arith.subf %418, %399 : vector<16x256xf32>
    %cst_285 = arith.constant -1.700000e+01 : f32
    %420 = vector.broadcast %cst_285 : f32 to vector<16x256xf32>
    %421 = arith.addf %399, %420 : vector<16x256xf32>
    %422 = arith.minimumf %419, %421 : vector<16x256xf32>
    %cst_286 = arith.constant 0.000000e+00 : f32
    %423 = vector.broadcast %cst_286 : f32 to vector<16x256xf32>
    %424 = arith.maximumf %422, %423 : vector<16x256xf32>
    %cst_287 = arith.constant 0.000000e+00 : f32
    %425 = vector.broadcast %cst_287 : f32 to vector<16x256xf32>
    %426 = arith.select %396, %424, %425 : vector<16x256xi1>, vector<16x256xf32>
    %cst_288 = arith.constant dense<0.000000e+00> : vector<16xf32>
    %427 = vector.multi_reduction <add>, %424, %cst_288 [1] : vector<16x256xf32> to vector<16xf32>
    %428 = vector.shape_cast %427 : vector<16xf32> to vector<16x1xf32>
    %cst_289 = arith.constant dense<0.000000e+00> : vector<16xf32>
    %429 = vector.multi_reduction <add>, %426, %cst_289 [1] : vector<16x256xf32> to vector<16xf32>
    %430 = vector.shape_cast %429 : vector<16xf32> to vector<16x1xf32>
    %c0_290 = arith.constant 0 : index
    %c1_291 = arith.constant 1 : index
    %431 = vector.load %arg7[%c0_290, %c1_291] : memref<16x128xf32, #tpu.memory_space<vmem>>, vector<16x1xf32>
    %432 = arith.addf %431, %428 : vector<16x1xf32>
    %c0_292 = arith.constant 0 : index
    %c1_293 = arith.constant 1 : index
    %433 = vector.load %arg7[%c0_292, %c1_293] : memref<16x128xf32, #tpu.memory_space<vmem>>, vector<16x1xf32>
    tpu.vector_store %arg7[%c0_292, %c1_293], %432 {strides = array<i32>} : memref<16x128xf32, #tpu.memory_space<vmem>>, vector<16x1xf32>,
    %c0_294 = arith.constant 0 : index
    %c1_295 = arith.constant 1 : index
    %434 = vector.load %arg6[%c0_294, %c1_295] : memref<16x128xf32, #tpu.memory_space<vmem>>, vector<16x1xf32>
    %435 = arith.addf %434, %430 : vector<16x1xf32>
    %c0_296 = arith.constant 0 : index
    %c1_297 = arith.constant 1 : index
    %436 = vector.load %arg6[%c0_296, %c1_297] : memref<16x128xf32, #tpu.memory_space<vmem>>, vector<16x1xf32>
    tpu.vector_store %arg6[%c0_296, %c1_297], %435 {strides = array<i32>} : memref<16x128xf32, #tpu.memory_space<vmem>>, vector<16x1xf32>,
    %cst_298 = arith.constant 1.800000e+01 : f32
    %437 = vector.broadcast %cst_298 : f32 to vector<16x256xf32>
    %438 = arith.subf %437, %399 : vector<16x256xf32>
    %cst_299 = arith.constant -1.600000e+01 : f32
    %439 = vector.broadcast %cst_299 : f32 to vector<16x256xf32>
    %440 = arith.addf %399, %439 : vector<16x256xf32>
    %441 = arith.minimumf %438, %440 : vector<16x256xf32>
    %cst_300 = arith.constant 0.000000e+00 : f32
    %442 = vector.broadcast %cst_300 : f32 to vector<16x256xf32>
    %443 = arith.maximumf %441, %442 : vector<16x256xf32>
    %cst_301 = arith.constant 0.000000e+00 : f32
    %444 = vector.broadcast %cst_301 : f32 to vector<16x256xf32>
    %445 = arith.select %396, %443, %444 : vector<16x256xi1>, vector<16x256xf32>
    %cst_302 = arith.constant dense<0.000000e+00> : vector<16xf32>
    %446 = vector.multi_reduction <add>, %443, %cst_302 [1] : vector<16x256xf32> to vector<16xf32>
    %447 = vector.shape_cast %446 : vector<16xf32> to vector<16x1xf32>
    %cst_303 = arith.constant dense<0.000000e+00> : vector<16xf32>
    %448 = vector.multi_reduction <add>, %445, %cst_303 [1] : vector<16x256xf32> to vector<16xf32>
    %449 = vector.shape_cast %448 : vector<16xf32> to vector<16x1xf32>
    %c0_304 = arith.constant 0 : index
    %c2_305 = arith.constant 2 : index
    %450 = vector.load %arg7[%c0_304, %c2_305] : memref<16x128xf32, #tpu.memory_space<vmem>>, vector<16x1xf32>
    %451 = arith.addf %450, %447 : vector<16x1xf32>
    %c0_306 = arith.constant 0 : index
    %c2_307 = arith.constant 2 : index
    %452 = vector.load %arg7[%c0_306, %c2_307] : memref<16x128xf32, #tpu.memory_space<vmem>>, vector<16x1xf32>
    tpu.vector_store %arg7[%c0_306, %c2_307], %451 {strides = array<i32>} : memref<16x128xf32, #tpu.memory_space<vmem>>, vector<16x1xf32>,
    %c0_308 = arith.constant 0 : index
    %c2_309 = arith.constant 2 : index
    %453 = vector.load %arg6[%c0_308, %c2_309] : memref<16x128xf32, #tpu.memory_space<vmem>>, vector<16x1xf32>
    %454 = arith.addf %453, %449 : vector<16x1xf32>
    %c0_310 = arith.constant 0 : index
    %c2_311 = arith.constant 2 : index
    %455 = vector.load %arg6[%c0_310, %c2_311] : memref<16x128xf32, #tpu.memory_space<vmem>>, vector<16x1xf32>
    tpu.vector_store %arg6[%c0_310, %c2_311], %454 {strides = array<i32>} : memref<16x128xf32, #tpu.memory_space<vmem>>, vector<16x1xf32>,
    %cst_312 = arith.constant 1.700000e+01 : f32
    %456 = vector.broadcast %cst_312 : f32 to vector<16x256xf32>
    %457 = arith.subf %456, %399 : vector<16x256xf32>
    %cst_313 = arith.constant -1.500000e+01 : f32
    %458 = vector.broadcast %cst_313 : f32 to vector<16x256xf32>
    %459 = arith.addf %399, %458 : vector<16x256xf32>
    %460 = arith.minimumf %457, %459 : vector<16x256xf32>
    %cst_314 = arith.constant 0.000000e+00 : f32
    %461 = vector.broadcast %cst_314 : f32 to vector<16x256xf32>
    %462 = arith.maximumf %460, %461 : vector<16x256xf32>
    %cst_315 = arith.constant 0.000000e+00 : f32
    %463 = vector.broadcast %cst_315 : f32 to vector<16x256xf32>
    %464 = arith.select %396, %462, %463 : vector<16x256xi1>, vector<16x256xf32>
    %cst_316 = arith.constant dense<0.000000e+00> : vector<16xf32>
    %465 = vector.multi_reduction <add>, %462, %cst_316 [1] : vector<16x256xf32> to vector<16xf32>
    %466 = vector.shape_cast %465 : vector<16xf32> to vector<16x1xf32>
    %cst_317 = arith.constant dense<0.000000e+00> : vector<16xf32>
    %467 = vector.multi_reduction <add>, %464, %cst_317 [1] : vector<16x256xf32> to vector<16xf32>
    %468 = vector.shape_cast %467 : vector<16xf32> to vector<16x1xf32>
    %c0_318 = arith.constant 0 : index
    %c3_319 = arith.constant 3 : index
    %469 = vector.load %arg7[%c0_318, %c3_319] : memref<16x128xf32, #tpu.memory_space<vmem>>, vector<16x1xf32>
    %470 = arith.addf %469, %466 : vector<16x1xf32>
    %c0_320 = arith.constant 0 : index
    %c3_321 = arith.constant 3 : index
    %471 = vector.load %arg7[%c0_320, %c3_321] : memref<16x128xf32, #tpu.memory_space<vmem>>, vector<16x1xf32>
    tpu.vector_store %arg7[%c0_320, %c3_321], %470 {strides = array<i32>} : memref<16x128xf32, #tpu.memory_space<vmem>>, vector<16x1xf32>,
    %c0_322 = arith.constant 0 : index
    %c3_323 = arith.constant 3 : index
    %472 = vector.load %arg6[%c0_322, %c3_323] : memref<16x128xf32, #tpu.memory_space<vmem>>, vector<16x1xf32>
    %473 = arith.addf %472, %468 : vector<16x1xf32>
    %c0_324 = arith.constant 0 : index
    %c3_325 = arith.constant 3 : index
    %474 = vector.load %arg6[%c0_324, %c3_325] : memref<16x128xf32, #tpu.memory_space<vmem>>, vector<16x1xf32>
    tpu.vector_store %arg6[%c0_324, %c3_325], %473 {strides = array<i32>} : memref<16x128xf32, #tpu.memory_space<vmem>>, vector<16x1xf32>,
    %cst_326 = arith.constant 1.600000e+01 : f32
    %475 = vector.broadcast %cst_326 : f32 to vector<16x256xf32>
    %476 = arith.subf %475, %399 : vector<16x256xf32>
    %cst_327 = arith.constant -1.400000e+01 : f32
    %477 = vector.broadcast %cst_327 : f32 to vector<16x256xf32>
    %478 = arith.addf %399, %477 : vector<16x256xf32>
    %479 = arith.minimumf %476, %478 : vector<16x256xf32>
    %cst_328 = arith.constant 0.000000e+00 : f32
    %480 = vector.broadcast %cst_328 : f32 to vector<16x256xf32>
    %481 = arith.maximumf %479, %480 : vector<16x256xf32>
    %cst_329 = arith.constant 0.000000e+00 : f32
    %482 = vector.broadcast %cst_329 : f32 to vector<16x256xf32>
    %483 = arith.select %396, %481, %482 : vector<16x256xi1>, vector<16x256xf32>
    %cst_330 = arith.constant dense<0.000000e+00> : vector<16xf32>
    %484 = vector.multi_reduction <add>, %481, %cst_330 [1] : vector<16x256xf32> to vector<16xf32>
    %485 = vector.shape_cast %484 : vector<16xf32> to vector<16x1xf32>
    %cst_331 = arith.constant dense<0.000000e+00> : vector<16xf32>
    %486 = vector.multi_reduction <add>, %483, %cst_331 [1] : vector<16x256xf32> to vector<16xf32>
    %487 = vector.shape_cast %486 : vector<16xf32> to vector<16x1xf32>
    %c0_332 = arith.constant 0 : index
    %c4_333 = arith.constant 4 : index
    %488 = vector.load %arg7[%c0_332, %c4_333] : memref<16x128xf32, #tpu.memory_space<vmem>>, vector<16x1xf32>
    %489 = arith.addf %488, %485 : vector<16x1xf32>
    %c0_334 = arith.constant 0 : index
    %c4_335 = arith.constant 4 : index
    %490 = vector.load %arg7[%c0_334, %c4_335] : memref<16x128xf32, #tpu.memory_space<vmem>>, vector<16x1xf32>
    tpu.vector_store %arg7[%c0_334, %c4_335], %489 {strides = array<i32>} : memref<16x128xf32, #tpu.memory_space<vmem>>, vector<16x1xf32>,
    %c0_336 = arith.constant 0 : index
    %c4_337 = arith.constant 4 : index
    %491 = vector.load %arg6[%c0_336, %c4_337] : memref<16x128xf32, #tpu.memory_space<vmem>>, vector<16x1xf32>
    %492 = arith.addf %491, %487 : vector<16x1xf32>
    %c0_338 = arith.constant 0 : index
    %c4_339 = arith.constant 4 : index
    %493 = vector.load %arg6[%c0_338, %c4_339] : memref<16x128xf32, #tpu.memory_space<vmem>>, vector<16x1xf32>
    tpu.vector_store %arg6[%c0_338, %c4_339], %492 {strides = array<i32>} : memref<16x128xf32, #tpu.memory_space<vmem>>, vector<16x1xf32>,
    %cst_340 = arith.constant 1.500000e+01 : f32
    %494 = vector.broadcast %cst_340 : f32 to vector<16x256xf32>
    %495 = arith.subf %494, %399 : vector<16x256xf32>
    %cst_341 = arith.constant -1.300000e+01 : f32
    %496 = vector.broadcast %cst_341 : f32 to vector<16x256xf32>
    %497 = arith.addf %399, %496 : vector<16x256xf32>
    %498 = arith.minimumf %495, %497 : vector<16x256xf32>
    %cst_342 = arith.constant 0.000000e+00 : f32
    %499 = vector.broadcast %cst_342 : f32 to vector<16x256xf32>
    %500 = arith.maximumf %498, %499 : vector<16x256xf32>
    %cst_343 = arith.constant 0.000000e+00 : f32
    %501 = vector.broadcast %cst_343 : f32 to vector<16x256xf32>
    %502 = arith.select %396, %500, %501 : vector<16x256xi1>, vector<16x256xf32>
    %cst_344 = arith.constant dense<0.000000e+00> : vector<16xf32>
    %503 = vector.multi_reduction <add>, %500, %cst_344 [1] : vector<16x256xf32> to vector<16xf32>
    %504 = vector.shape_cast %503 : vector<16xf32> to vector<16x1xf32>
    %cst_345 = arith.constant dense<0.000000e+00> : vector<16xf32>
    %505 = vector.multi_reduction <add>, %502, %cst_345 [1] : vector<16x256xf32> to vector<16xf32>
    %506 = vector.shape_cast %505 : vector<16xf32> to vector<16x1xf32>
    %c0_346 = arith.constant 0 : index
    %c5_347 = arith.constant 5 : index
    %507 = vector.load %arg7[%c0_346, %c5_347] : memref<16x128xf32, #tpu.memory_space<vmem>>, vector<16x1xf32>
    %508 = arith.addf %507, %504 : vector<16x1xf32>
    %c0_348 = arith.constant 0 : index
    %c5_349 = arith.constant 5 : index
    %509 = vector.load %arg7[%c0_348, %c5_349] : memref<16x128xf32, #tpu.memory_space<vmem>>, vector<16x1xf32>
    tpu.vector_store %arg7[%c0_348, %c5_349], %508 {strides = array<i32>} : memref<16x128xf32, #tpu.memory_space<vmem>>, vector<16x1xf32>,
    %c0_350 = arith.constant 0 : index
    %c5_351 = arith.constant 5 : index
    %510 = vector.load %arg6[%c0_350, %c5_351] : memref<16x128xf32, #tpu.memory_space<vmem>>, vector<16x1xf32>
    %511 = arith.addf %510, %506 : vector<16x1xf32>
    %c0_352 = arith.constant 0 : index
    %c5_353 = arith.constant 5 : index
    %512 = vector.load %arg6[%c0_352, %c5_353] : memref<16x128xf32, #tpu.memory_space<vmem>>, vector<16x1xf32>
    tpu.vector_store %arg6[%c0_352, %c5_353], %511 {strides = array<i32>} : memref<16x128xf32, #tpu.memory_space<vmem>>, vector<16x1xf32>,
    %cst_354 = arith.constant 1.400000e+01 : f32
    %513 = vector.broadcast %cst_354 : f32 to vector<16x256xf32>
    %514 = arith.subf %513, %399 : vector<16x256xf32>
    %cst_355 = arith.constant -1.200000e+01 : f32
    %515 = vector.broadcast %cst_355 : f32 to vector<16x256xf32>
    %516 = arith.addf %399, %515 : vector<16x256xf32>
    %517 = arith.minimumf %514, %516 : vector<16x256xf32>
    %cst_356 = arith.constant 0.000000e+00 : f32
    %518 = vector.broadcast %cst_356 : f32 to vector<16x256xf32>
    %519 = arith.maximumf %517, %518 : vector<16x256xf32>
    %cst_357 = arith.constant 0.000000e+00 : f32
    %520 = vector.broadcast %cst_357 : f32 to vector<16x256xf32>
    %521 = arith.select %396, %519, %520 : vector<16x256xi1>, vector<16x256xf32>
    %cst_358 = arith.constant dense<0.000000e+00> : vector<16xf32>
    %522 = vector.multi_reduction <add>, %519, %cst_358 [1] : vector<16x256xf32> to vector<16xf32>
    %523 = vector.shape_cast %522 : vector<16xf32> to vector<16x1xf32>
    %cst_359 = arith.constant dense<0.000000e+00> : vector<16xf32>
    %524 = vector.multi_reduction <add>, %521, %cst_359 [1] : vector<16x256xf32> to vector<16xf32>
    %525 = vector.shape_cast %524 : vector<16xf32> to vector<16x1xf32>
    %c0_360 = arith.constant 0 : index
    %c6_361 = arith.constant 6 : index
    %526 = vector.load %arg7[%c0_360, %c6_361] : memref<16x128xf32, #tpu.memory_space<vmem>>, vector<16x1xf32>
    %527 = arith.addf %526, %523 : vector<16x1xf32>
    %c0_362 = arith.constant 0 : index
    %c6_363 = arith.constant 6 : index
    %528 = vector.load %arg7[%c0_362, %c6_363] : memref<16x128xf32, #tpu.memory_space<vmem>>, vector<16x1xf32>
    tpu.vector_store %arg7[%c0_362, %c6_363], %527 {strides = array<i32>} : memref<16x128xf32, #tpu.memory_space<vmem>>, vector<16x1xf32>,
    %c0_364 = arith.constant 0 : index
    %c6_365 = arith.constant 6 : index
    %529 = vector.load %arg6[%c0_364, %c6_365] : memref<16x128xf32, #tpu.memory_space<vmem>>, vector<16x1xf32>
    %530 = arith.addf %529, %525 : vector<16x1xf32>
    %c0_366 = arith.constant 0 : index
    %c6_367 = arith.constant 6 : index
    %531 = vector.load %arg6[%c0_366, %c6_367] : memref<16x128xf32, #tpu.memory_space<vmem>>, vector<16x1xf32>
    tpu.vector_store %arg6[%c0_366, %c6_367], %530 {strides = array<i32>} : memref<16x128xf32, #tpu.memory_space<vmem>>, vector<16x1xf32>,
    %cst_368 = arith.constant 1.300000e+01 : f32
    %532 = vector.broadcast %cst_368 : f32 to vector<16x256xf32>
    %533 = arith.subf %532, %399 : vector<16x256xf32>
    %cst_369 = arith.constant -1.100000e+01 : f32
    %534 = vector.broadcast %cst_369 : f32 to vector<16x256xf32>
    %535 = arith.addf %399, %534 : vector<16x256xf32>
    %536 = arith.minimumf %533, %535 : vector<16x256xf32>
    %cst_370 = arith.constant 0.000000e+00 : f32
    %537 = vector.broadcast %cst_370 : f32 to vector<16x256xf32>
    %538 = arith.maximumf %536, %537 : vector<16x256xf32>
    %cst_371 = arith.constant 0.000000e+00 : f32
    %539 = vector.broadcast %cst_371 : f32 to vector<16x256xf32>
    %540 = arith.select %396, %538, %539 : vector<16x256xi1>, vector<16x256xf32>
    %cst_372 = arith.constant dense<0.000000e+00> : vector<16xf32>
    %541 = vector.multi_reduction <add>, %538, %cst_372 [1] : vector<16x256xf32> to vector<16xf32>
    %542 = vector.shape_cast %541 : vector<16xf32> to vector<16x1xf32>
    %cst_373 = arith.constant dense<0.000000e+00> : vector<16xf32>
    %543 = vector.multi_reduction <add>, %540, %cst_373 [1] : vector<16x256xf32> to vector<16xf32>
    %544 = vector.shape_cast %543 : vector<16xf32> to vector<16x1xf32>
    %c0_374 = arith.constant 0 : index
    %c7_375 = arith.constant 7 : index
    %545 = vector.load %arg7[%c0_374, %c7_375] : memref<16x128xf32, #tpu.memory_space<vmem>>, vector<16x1xf32>
    %546 = arith.addf %545, %542 : vector<16x1xf32>
    %c0_376 = arith.constant 0 : index
    %c7_377 = arith.constant 7 : index
    %547 = vector.load %arg7[%c0_376, %c7_377] : memref<16x128xf32, #tpu.memory_space<vmem>>, vector<16x1xf32>
    tpu.vector_store %arg7[%c0_376, %c7_377], %546 {strides = array<i32>} : memref<16x128xf32, #tpu.memory_space<vmem>>, vector<16x1xf32>,
    %c0_378 = arith.constant 0 : index
    %c7_379 = arith.constant 7 : index
    %548 = vector.load %arg6[%c0_378, %c7_379] : memref<16x128xf32, #tpu.memory_space<vmem>>, vector<16x1xf32>
    %549 = arith.addf %548, %544 : vector<16x1xf32>
    %c0_380 = arith.constant 0 : index
    %c7_381 = arith.constant 7 : index
    %550 = vector.load %arg6[%c0_380, %c7_381] : memref<16x128xf32, #tpu.memory_space<vmem>>, vector<16x1xf32>
    tpu.vector_store %arg6[%c0_380, %c7_381], %549 {strides = array<i32>} : memref<16x128xf32, #tpu.memory_space<vmem>>, vector<16x1xf32>,
    %cst_382 = arith.constant 1.200000e+01 : f32
    %551 = vector.broadcast %cst_382 : f32 to vector<16x256xf32>
    %552 = arith.subf %551, %399 : vector<16x256xf32>
    %cst_383 = arith.constant -1.000000e+01 : f32
    %553 = vector.broadcast %cst_383 : f32 to vector<16x256xf32>
    %554 = arith.addf %399, %553 : vector<16x256xf32>
    %555 = arith.minimumf %552, %554 : vector<16x256xf32>
    %cst_384 = arith.constant 0.000000e+00 : f32
    %556 = vector.broadcast %cst_384 : f32 to vector<16x256xf32>
    %557 = arith.maximumf %555, %556 : vector<16x256xf32>
    %cst_385 = arith.constant 0.000000e+00 : f32
    %558 = vector.broadcast %cst_385 : f32 to vector<16x256xf32>
    %559 = arith.select %396, %557, %558 : vector<16x256xi1>, vector<16x256xf32>
    %cst_386 = arith.constant dense<0.000000e+00> : vector<16xf32>
    %560 = vector.multi_reduction <add>, %557, %cst_386 [1] : vector<16x256xf32> to vector<16xf32>
    %561 = vector.shape_cast %560 : vector<16xf32> to vector<16x1xf32>
    %cst_387 = arith.constant dense<0.000000e+00> : vector<16xf32>
    %562 = vector.multi_reduction <add>, %559, %cst_387 [1] : vector<16x256xf32> to vector<16xf32>
    %563 = vector.shape_cast %562 : vector<16xf32> to vector<16x1xf32>
    %c0_388 = arith.constant 0 : index
    %c8_389 = arith.constant 8 : index
    %564 = vector.load %arg7[%c0_388, %c8_389] : memref<16x128xf32, #tpu.memory_space<vmem>>, vector<16x1xf32>
    %565 = arith.addf %564, %561 : vector<16x1xf32>
    %c0_390 = arith.constant 0 : index
    %c8_391 = arith.constant 8 : index
    %566 = vector.load %arg7[%c0_390, %c8_391] : memref<16x128xf32, #tpu.memory_space<vmem>>, vector<16x1xf32>
    tpu.vector_store %arg7[%c0_390, %c8_391], %565 {strides = array<i32>} : memref<16x128xf32, #tpu.memory_space<vmem>>, vector<16x1xf32>,
    %c0_392 = arith.constant 0 : index
    %c8_393 = arith.constant 8 : index
    %567 = vector.load %arg6[%c0_392, %c8_393] : memref<16x128xf32, #tpu.memory_space<vmem>>, vector<16x1xf32>
    %568 = arith.addf %567, %563 : vector<16x1xf32>
    %c0_394 = arith.constant 0 : index
    %c8_395 = arith.constant 8 : index
    %569 = vector.load %arg6[%c0_394, %c8_395] : memref<16x128xf32, #tpu.memory_space<vmem>>, vector<16x1xf32>
    tpu.vector_store %arg6[%c0_394, %c8_395], %568 {strides = array<i32>} : memref<16x128xf32, #tpu.memory_space<vmem>>, vector<16x1xf32>,
    %cst_396 = arith.constant 1.100000e+01 : f32
    %570 = vector.broadcast %cst_396 : f32 to vector<16x256xf32>
    %571 = arith.subf %570, %399 : vector<16x256xf32>
    %cst_397 = arith.constant -9.000000e+00 : f32
    %572 = vector.broadcast %cst_397 : f32 to vector<16x256xf32>
    %573 = arith.addf %399, %572 : vector<16x256xf32>
    %574 = arith.minimumf %571, %573 : vector<16x256xf32>
    %cst_398 = arith.constant 0.000000e+00 : f32
    %575 = vector.broadcast %cst_398 : f32 to vector<16x256xf32>
    %576 = arith.maximumf %574, %575 : vector<16x256xf32>
    %cst_399 = arith.constant 0.000000e+00 : f32
    %577 = vector.broadcast %cst_399 : f32 to vector<16x256xf32>
    %578 = arith.select %396, %576, %577 : vector<16x256xi1>, vector<16x256xf32>
    %cst_400 = arith.constant dense<0.000000e+00> : vector<16xf32>
    %579 = vector.multi_reduction <add>, %576, %cst_400 [1] : vector<16x256xf32> to vector<16xf32>
    %580 = vector.shape_cast %579 : vector<16xf32> to vector<16x1xf32>
    %cst_401 = arith.constant dense<0.000000e+00> : vector<16xf32>
    %581 = vector.multi_reduction <add>, %578, %cst_401 [1] : vector<16x256xf32> to vector<16xf32>
    %582 = vector.shape_cast %581 : vector<16xf32> to vector<16x1xf32>
    %c0_402 = arith.constant 0 : index
    %c9_403 = arith.constant 9 : index
    %583 = vector.load %arg7[%c0_402, %c9_403] : memref<16x128xf32, #tpu.memory_space<vmem>>, vector<16x1xf32>
    %584 = arith.addf %583, %580 : vector<16x1xf32>
    %c0_404 = arith.constant 0 : index
    %c9_405 = arith.constant 9 : index
    %585 = vector.load %arg7[%c0_404, %c9_405] : memref<16x128xf32, #tpu.memory_space<vmem>>, vector<16x1xf32>
    tpu.vector_store %arg7[%c0_404, %c9_405], %584 {strides = array<i32>} : memref<16x128xf32, #tpu.memory_space<vmem>>, vector<16x1xf32>,
    %c0_406 = arith.constant 0 : index
    %c9_407 = arith.constant 9 : index
    %586 = vector.load %arg6[%c0_406, %c9_407] : memref<16x128xf32, #tpu.memory_space<vmem>>, vector<16x1xf32>
    %587 = arith.addf %586, %582 : vector<16x1xf32>
    %c0_408 = arith.constant 0 : index
    %c9_409 = arith.constant 9 : index
    %588 = vector.load %arg6[%c0_408, %c9_409] : memref<16x128xf32, #tpu.memory_space<vmem>>, vector<16x1xf32>
    tpu.vector_store %arg6[%c0_408, %c9_409], %587 {strides = array<i32>} : memref<16x128xf32, #tpu.memory_space<vmem>>, vector<16x1xf32>,
    %cst_410 = arith.constant 1.000000e+01 : f32
    %589 = vector.broadcast %cst_410 : f32 to vector<16x256xf32>
    %590 = arith.subf %589, %399 : vector<16x256xf32>
    %cst_411 = arith.constant -8.000000e+00 : f32
    %591 = vector.broadcast %cst_411 : f32 to vector<16x256xf32>
    %592 = arith.addf %399, %591 : vector<16x256xf32>
    %593 = arith.minimumf %590, %592 : vector<16x256xf32>
    %cst_412 = arith.constant 0.000000e+00 : f32
    %594 = vector.broadcast %cst_412 : f32 to vector<16x256xf32>
    %595 = arith.maximumf %593, %594 : vector<16x256xf32>
    %cst_413 = arith.constant 0.000000e+00 : f32
    %596 = vector.broadcast %cst_413 : f32 to vector<16x256xf32>
    %597 = arith.select %396, %595, %596 : vector<16x256xi1>, vector<16x256xf32>
    %cst_414 = arith.constant dense<0.000000e+00> : vector<16xf32>
    %598 = vector.multi_reduction <add>, %595, %cst_414 [1] : vector<16x256xf32> to vector<16xf32>
    %599 = vector.shape_cast %598 : vector<16xf32> to vector<16x1xf32>
    %cst_415 = arith.constant dense<0.000000e+00> : vector<16xf32>
    %600 = vector.multi_reduction <add>, %597, %cst_415 [1] : vector<16x256xf32> to vector<16xf32>
    %601 = vector.shape_cast %600 : vector<16xf32> to vector<16x1xf32>
    %c0_416 = arith.constant 0 : index
    %c10_417 = arith.constant 10 : index
    %602 = vector.load %arg7[%c0_416, %c10_417] : memref<16x128xf32, #tpu.memory_space<vmem>>, vector<16x1xf32>
    %603 = arith.addf %602, %599 : vector<16x1xf32>
    %c0_418 = arith.constant 0 : index
    %c10_419 = arith.constant 10 : index
    %604 = vector.load %arg7[%c0_418, %c10_419] : memref<16x128xf32, #tpu.memory_space<vmem>>, vector<16x1xf32>
    tpu.vector_store %arg7[%c0_418, %c10_419], %603 {strides = array<i32>} : memref<16x128xf32, #tpu.memory_space<vmem>>, vector<16x1xf32>,
    %c0_420 = arith.constant 0 : index
    %c10_421 = arith.constant 10 : index
    %605 = vector.load %arg6[%c0_420, %c10_421] : memref<16x128xf32, #tpu.memory_space<vmem>>, vector<16x1xf32>
    %606 = arith.addf %605, %601 : vector<16x1xf32>
    %c0_422 = arith.constant 0 : index
    %c10_423 = arith.constant 10 : index
    %607 = vector.load %arg6[%c0_422, %c10_423] : memref<16x128xf32, #tpu.memory_space<vmem>>, vector<16x1xf32>
    tpu.vector_store %arg6[%c0_422, %c10_423], %606 {strides = array<i32>} : memref<16x128xf32, #tpu.memory_space<vmem>>, vector<16x1xf32>,
    %cst_424 = arith.constant 9.000000e+00 : f32
    %608 = vector.broadcast %cst_424 : f32 to vector<16x256xf32>
    %609 = arith.subf %608, %399 : vector<16x256xf32>
    %cst_425 = arith.constant -7.000000e+00 : f32
    %610 = vector.broadcast %cst_425 : f32 to vector<16x256xf32>
    %611 = arith.addf %399, %610 : vector<16x256xf32>
    %612 = arith.minimumf %609, %611 : vector<16x256xf32>
    %cst_426 = arith.constant 0.000000e+00 : f32
    %613 = vector.broadcast %cst_426 : f32 to vector<16x256xf32>
    %614 = arith.maximumf %612, %613 : vector<16x256xf32>
    %cst_427 = arith.constant 0.000000e+00 : f32
    %615 = vector.broadcast %cst_427 : f32 to vector<16x256xf32>
    %616 = arith.select %396, %614, %615 : vector<16x256xi1>, vector<16x256xf32>
    %cst_428 = arith.constant dense<0.000000e+00> : vector<16xf32>
    %617 = vector.multi_reduction <add>, %614, %cst_428 [1] : vector<16x256xf32> to vector<16xf32>
    %618 = vector.shape_cast %617 : vector<16xf32> to vector<16x1xf32>
    %cst_429 = arith.constant dense<0.000000e+00> : vector<16xf32>
    %619 = vector.multi_reduction <add>, %616, %cst_429 [1] : vector<16x256xf32> to vector<16xf32>
    %620 = vector.shape_cast %619 : vector<16xf32> to vector<16x1xf32>
    %c0_430 = arith.constant 0 : index
    %c11_431 = arith.constant 11 : index
    %621 = vector.load %arg7[%c0_430, %c11_431] : memref<16x128xf32, #tpu.memory_space<vmem>>, vector<16x1xf32>
    %622 = arith.addf %621, %618 : vector<16x1xf32>
    %c0_432 = arith.constant 0 : index
    %c11_433 = arith.constant 11 : index
    %623 = vector.load %arg7[%c0_432, %c11_433] : memref<16x128xf32, #tpu.memory_space<vmem>>, vector<16x1xf32>
    tpu.vector_store %arg7[%c0_432, %c11_433], %622 {strides = array<i32>} : memref<16x128xf32, #tpu.memory_space<vmem>>, vector<16x1xf32>,
    %c0_434 = arith.constant 0 : index
    %c11_435 = arith.constant 11 : index
    %624 = vector.load %arg6[%c0_434, %c11_435] : memref<16x128xf32, #tpu.memory_space<vmem>>, vector<16x1xf32>
    %625 = arith.addf %624, %620 : vector<16x1xf32>
    %c0_436 = arith.constant 0 : index
    %c11_437 = arith.constant 11 : index
    %626 = vector.load %arg6[%c0_436, %c11_437] : memref<16x128xf32, #tpu.memory_space<vmem>>, vector<16x1xf32>
    tpu.vector_store %arg6[%c0_436, %c11_437], %625 {strides = array<i32>} : memref<16x128xf32, #tpu.memory_space<vmem>>, vector<16x1xf32>,
    %cst_438 = arith.constant 8.000000e+00 : f32
    %627 = vector.broadcast %cst_438 : f32 to vector<16x256xf32>
    %628 = arith.subf %627, %399 : vector<16x256xf32>
    %cst_439 = arith.constant -6.000000e+00 : f32
    %629 = vector.broadcast %cst_439 : f32 to vector<16x256xf32>
    %630 = arith.addf %399, %629 : vector<16x256xf32>
    %631 = arith.minimumf %628, %630 : vector<16x256xf32>
    %cst_440 = arith.constant 0.000000e+00 : f32
    %632 = vector.broadcast %cst_440 : f32 to vector<16x256xf32>
    %633 = arith.maximumf %631, %632 : vector<16x256xf32>
    %cst_441 = arith.constant 0.000000e+00 : f32
    %634 = vector.broadcast %cst_441 : f32 to vector<16x256xf32>
    %635 = arith.select %396, %633, %634 : vector<16x256xi1>, vector<16x256xf32>
    %cst_442 = arith.constant dense<0.000000e+00> : vector<16xf32>
    %636 = vector.multi_reduction <add>, %633, %cst_442 [1] : vector<16x256xf32> to vector<16xf32>
    %637 = vector.shape_cast %636 : vector<16xf32> to vector<16x1xf32>
    %cst_443 = arith.constant dense<0.000000e+00> : vector<16xf32>
    %638 = vector.multi_reduction <add>, %635, %cst_443 [1] : vector<16x256xf32> to vector<16xf32>
    %639 = vector.shape_cast %638 : vector<16xf32> to vector<16x1xf32>
    %c0_444 = arith.constant 0 : index
    %c12_445 = arith.constant 12 : index
    %640 = vector.load %arg7[%c0_444, %c12_445] : memref<16x128xf32, #tpu.memory_space<vmem>>, vector<16x1xf32>
    %641 = arith.addf %640, %637 : vector<16x1xf32>
    %c0_446 = arith.constant 0 : index
    %c12_447 = arith.constant 12 : index
    %642 = vector.load %arg7[%c0_446, %c12_447] : memref<16x128xf32, #tpu.memory_space<vmem>>, vector<16x1xf32>
    tpu.vector_store %arg7[%c0_446, %c12_447], %641 {strides = array<i32>} : memref<16x128xf32, #tpu.memory_space<vmem>>, vector<16x1xf32>,
    %c0_448 = arith.constant 0 : index
    %c12_449 = arith.constant 12 : index
    %643 = vector.load %arg6[%c0_448, %c12_449] : memref<16x128xf32, #tpu.memory_space<vmem>>, vector<16x1xf32>
    %644 = arith.addf %643, %639 : vector<16x1xf32>
    %c0_450 = arith.constant 0 : index
    %c12_451 = arith.constant 12 : index
    %645 = vector.load %arg6[%c0_450, %c12_451] : memref<16x128xf32, #tpu.memory_space<vmem>>, vector<16x1xf32>
    tpu.vector_store %arg6[%c0_450, %c12_451], %644 {strides = array<i32>} : memref<16x128xf32, #tpu.memory_space<vmem>>, vector<16x1xf32>,
    %cst_452 = arith.constant 7.000000e+00 : f32
    %646 = vector.broadcast %cst_452 : f32 to vector<16x256xf32>
    %647 = arith.subf %646, %399 : vector<16x256xf32>
    %cst_453 = arith.constant -5.000000e+00 : f32
    %648 = vector.broadcast %cst_453 : f32 to vector<16x256xf32>
    %649 = arith.addf %399, %648 : vector<16x256xf32>
    %650 = arith.minimumf %647, %649 : vector<16x256xf32>
    %cst_454 = arith.constant 0.000000e+00 : f32
    %651 = vector.broadcast %cst_454 : f32 to vector<16x256xf32>
    %652 = arith.maximumf %650, %651 : vector<16x256xf32>
    %cst_455 = arith.constant 0.000000e+00 : f32
    %653 = vector.broadcast %cst_455 : f32 to vector<16x256xf32>
    %654 = arith.select %396, %652, %653 : vector<16x256xi1>, vector<16x256xf32>
    %cst_456 = arith.constant dense<0.000000e+00> : vector<16xf32>
    %655 = vector.multi_reduction <add>, %652, %cst_456 [1] : vector<16x256xf32> to vector<16xf32>
    %656 = vector.shape_cast %655 : vector<16xf32> to vector<16x1xf32>
    %cst_457 = arith.constant dense<0.000000e+00> : vector<16xf32>
    %657 = vector.multi_reduction <add>, %654, %cst_457 [1] : vector<16x256xf32> to vector<16xf32>
    %658 = vector.shape_cast %657 : vector<16xf32> to vector<16x1xf32>
    %c0_458 = arith.constant 0 : index
    %c13_459 = arith.constant 13 : index
    %659 = vector.load %arg7[%c0_458, %c13_459] : memref<16x128xf32, #tpu.memory_space<vmem>>, vector<16x1xf32>
    %660 = arith.addf %659, %656 : vector<16x1xf32>
    %c0_460 = arith.constant 0 : index
    %c13_461 = arith.constant 13 : index
    %661 = vector.load %arg7[%c0_460, %c13_461] : memref<16x128xf32, #tpu.memory_space<vmem>>, vector<16x1xf32>
    tpu.vector_store %arg7[%c0_460, %c13_461], %660 {strides = array<i32>} : memref<16x128xf32, #tpu.memory_space<vmem>>, vector<16x1xf32>,
    %c0_462 = arith.constant 0 : index
    %c13_463 = arith.constant 13 : index
    %662 = vector.load %arg6[%c0_462, %c13_463] : memref<16x128xf32, #tpu.memory_space<vmem>>, vector<16x1xf32>
    %663 = arith.addf %662, %658 : vector<16x1xf32>
    %c0_464 = arith.constant 0 : index
    %c13_465 = arith.constant 13 : index
    %664 = vector.load %arg6[%c0_464, %c13_465] : memref<16x128xf32, #tpu.memory_space<vmem>>, vector<16x1xf32>
    tpu.vector_store %arg6[%c0_464, %c13_465], %663 {strides = array<i32>} : memref<16x128xf32, #tpu.memory_space<vmem>>, vector<16x1xf32>,
    %cst_466 = arith.constant 6.000000e+00 : f32
    %665 = vector.broadcast %cst_466 : f32 to vector<16x256xf32>
    %666 = arith.subf %665, %399 : vector<16x256xf32>
    %cst_467 = arith.constant -4.000000e+00 : f32
    %667 = vector.broadcast %cst_467 : f32 to vector<16x256xf32>
    %668 = arith.addf %399, %667 : vector<16x256xf32>
    %669 = arith.minimumf %666, %668 : vector<16x256xf32>
    %cst_468 = arith.constant 0.000000e+00 : f32
    %670 = vector.broadcast %cst_468 : f32 to vector<16x256xf32>
    %671 = arith.maximumf %669, %670 : vector<16x256xf32>
    %cst_469 = arith.constant 0.000000e+00 : f32
    %672 = vector.broadcast %cst_469 : f32 to vector<16x256xf32>
    %673 = arith.select %396, %671, %672 : vector<16x256xi1>, vector<16x256xf32>
    %cst_470 = arith.constant dense<0.000000e+00> : vector<16xf32>
    %674 = vector.multi_reduction <add>, %671, %cst_470 [1] : vector<16x256xf32> to vector<16xf32>
    %675 = vector.shape_cast %674 : vector<16xf32> to vector<16x1xf32>
    %cst_471 = arith.constant dense<0.000000e+00> : vector<16xf32>
    %676 = vector.multi_reduction <add>, %673, %cst_471 [1] : vector<16x256xf32> to vector<16xf32>
    %677 = vector.shape_cast %676 : vector<16xf32> to vector<16x1xf32>
    %c0_472 = arith.constant 0 : index
    %c14_473 = arith.constant 14 : index
    %678 = vector.load %arg7[%c0_472, %c14_473] : memref<16x128xf32, #tpu.memory_space<vmem>>, vector<16x1xf32>
    %679 = arith.addf %678, %675 : vector<16x1xf32>
    %c0_474 = arith.constant 0 : index
    %c14_475 = arith.constant 14 : index
    %680 = vector.load %arg7[%c0_474, %c14_475] : memref<16x128xf32, #tpu.memory_space<vmem>>, vector<16x1xf32>
    tpu.vector_store %arg7[%c0_474, %c14_475], %679 {strides = array<i32>} : memref<16x128xf32, #tpu.memory_space<vmem>>, vector<16x1xf32>,
    %c0_476 = arith.constant 0 : index
    %c14_477 = arith.constant 14 : index
    %681 = vector.load %arg6[%c0_476, %c14_477] : memref<16x128xf32, #tpu.memory_space<vmem>>, vector<16x1xf32>
    %682 = arith.addf %681, %677 : vector<16x1xf32>
    %c0_478 = arith.constant 0 : index
    %c14_479 = arith.constant 14 : index
    %683 = vector.load %arg6[%c0_478, %c14_479] : memref<16x128xf32, #tpu.memory_space<vmem>>, vector<16x1xf32>
    tpu.vector_store %arg6[%c0_478, %c14_479], %682 {strides = array<i32>} : memref<16x128xf32, #tpu.memory_space<vmem>>, vector<16x1xf32>,
    %cst_480 = arith.constant 5.000000e+00 : f32
    %684 = vector.broadcast %cst_480 : f32 to vector<16x256xf32>
    %685 = arith.subf %684, %399 : vector<16x256xf32>
    %cst_481 = arith.constant -3.000000e+00 : f32
    %686 = vector.broadcast %cst_481 : f32 to vector<16x256xf32>
    %687 = arith.addf %399, %686 : vector<16x256xf32>
    %688 = arith.minimumf %685, %687 : vector<16x256xf32>
    %cst_482 = arith.constant 0.000000e+00 : f32
    %689 = vector.broadcast %cst_482 : f32 to vector<16x256xf32>
    %690 = arith.maximumf %688, %689 : vector<16x256xf32>
    %cst_483 = arith.constant 0.000000e+00 : f32
    %691 = vector.broadcast %cst_483 : f32 to vector<16x256xf32>
    %692 = arith.select %396, %690, %691 : vector<16x256xi1>, vector<16x256xf32>
    %cst_484 = arith.constant dense<0.000000e+00> : vector<16xf32>
    %693 = vector.multi_reduction <add>, %690, %cst_484 [1] : vector<16x256xf32> to vector<16xf32>
    %694 = vector.shape_cast %693 : vector<16xf32> to vector<16x1xf32>
    %cst_485 = arith.constant dense<0.000000e+00> : vector<16xf32>
    %695 = vector.multi_reduction <add>, %692, %cst_485 [1] : vector<16x256xf32> to vector<16xf32>
    %696 = vector.shape_cast %695 : vector<16xf32> to vector<16x1xf32>
    %c0_486 = arith.constant 0 : index
    %c15_487 = arith.constant 15 : index
    %697 = vector.load %arg7[%c0_486, %c15_487] : memref<16x128xf32, #tpu.memory_space<vmem>>, vector<16x1xf32>
    %698 = arith.addf %697, %694 : vector<16x1xf32>
    %c0_488 = arith.constant 0 : index
    %c15_489 = arith.constant 15 : index
    %699 = vector.load %arg7[%c0_488, %c15_489] : memref<16x128xf32, #tpu.memory_space<vmem>>, vector<16x1xf32>
    tpu.vector_store %arg7[%c0_488, %c15_489], %698 {strides = array<i32>} : memref<16x128xf32, #tpu.memory_space<vmem>>, vector<16x1xf32>,
    %c0_490 = arith.constant 0 : index
    %c15_491 = arith.constant 15 : index
    %700 = vector.load %arg6[%c0_490, %c15_491] : memref<16x128xf32, #tpu.memory_space<vmem>>, vector<16x1xf32>
    %701 = arith.addf %700, %696 : vector<16x1xf32>
    %c0_492 = arith.constant 0 : index
    %c15_493 = arith.constant 15 : index
    %702 = vector.load %arg6[%c0_492, %c15_493] : memref<16x128xf32, #tpu.memory_space<vmem>>, vector<16x1xf32>
    tpu.vector_store %arg6[%c0_492, %c15_493], %701 {strides = array<i32>} : memref<16x128xf32, #tpu.memory_space<vmem>>, vector<16x1xf32>,
    %cst_494 = arith.constant 4.000000e+00 : f32
    %703 = vector.broadcast %cst_494 : f32 to vector<16x256xf32>
    %704 = arith.subf %703, %399 : vector<16x256xf32>
    %cst_495 = arith.constant -2.000000e+00 : f32
    %705 = vector.broadcast %cst_495 : f32 to vector<16x256xf32>
    %706 = arith.addf %399, %705 : vector<16x256xf32>
    %707 = arith.minimumf %704, %706 : vector<16x256xf32>
    %cst_496 = arith.constant 0.000000e+00 : f32
    %708 = vector.broadcast %cst_496 : f32 to vector<16x256xf32>
    %709 = arith.maximumf %707, %708 : vector<16x256xf32>
    %cst_497 = arith.constant 0.000000e+00 : f32
    %710 = vector.broadcast %cst_497 : f32 to vector<16x256xf32>
    %711 = arith.select %396, %709, %710 : vector<16x256xi1>, vector<16x256xf32>
    %cst_498 = arith.constant dense<0.000000e+00> : vector<16xf32>
    %712 = vector.multi_reduction <add>, %709, %cst_498 [1] : vector<16x256xf32> to vector<16xf32>
    %713 = vector.shape_cast %712 : vector<16xf32> to vector<16x1xf32>
    %cst_499 = arith.constant dense<0.000000e+00> : vector<16xf32>
    %714 = vector.multi_reduction <add>, %711, %cst_499 [1] : vector<16x256xf32> to vector<16xf32>
    %715 = vector.shape_cast %714 : vector<16xf32> to vector<16x1xf32>
    %c0_500 = arith.constant 0 : index
    %c16_501 = arith.constant 16 : index
    %716 = vector.load %arg7[%c0_500, %c16_501] : memref<16x128xf32, #tpu.memory_space<vmem>>, vector<16x1xf32>
    %717 = arith.addf %716, %713 : vector<16x1xf32>
    %c0_502 = arith.constant 0 : index
    %c16_503 = arith.constant 16 : index
    %718 = vector.load %arg7[%c0_502, %c16_503] : memref<16x128xf32, #tpu.memory_space<vmem>>, vector<16x1xf32>
    tpu.vector_store %arg7[%c0_502, %c16_503], %717 {strides = array<i32>} : memref<16x128xf32, #tpu.memory_space<vmem>>, vector<16x1xf32>,
    %c0_504 = arith.constant 0 : index
    %c16_505 = arith.constant 16 : index
    %719 = vector.load %arg6[%c0_504, %c16_505] : memref<16x128xf32, #tpu.memory_space<vmem>>, vector<16x1xf32>
    %720 = arith.addf %719, %715 : vector<16x1xf32>
    %c0_506 = arith.constant 0 : index
    %c16_507 = arith.constant 16 : index
    %721 = vector.load %arg6[%c0_506, %c16_507] : memref<16x128xf32, #tpu.memory_space<vmem>>, vector<16x1xf32>
    tpu.vector_store %arg6[%c0_506, %c16_507], %720 {strides = array<i32>} : memref<16x128xf32, #tpu.memory_space<vmem>>, vector<16x1xf32>,
    %cst_508 = arith.constant 3.000000e+00 : f32
    %722 = vector.broadcast %cst_508 : f32 to vector<16x256xf32>
    %723 = arith.subf %722, %399 : vector<16x256xf32>
    %cst_509 = arith.constant -1.000000e+00 : f32
    %724 = vector.broadcast %cst_509 : f32 to vector<16x256xf32>
    %725 = arith.addf %399, %724 : vector<16x256xf32>
    %726 = arith.minimumf %723, %725 : vector<16x256xf32>
    %cst_510 = arith.constant 0.000000e+00 : f32
    %727 = vector.broadcast %cst_510 : f32 to vector<16x256xf32>
    %728 = arith.maximumf %726, %727 : vector<16x256xf32>
    %cst_511 = arith.constant 0.000000e+00 : f32
    %729 = vector.broadcast %cst_511 : f32 to vector<16x256xf32>
    %730 = arith.select %396, %728, %729 : vector<16x256xi1>, vector<16x256xf32>
    %cst_512 = arith.constant dense<0.000000e+00> : vector<16xf32>
    %731 = vector.multi_reduction <add>, %728, %cst_512 [1] : vector<16x256xf32> to vector<16xf32>
    %732 = vector.shape_cast %731 : vector<16xf32> to vector<16x1xf32>
    %cst_513 = arith.constant dense<0.000000e+00> : vector<16xf32>
    %733 = vector.multi_reduction <add>, %730, %cst_513 [1] : vector<16x256xf32> to vector<16xf32>
    %734 = vector.shape_cast %733 : vector<16xf32> to vector<16x1xf32>
    %c0_514 = arith.constant 0 : index
    %c17_515 = arith.constant 17 : index
    %735 = vector.load %arg7[%c0_514, %c17_515] : memref<16x128xf32, #tpu.memory_space<vmem>>, vector<16x1xf32>
    %736 = arith.addf %735, %732 : vector<16x1xf32>
    %c0_516 = arith.constant 0 : index
    %c17_517 = arith.constant 17 : index
    %737 = vector.load %arg7[%c0_516, %c17_517] : memref<16x128xf32, #tpu.memory_space<vmem>>, vector<16x1xf32>
    tpu.vector_store %arg7[%c0_516, %c17_517], %736 {strides = array<i32>} : memref<16x128xf32, #tpu.memory_space<vmem>>, vector<16x1xf32>,
    %c0_518 = arith.constant 0 : index
    %c17_519 = arith.constant 17 : index
    %738 = vector.load %arg6[%c0_518, %c17_519] : memref<16x128xf32, #tpu.memory_space<vmem>>, vector<16x1xf32>
    %739 = arith.addf %738, %734 : vector<16x1xf32>
    %c0_520 = arith.constant 0 : index
    %c17_521 = arith.constant 17 : index
    %740 = vector.load %arg6[%c0_520, %c17_521] : memref<16x128xf32, #tpu.memory_space<vmem>>, vector<16x1xf32>
    tpu.vector_store %arg6[%c0_520, %c17_521], %739 {strides = array<i32>} : memref<16x128xf32, #tpu.memory_space<vmem>>, vector<16x1xf32>,
    %cst_522 = arith.constant 2.000000e+00 : f32
    %741 = vector.broadcast %cst_522 : f32 to vector<16x256xf32>
    %742 = arith.subf %741, %399 : vector<16x256xf32>
    %cst_523 = arith.constant 0.000000e+00 : f32
    %743 = vector.broadcast %cst_523 : f32 to vector<16x256xf32>
    %744 = arith.addf %399, %743 : vector<16x256xf32>
    %745 = arith.minimumf %742, %744 : vector<16x256xf32>
    %cst_524 = arith.constant 0.000000e+00 : f32
    %746 = vector.broadcast %cst_524 : f32 to vector<16x256xf32>
    %747 = arith.maximumf %745, %746 : vector<16x256xf32>
    %cst_525 = arith.constant 0.000000e+00 : f32
    %748 = vector.broadcast %cst_525 : f32 to vector<16x256xf32>
    %749 = arith.select %396, %747, %748 : vector<16x256xi1>, vector<16x256xf32>
    %cst_526 = arith.constant dense<0.000000e+00> : vector<16xf32>
    %750 = vector.multi_reduction <add>, %747, %cst_526 [1] : vector<16x256xf32> to vector<16xf32>
    %751 = vector.shape_cast %750 : vector<16xf32> to vector<16x1xf32>
    %cst_527 = arith.constant dense<0.000000e+00> : vector<16xf32>
    %752 = vector.multi_reduction <add>, %749, %cst_527 [1] : vector<16x256xf32> to vector<16xf32>
    %753 = vector.shape_cast %752 : vector<16xf32> to vector<16x1xf32>
    %c0_528 = arith.constant 0 : index
    %c18_529 = arith.constant 18 : index
    %754 = vector.load %arg7[%c0_528, %c18_529] : memref<16x128xf32, #tpu.memory_space<vmem>>, vector<16x1xf32>
    %755 = arith.addf %754, %751 : vector<16x1xf32>
    %c0_530 = arith.constant 0 : index
    %c18_531 = arith.constant 18 : index
    %756 = vector.load %arg7[%c0_530, %c18_531] : memref<16x128xf32, #tpu.memory_space<vmem>>, vector<16x1xf32>
    tpu.vector_store %arg7[%c0_530, %c18_531], %755 {strides = array<i32>} : memref<16x128xf32, #tpu.memory_space<vmem>>, vector<16x1xf32>,
    %c0_532 = arith.constant 0 : index
    %c18_533 = arith.constant 18 : index
    %757 = vector.load %arg6[%c0_532, %c18_533] : memref<16x128xf32, #tpu.memory_space<vmem>>, vector<16x1xf32>
    %758 = arith.addf %757, %753 : vector<16x1xf32>
    %c0_534 = arith.constant 0 : index
    %c18_535 = arith.constant 18 : index
    %759 = vector.load %arg6[%c0_534, %c18_535] : memref<16x128xf32, #tpu.memory_space<vmem>>, vector<16x1xf32>
    tpu.vector_store %arg6[%c0_534, %c18_535], %758 {strides = array<i32>} : memref<16x128xf32, #tpu.memory_space<vmem>>, vector<16x1xf32>,
    %cst_536 = arith.constant 1.000000e+00 : f32
    %760 = vector.broadcast %cst_536 : f32 to vector<16x256xf32>
    %761 = arith.subf %760, %399 : vector<16x256xf32>
    %cst_537 = arith.constant 1.000000e+00 : f32
    %762 = vector.broadcast %cst_537 : f32 to vector<16x256xf32>
    %763 = arith.minimumf %761, %762 : vector<16x256xf32>
    %cst_538 = arith.constant 0.000000e+00 : f32
    %764 = vector.broadcast %cst_538 : f32 to vector<16x256xf32>
    %765 = arith.maximumf %763, %764 : vector<16x256xf32>
    %cst_539 = arith.constant 0.000000e+00 : f32
    %766 = vector.broadcast %cst_539 : f32 to vector<16x256xf32>
    %767 = arith.select %396, %765, %766 : vector<16x256xi1>, vector<16x256xf32>
    %cst_540 = arith.constant dense<0.000000e+00> : vector<16xf32>
    %768 = vector.multi_reduction <add>, %765, %cst_540 [1] : vector<16x256xf32> to vector<16xf32>
    %769 = vector.shape_cast %768 : vector<16xf32> to vector<16x1xf32>
    %cst_541 = arith.constant dense<0.000000e+00> : vector<16xf32>
    %770 = vector.multi_reduction <add>, %767, %cst_541 [1] : vector<16x256xf32> to vector<16xf32>
    %771 = vector.shape_cast %770 : vector<16xf32> to vector<16x1xf32>
    %c0_542 = arith.constant 0 : index
    %c19_543 = arith.constant 19 : index
    %772 = vector.load %arg7[%c0_542, %c19_543] : memref<16x128xf32, #tpu.memory_space<vmem>>, vector<16x1xf32>
    %773 = arith.addf %772, %769 : vector<16x1xf32>
    %c0_544 = arith.constant 0 : index
    %c19_545 = arith.constant 19 : index
    %774 = vector.load %arg7[%c0_544, %c19_545] : memref<16x128xf32, #tpu.memory_space<vmem>>, vector<16x1xf32>
    tpu.vector_store %arg7[%c0_544, %c19_545], %773 {strides = array<i32>} : memref<16x128xf32, #tpu.memory_space<vmem>>, vector<16x1xf32>,
    %c0_546 = arith.constant 0 : index
    %c19_547 = arith.constant 19 : index
    %775 = vector.load %arg6[%c0_546, %c19_547] : memref<16x128xf32, #tpu.memory_space<vmem>>, vector<16x1xf32>
    %776 = arith.addf %775, %771 : vector<16x1xf32>
    %c0_548 = arith.constant 0 : index
    %c19_549 = arith.constant 19 : index
    %777 = vector.load %arg6[%c0_548, %c19_549] : memref<16x128xf32, #tpu.memory_space<vmem>>, vector<16x1xf32>
    tpu.vector_store %arg6[%c0_548, %c19_549], %776 {strides = array<i32>} : memref<16x128xf32, #tpu.memory_space<vmem>>, vector<16x1xf32>,
    %c0_i32_550 = arith.constant 0 : i32
    %778 = arith.cmpi eq, %arg1, %c0_i32_550 : i32
    %779 = arith.extui %778 : i1 to i32
    %c0_i32_551 = arith.constant 0 : i32
    %780 = arith.cmpi ne, %779, %c0_i32_551 : i32
    scf.if %780 {
      %cst_552 = arith.constant 0.000000e+00 : f32
      %781 = vector.broadcast %cst_552 : f32 to vector<16x1xf32>
      %c0_553 = arith.constant 0 : index
      %c0_554 = arith.constant 0 : index
      %782 = vector.load %arg6[%c0_553, %c0_554] : memref<16x128xf32, #tpu.memory_space<vmem>>, vector<16x1xf32>
      %c0_555 = arith.constant 0 : index
      %c0_556 = arith.constant 0 : index
      %783 = vector.load %arg7[%c0_555, %c0_556] : memref<16x128xf32, #tpu.memory_space<vmem>>, vector<16x1xf32>
      %784 = arith.addf %781, %782 : vector<16x1xf32>
      %785 = arith.addf %781, %783 : vector<16x1xf32>
      %cst_557 = arith.constant 1.000000e-16 : f32
      %786 = vector.broadcast %cst_557 : f32 to vector<16x1xf32>
      %787 = arith.addf %786, %785 : vector<16x1xf32>
      %788 = arith.divf %784, %787 : vector<16x1xf32>
      %789 = arith.mulf %788, %782 : vector<16x1xf32>
      %790 = arith.addf %781, %789 : vector<16x1xf32>
      %c0_558 = arith.constant 0 : index
      %c1_559 = arith.constant 1 : index
      %791 = vector.load %arg6[%c0_558, %c1_559] : memref<16x128xf32, #tpu.memory_space<vmem>>, vector<16x1xf32>
      %c0_560 = arith.constant 0 : index
      %c1_561 = arith.constant 1 : index
      %792 = vector.load %arg7[%c0_560, %c1_561] : memref<16x128xf32, #tpu.memory_space<vmem>>, vector<16x1xf32>
      %793 = arith.addf %784, %791 : vector<16x1xf32>
      %794 = arith.addf %785, %792 : vector<16x1xf32>
      %cst_562 = arith.constant 1.000000e-16 : f32
      %795 = vector.broadcast %cst_562 : f32 to vector<16x1xf32>
      %796 = arith.addf %795, %794 : vector<16x1xf32>
      %797 = arith.divf %793, %796 : vector<16x1xf32>
      %798 = arith.mulf %797, %791 : vector<16x1xf32>
      %799 = arith.addf %790, %798 : vector<16x1xf32>
      %c0_563 = arith.constant 0 : index
      %c2_564 = arith.constant 2 : index
      %800 = vector.load %arg6[%c0_563, %c2_564] : memref<16x128xf32, #tpu.memory_space<vmem>>, vector<16x1xf32>
      %c0_565 = arith.constant 0 : index
      %c2_566 = arith.constant 2 : index
      %801 = vector.load %arg7[%c0_565, %c2_566] : memref<16x128xf32, #tpu.memory_space<vmem>>, vector<16x1xf32>
      %802 = arith.addf %793, %800 : vector<16x1xf32>
      %803 = arith.addf %794, %801 : vector<16x1xf32>
      %cst_567 = arith.constant 1.000000e-16 : f32
      %804 = vector.broadcast %cst_567 : f32 to vector<16x1xf32>
      %805 = arith.addf %804, %803 : vector<16x1xf32>
      %806 = arith.divf %802, %805 : vector<16x1xf32>
      %807 = arith.mulf %806, %800 : vector<16x1xf32>
      %808 = arith.addf %799, %807 : vector<16x1xf32>
      %c0_568 = arith.constant 0 : index
      %c3_569 = arith.constant 3 : index
      %809 = vector.load %arg6[%c0_568, %c3_569] : memref<16x128xf32, #tpu.memory_space<vmem>>, vector<16x1xf32>
      %c0_570 = arith.constant 0 : index
      %c3_571 = arith.constant 3 : index
      %810 = vector.load %arg7[%c0_570, %c3_571] : memref<16x128xf32, #tpu.memory_space<vmem>>, vector<16x1xf32>
      %811 = arith.addf %802, %809 : vector<16x1xf32>
      %812 = arith.addf %803, %810 : vector<16x1xf32>
      %cst_572 = arith.constant 1.000000e-16 : f32
      %813 = vector.broadcast %cst_572 : f32 to vector<16x1xf32>
      %814 = arith.addf %813, %812 : vector<16x1xf32>
      %815 = arith.divf %811, %814 : vector<16x1xf32>
      %816 = arith.mulf %815, %809 : vector<16x1xf32>
      %817 = arith.addf %808, %816 : vector<16x1xf32>
      %c0_573 = arith.constant 0 : index
      %c4_574 = arith.constant 4 : index
      %818 = vector.load %arg6[%c0_573, %c4_574] : memref<16x128xf32, #tpu.memory_space<vmem>>, vector<16x1xf32>
      %c0_575 = arith.constant 0 : index
      %c4_576 = arith.constant 4 : index
      %819 = vector.load %arg7[%c0_575, %c4_576] : memref<16x128xf32, #tpu.memory_space<vmem>>, vector<16x1xf32>
      %820 = arith.addf %811, %818 : vector<16x1xf32>
      %821 = arith.addf %812, %819 : vector<16x1xf32>
      %cst_577 = arith.constant 1.000000e-16 : f32
      %822 = vector.broadcast %cst_577 : f32 to vector<16x1xf32>
      %823 = arith.addf %822, %821 : vector<16x1xf32>
      %824 = arith.divf %820, %823 : vector<16x1xf32>
      %825 = arith.mulf %824, %818 : vector<16x1xf32>
      %826 = arith.addf %817, %825 : vector<16x1xf32>
      %c0_578 = arith.constant 0 : index
      %c5_579 = arith.constant 5 : index
      %827 = vector.load %arg6[%c0_578, %c5_579] : memref<16x128xf32, #tpu.memory_space<vmem>>, vector<16x1xf32>
      %c0_580 = arith.constant 0 : index
      %c5_581 = arith.constant 5 : index
      %828 = vector.load %arg7[%c0_580, %c5_581] : memref<16x128xf32, #tpu.memory_space<vmem>>, vector<16x1xf32>
      %829 = arith.addf %820, %827 : vector<16x1xf32>
      %830 = arith.addf %821, %828 : vector<16x1xf32>
      %cst_582 = arith.constant 1.000000e-16 : f32
      %831 = vector.broadcast %cst_582 : f32 to vector<16x1xf32>
      %832 = arith.addf %831, %830 : vector<16x1xf32>
      %833 = arith.divf %829, %832 : vector<16x1xf32>
      %834 = arith.mulf %833, %827 : vector<16x1xf32>
      %835 = arith.addf %826, %834 : vector<16x1xf32>
      %c0_583 = arith.constant 0 : index
      %c6_584 = arith.constant 6 : index
      %836 = vector.load %arg6[%c0_583, %c6_584] : memref<16x128xf32, #tpu.memory_space<vmem>>, vector<16x1xf32>
      %c0_585 = arith.constant 0 : index
      %c6_586 = arith.constant 6 : index
      %837 = vector.load %arg7[%c0_585, %c6_586] : memref<16x128xf32, #tpu.memory_space<vmem>>, vector<16x1xf32>
      %838 = arith.addf %829, %836 : vector<16x1xf32>
      %839 = arith.addf %830, %837 : vector<16x1xf32>
      %cst_587 = arith.constant 1.000000e-16 : f32
      %840 = vector.broadcast %cst_587 : f32 to vector<16x1xf32>
      %841 = arith.addf %840, %839 : vector<16x1xf32>
      %842 = arith.divf %838, %841 : vector<16x1xf32>
      %843 = arith.mulf %842, %836 : vector<16x1xf32>
      %844 = arith.addf %835, %843 : vector<16x1xf32>
      %c0_588 = arith.constant 0 : index
      %c7_589 = arith.constant 7 : index
      %845 = vector.load %arg6[%c0_588, %c7_589] : memref<16x128xf32, #tpu.memory_space<vmem>>, vector<16x1xf32>
      %c0_590 = arith.constant 0 : index
      %c7_591 = arith.constant 7 : index
      %846 = vector.load %arg7[%c0_590, %c7_591] : memref<16x128xf32, #tpu.memory_space<vmem>>, vector<16x1xf32>
      %847 = arith.addf %838, %845 : vector<16x1xf32>
      %848 = arith.addf %839, %846 : vector<16x1xf32>
      %cst_592 = arith.constant 1.000000e-16 : f32
      %849 = vector.broadcast %cst_592 : f32 to vector<16x1xf32>
      %850 = arith.addf %849, %848 : vector<16x1xf32>
      %851 = arith.divf %847, %850 : vector<16x1xf32>
      %852 = arith.mulf %851, %845 : vector<16x1xf32>
      %853 = arith.addf %844, %852 : vector<16x1xf32>
      %c0_593 = arith.constant 0 : index
      %c8_594 = arith.constant 8 : index
      %854 = vector.load %arg6[%c0_593, %c8_594] : memref<16x128xf32, #tpu.memory_space<vmem>>, vector<16x1xf32>
      %c0_595 = arith.constant 0 : index
      %c8_596 = arith.constant 8 : index
      %855 = vector.load %arg7[%c0_595, %c8_596] : memref<16x128xf32, #tpu.memory_space<vmem>>, vector<16x1xf32>
      %856 = arith.addf %847, %854 : vector<16x1xf32>
      %857 = arith.addf %848, %855 : vector<16x1xf32>
      %cst_597 = arith.constant 1.000000e-16 : f32
      %858 = vector.broadcast %cst_597 : f32 to vector<16x1xf32>
      %859 = arith.addf %858, %857 : vector<16x1xf32>
      %860 = arith.divf %856, %859 : vector<16x1xf32>
      %861 = arith.mulf %860, %854 : vector<16x1xf32>
      %862 = arith.addf %853, %861 : vector<16x1xf32>
      %c0_598 = arith.constant 0 : index
      %c9_599 = arith.constant 9 : index
      %863 = vector.load %arg6[%c0_598, %c9_599] : memref<16x128xf32, #tpu.memory_space<vmem>>, vector<16x1xf32>
      %c0_600 = arith.constant 0 : index
      %c9_601 = arith.constant 9 : index
      %864 = vector.load %arg7[%c0_600, %c9_601] : memref<16x128xf32, #tpu.memory_space<vmem>>, vector<16x1xf32>
      %865 = arith.addf %856, %863 : vector<16x1xf32>
      %866 = arith.addf %857, %864 : vector<16x1xf32>
      %cst_602 = arith.constant 1.000000e-16 : f32
      %867 = vector.broadcast %cst_602 : f32 to vector<16x1xf32>
      %868 = arith.addf %867, %866 : vector<16x1xf32>
      %869 = arith.divf %865, %868 : vector<16x1xf32>
      %870 = arith.mulf %869, %863 : vector<16x1xf32>
      %871 = arith.addf %862, %870 : vector<16x1xf32>
      %c0_603 = arith.constant 0 : index
      %c10_604 = arith.constant 10 : index
      %872 = vector.load %arg6[%c0_603, %c10_604] : memref<16x128xf32, #tpu.memory_space<vmem>>, vector<16x1xf32>
      %c0_605 = arith.constant 0 : index
      %c10_606 = arith.constant 10 : index
      %873 = vector.load %arg7[%c0_605, %c10_606] : memref<16x128xf32, #tpu.memory_space<vmem>>, vector<16x1xf32>
      %874 = arith.addf %865, %872 : vector<16x1xf32>
      %875 = arith.addf %866, %873 : vector<16x1xf32>
      %cst_607 = arith.constant 1.000000e-16 : f32
      %876 = vector.broadcast %cst_607 : f32 to vector<16x1xf32>
      %877 = arith.addf %876, %875 : vector<16x1xf32>
      %878 = arith.divf %874, %877 : vector<16x1xf32>
      %879 = arith.mulf %878, %872 : vector<16x1xf32>
      %880 = arith.addf %871, %879 : vector<16x1xf32>
      %c0_608 = arith.constant 0 : index
      %c11_609 = arith.constant 11 : index
      %881 = vector.load %arg6[%c0_608, %c11_609] : memref<16x128xf32, #tpu.memory_space<vmem>>, vector<16x1xf32>
      %c0_610 = arith.constant 0 : index
      %c11_611 = arith.constant 11 : index
      %882 = vector.load %arg7[%c0_610, %c11_611] : memref<16x128xf32, #tpu.memory_space<vmem>>, vector<16x1xf32>
      %883 = arith.addf %874, %881 : vector<16x1xf32>
      %884 = arith.addf %875, %882 : vector<16x1xf32>
      %cst_612 = arith.constant 1.000000e-16 : f32
      %885 = vector.broadcast %cst_612 : f32 to vector<16x1xf32>
      %886 = arith.addf %885, %884 : vector<16x1xf32>
      %887 = arith.divf %883, %886 : vector<16x1xf32>
      %888 = arith.mulf %887, %881 : vector<16x1xf32>
      %889 = arith.addf %880, %888 : vector<16x1xf32>
      %c0_613 = arith.constant 0 : index
      %c12_614 = arith.constant 12 : index
      %890 = vector.load %arg6[%c0_613, %c12_614] : memref<16x128xf32, #tpu.memory_space<vmem>>, vector<16x1xf32>
      %c0_615 = arith.constant 0 : index
      %c12_616 = arith.constant 12 : index
      %891 = vector.load %arg7[%c0_615, %c12_616] : memref<16x128xf32, #tpu.memory_space<vmem>>, vector<16x1xf32>
      %892 = arith.addf %883, %890 : vector<16x1xf32>
      %893 = arith.addf %884, %891 : vector<16x1xf32>
      %cst_617 = arith.constant 1.000000e-16 : f32
      %894 = vector.broadcast %cst_617 : f32 to vector<16x1xf32>
      %895 = arith.addf %894, %893 : vector<16x1xf32>
      %896 = arith.divf %892, %895 : vector<16x1xf32>
      %897 = arith.mulf %896, %890 : vector<16x1xf32>
      %898 = arith.addf %889, %897 : vector<16x1xf32>
      %c0_618 = arith.constant 0 : index
      %c13_619 = arith.constant 13 : index
      %899 = vector.load %arg6[%c0_618, %c13_619] : memref<16x128xf32, #tpu.memory_space<vmem>>, vector<16x1xf32>
      %c0_620 = arith.constant 0 : index
      %c13_621 = arith.constant 13 : index
      %900 = vector.load %arg7[%c0_620, %c13_621] : memref<16x128xf32, #tpu.memory_space<vmem>>, vector<16x1xf32>
      %901 = arith.addf %892, %899 : vector<16x1xf32>
      %902 = arith.addf %893, %900 : vector<16x1xf32>
      %cst_622 = arith.constant 1.000000e-16 : f32
      %903 = vector.broadcast %cst_622 : f32 to vector<16x1xf32>
      %904 = arith.addf %903, %902 : vector<16x1xf32>
      %905 = arith.divf %901, %904 : vector<16x1xf32>
      %906 = arith.mulf %905, %899 : vector<16x1xf32>
      %907 = arith.addf %898, %906 : vector<16x1xf32>
      %c0_623 = arith.constant 0 : index
      %c14_624 = arith.constant 14 : index
      %908 = vector.load %arg6[%c0_623, %c14_624] : memref<16x128xf32, #tpu.memory_space<vmem>>, vector<16x1xf32>
      %c0_625 = arith.constant 0 : index
      %c14_626 = arith.constant 14 : index
      %909 = vector.load %arg7[%c0_625, %c14_626] : memref<16x128xf32, #tpu.memory_space<vmem>>, vector<16x1xf32>
      %910 = arith.addf %901, %908 : vector<16x1xf32>
      %911 = arith.addf %902, %909 : vector<16x1xf32>
      %cst_627 = arith.constant 1.000000e-16 : f32
      %912 = vector.broadcast %cst_627 : f32 to vector<16x1xf32>
      %913 = arith.addf %912, %911 : vector<16x1xf32>
      %914 = arith.divf %910, %913 : vector<16x1xf32>
      %915 = arith.mulf %914, %908 : vector<16x1xf32>
      %916 = arith.addf %907, %915 : vector<16x1xf32>
      %c0_628 = arith.constant 0 : index
      %c15_629 = arith.constant 15 : index
      %917 = vector.load %arg6[%c0_628, %c15_629] : memref<16x128xf32, #tpu.memory_space<vmem>>, vector<16x1xf32>
      %c0_630 = arith.constant 0 : index
      %c15_631 = arith.constant 15 : index
      %918 = vector.load %arg7[%c0_630, %c15_631] : memref<16x128xf32, #tpu.memory_space<vmem>>, vector<16x1xf32>
      %919 = arith.addf %910, %917 : vector<16x1xf32>
      %920 = arith.addf %911, %918 : vector<16x1xf32>
      %cst_632 = arith.constant 1.000000e-16 : f32
      %921 = vector.broadcast %cst_632 : f32 to vector<16x1xf32>
      %922 = arith.addf %921, %920 : vector<16x1xf32>
      %923 = arith.divf %919, %922 : vector<16x1xf32>
      %924 = arith.mulf %923, %917 : vector<16x1xf32>
      %925 = arith.addf %916, %924 : vector<16x1xf32>
      %c0_633 = arith.constant 0 : index
      %c16_634 = arith.constant 16 : index
      %926 = vector.load %arg6[%c0_633, %c16_634] : memref<16x128xf32, #tpu.memory_space<vmem>>, vector<16x1xf32>
      %c0_635 = arith.constant 0 : index
      %c16_636 = arith.constant 16 : index
      %927 = vector.load %arg7[%c0_635, %c16_636] : memref<16x128xf32, #tpu.memory_space<vmem>>, vector<16x1xf32>
      %928 = arith.addf %919, %926 : vector<16x1xf32>
      %929 = arith.addf %920, %927 : vector<16x1xf32>
      %cst_637 = arith.constant 1.000000e-16 : f32
      %930 = vector.broadcast %cst_637 : f32 to vector<16x1xf32>
      %931 = arith.addf %930, %929 : vector<16x1xf32>
      %932 = arith.divf %928, %931 : vector<16x1xf32>
      %933 = arith.mulf %932, %926 : vector<16x1xf32>
      %934 = arith.addf %925, %933 : vector<16x1xf32>
      %c0_638 = arith.constant 0 : index
      %c17_639 = arith.constant 17 : index
      %935 = vector.load %arg6[%c0_638, %c17_639] : memref<16x128xf32, #tpu.memory_space<vmem>>, vector<16x1xf32>
      %c0_640 = arith.constant 0 : index
      %c17_641 = arith.constant 17 : index
      %936 = vector.load %arg7[%c0_640, %c17_641] : memref<16x128xf32, #tpu.memory_space<vmem>>, vector<16x1xf32>
      %937 = arith.addf %928, %935 : vector<16x1xf32>
      %938 = arith.addf %929, %936 : vector<16x1xf32>
      %cst_642 = arith.constant 1.000000e-16 : f32
      %939 = vector.broadcast %cst_642 : f32 to vector<16x1xf32>
      %940 = arith.addf %939, %938 : vector<16x1xf32>
      %941 = arith.divf %937, %940 : vector<16x1xf32>
      %942 = arith.mulf %941, %935 : vector<16x1xf32>
      %943 = arith.addf %934, %942 : vector<16x1xf32>
      %c0_643 = arith.constant 0 : index
      %c18_644 = arith.constant 18 : index
      %944 = vector.load %arg6[%c0_643, %c18_644] : memref<16x128xf32, #tpu.memory_space<vmem>>, vector<16x1xf32>
      %c0_645 = arith.constant 0 : index
      %c18_646 = arith.constant 18 : index
      %945 = vector.load %arg7[%c0_645, %c18_646] : memref<16x128xf32, #tpu.memory_space<vmem>>, vector<16x1xf32>
      %946 = arith.addf %937, %944 : vector<16x1xf32>
      %947 = arith.addf %938, %945 : vector<16x1xf32>
      %cst_647 = arith.constant 1.000000e-16 : f32
      %948 = vector.broadcast %cst_647 : f32 to vector<16x1xf32>
      %949 = arith.addf %948, %947 : vector<16x1xf32>
      %950 = arith.divf %946, %949 : vector<16x1xf32>
      %951 = arith.mulf %950, %944 : vector<16x1xf32>
      %952 = arith.addf %943, %951 : vector<16x1xf32>
      %c0_648 = arith.constant 0 : index
      %c19_649 = arith.constant 19 : index
      %953 = vector.load %arg6[%c0_648, %c19_649] : memref<16x128xf32, #tpu.memory_space<vmem>>, vector<16x1xf32>
      %c0_650 = arith.constant 0 : index
      %c19_651 = arith.constant 19 : index
      %954 = vector.load %arg7[%c0_650, %c19_651] : memref<16x128xf32, #tpu.memory_space<vmem>>, vector<16x1xf32>
      %cst_652 = arith.constant 2.120000e+02 : f32
      %955 = vector.broadcast %cst_652 : f32 to vector<16x1xf32>
      %956 = arith.subf %954, %955 : vector<16x1xf32>
      %957 = arith.addf %946, %953 : vector<16x1xf32>
      %958 = arith.addf %947, %956 : vector<16x1xf32>
      %cst_653 = arith.constant 1.000000e-16 : f32
      %959 = vector.broadcast %cst_653 : f32 to vector<16x1xf32>
      %960 = arith.addf %959, %958 : vector<16x1xf32>
      %961 = arith.divf %957, %960 : vector<16x1xf32>
      %962 = arith.mulf %961, %953 : vector<16x1xf32>
      %963 = arith.addf %952, %962 : vector<16x1xf32>
      %964 = arith.divf %963, %957 : vector<16x1xf32>
      %c0_654 = arith.constant 0 : index
      %c0_655 = arith.constant 0 : index
      %965 = vector.load %arg5[%c0_654, %c0_655] : memref<16x1xf32, #tpu.memory_space<vmem>>, vector<16x1xf32>
      tpu.vector_store %arg5[%c0_654, %c0_655], %964 {strides = array<i32>} : memref<16x1xf32, #tpu.memory_space<vmem>>, vector<16x1xf32>,
    } else {
    }
    return
  }
  func.func @transform_0(%arg0: i32, %arg1: i32) -> (i32, i32) {
    %c0_i32 = arith.constant 0 : i32
    %c0_i32_0 = arith.constant 0 : i32
    return %arg0, %c0_i32 : i32, i32
  }
  func.func @transform_1(%arg0: i32, %arg1: i32) -> (i32, i32) {
    %c0_i32 = arith.constant 0 : i32
    %c0_i32_0 = arith.constant 0 : i32
    return %c0_i32, %arg1 : i32, i32
  }
  func.func @transform_2(%arg0: i32, %arg1: i32) -> (i32, i32) {
    %c0_i32 = arith.constant 0 : i32
    %c0_i32_0 = arith.constant 0 : i32
    return %c0_i32, %arg1 : i32, i32
  }
  func.func @transform_3(%arg0: i32, %arg1: i32) -> (i32, i32) {
    %c0_i32 = arith.constant 0 : i32
    %c0_i32_0 = arith.constant 0 : i32
    return %arg0, %c0_i32 : i32, i32
  }
}

</mosaic_0001>

<llo_original>
// kernel: tpu_custom_call.1
$region0: #{tpu_custom_call.1}
  #allocation0 [shape = 'u32[]', space=smem, size = 0x4, offset = 0x4, fixed_abs, tag = 'smem constant byte address 0x4 - core index']
  #allocation1 [shape = 'u32[144,128]{1,0:T(1,128)}', space=vmem, size = 0x12000, scoped, tag = 'internal scratch']
  #allocation2 [shape = 'f32[16,128]{1,0:T(8,128)}', space=vmem, size = 0x2000, scoped, tag = 'scratch operand']
  #allocation3 [shape = 'f32[16,128]{1,0:T(8,128)}', space=vmem, size = 0x2000, scoped, tag = 'scratch operand']
  %s0 = inlined_call_operand.vmem [shape: f32[32,1], index: 0, kind: input, shape index: {}]
  %s1 = inlined_call_operand.vmem [shape: f32[1,512], index: 1, kind: input, shape index: {}]
  %s2 = inlined_call_operand.vmem [shape: f32[1,512], index: 2, kind: input, shape index: {}]
  %s3 = inlined_call_operand.vmem [shape: f32[32,1], index: 3, kind: output, shape index: {}]
  %s4 = sld [smem:[#allocation0]]
  $region53: #{tpu_custom_call.1} parent=0
    _
  %s6 = ssub.s32 1, %s4
  %s7 = scalar_select 0, %s6, %s4
  loop: start=0, step=1, limit=4
  $region2: #{tpu_custom_call.1} parent=0 // loop_pre_header
    _
  $region3: #{tpu_custom_call.1} parent=0 // loop_header
    %s9 = sphi 0, %s13
    %p10 = scmp.ge.s32.totalorder %s9, 4
    %s16 = sphi 0, %s28
    %s17 = sphi 0, %s24
    %s18 = sphi 0, %s16
    %s19 = sphi 0, %s17
    %s20 = sphi 0, %s18
    %s21 = sphi 0, %s19
    %s31 = sphi 0, %s33
    %s34 = sphi 0, %s31
    %s35 = sphi 0, %s34
    %s51 = sphi 0, %s35
    %s57 = sphi 0, %s59
    %s60 = sphi 0, %s57
    %s61 = sphi 0, %s60
    %s77 = sphi 0, %s61
    %s83 = sphi 0, %s85
    %s86 = sphi 0, %s83
    %s87 = sphi 0, %s86
    %s103 = sphi 0, %s87
    %s109 = sphi 0, %s111
    %s112 = sphi 0, %s109
    %s113 = sphi 0, %s112
    %s129 = sphi 0, %s113
  $region4: #{tpu_custom_call.1} parent=0 // loop_header_branch
    %12 = sbr.rel (%p10) target = $region8
  $region5: #{tpu_custom_call.1} parent=0 // loop_body
    %s14 = ssub.s32 %s9, 1
    %s15 = ssub.s32 %s9, 2
    %s22 = sadd.s32 1, %s17
    %p23 = scmp.ge.s32.totalorder %s22, 1
    %s24 = scalar_select %p23, 0, %s22
    %s25 = sadd.s32 1, %s16
    %s26 = scalar_select %p23, %s25, %s16
    %p27 = scmp.ge.s32.totalorder %s26, 2
    %s28 = scalar_select %p27, 0, %s26
    %s29 = ssub.s32 %s16, %s28
    %p30 = scmp.eq.s32.totalorder %s29, 0
    %s32 = sadd.s32 %s31, 1
    %s33 = scalar_select %p30, %s31, %s32
    %p36 = pneg %p30
    %p37 = scmp.eq.s32.totalorder %s9, 1
    %p38 = por %p36, %p37
    %p39 = scmp.ne.s32.totalorder %s31, %s34
    %p40 = scmp.eq.s32.totalorder %s9, 0
    %p41 = por %p39, %p40
    %p42 = scmp.ne.s32.totalorder %s31, %s34
    %p43 = scmp.eq.s32.totalorder %s14, 1
    %p44 = por %p42, %p43
    %p45 = scmp.ne.s32.totalorder %s34, %s35
    %p46 = scmp.eq.s32.totalorder %s14, 0
    %p47 = por %p45, %p46
    %p48 = scmp.ne.s32.totalorder %s34, %s35
    %p49 = scmp.eq.s32.totalorder %s15, 1
    %p50 = por %p48, %p49
    %p52 = scmp.ne.s32.totalorder %s35, %s51
    %p53 = scmp.eq.s32.totalorder %s15, 0
    %p54 = por %p52, %p53
    %s55 = ssub.s32 %s17, %s24
    %p56 = scmp.eq.s32.totalorder %s55, 0
    %s58 = sadd.s32 %s57, 1
    %s59 = scalar_select %p56, %s57, %s58
    %p62 = pneg %p56
    %p63 = scmp.eq.s32.totalorder %s9, 1
    %p64 = por %p62, %p63
    %p65 = scmp.ne.s32.totalorder %s57, %s60
    %p66 = scmp.eq.s32.totalorder %s9, 0
    %p67 = por %p65, %p66
    %p68 = scmp.ne.s32.totalorder %s57, %s60
    %p69 = scmp.eq.s32.totalorder %s14, 1
    %p70 = por %p68, %p69
    %p71 = scmp.ne.s32.totalorder %s60, %s61
    %p72 = scmp.eq.s32.totalorder %s14, 0
    %p73 = por %p71, %p72
    %p74 = scmp.ne.s32.totalorder %s60, %s61
    %p75 = scmp.eq.s32.totalorder %s15, 1
    %p76 = por %p74, %p75
    %p78 = scmp.ne.s32.totalorder %s61, %s77
    %p79 = scmp.eq.s32.totalorder %s15, 0
    %p80 = por %p78, %p79
    %s81 = ssub.s32 %s17, %s24
    %p82 = scmp.eq.s32.totalorder %s81, 0
    %s84 = sadd.s32 %s83, 1
    %s85 = scalar_select %p82, %s83, %s84
    %p88 = pneg %p82
    %p89 = scmp.eq.s32.totalorder %s9, 1
    %p90 = por %p88, %p89
    %p91 = scmp.ne.s32.totalorder %s83, %s86
    %p92 = scmp.eq.s32.totalorder %s9, 0
    %p93 = por %p91, %p92
    %p94 = scmp.ne.s32.totalorder %s83, %s86
    %p95 = scmp.eq.s32.totalorder %s14, 1
    %p96 = por %p94, %p95
    %p97 = scmp.ne.s32.totalorder %s86, %s87
    %p98 = scmp.eq.s32.totalorder %s14, 0
    %p99 = por %p97, %p98
    %p100 = scmp.ne.s32.totalorder %s86, %s87
    %p101 = scmp.eq.s32.totalorder %s15, 1
    %p102 = por %p100, %p101
    %p104 = scmp.ne.s32.totalorder %s87, %s103
    %p105 = scmp.eq.s32.totalorder %s15, 0
    %p106 = por %p104, %p105
    %s107 = ssub.s32 %s16, %s28
    %p108 = scmp.eq.s32.totalorder %s107, 0
    %s110 = sadd.s32 %s109, 1
    %s111 = scalar_select %p108, %s109, %s110
    %p114 = pneg %p108
    %p115 = scmp.eq.s32.totalorder %s9, 1
    %p116 = por %p114, %p115
    %p117 = scmp.ne.s32.totalorder %s109, %s112
    %p118 = scmp.eq.s32.totalorder %s9, 0
    %p119 = por %p117, %p118
    %p120 = scmp.ne.s32.totalorder %s109, %s112
    %p121 = scmp.eq.s32.totalorder %s14, 1
    %p122 = por %p120, %p121
    %p123 = scmp.ne.s32.totalorder %s112, %s113
    %p124 = scmp.eq.s32.totalorder %s14, 0
    %p125 = por %p123, %p124
    %p126 = scmp.ne.s32.totalorder %s112, %s113
    %p127 = scmp.eq.s32.totalorder %s15, 1
    %p128 = por %p126, %p127
    %p130 = scmp.ne.s32.totalorder %s113, %s129
    %p131 = scmp.eq.s32.totalorder %s15, 0
    %p132 = por %p130, %p131
    %p133 = scmp.le.s32.totalorder 1, %s9
    %p134 = scmp.lt.s32.totalorder %s9, 3
    %p135 = pnand %p133, %p134
    %p136 = pneg %p135
    // Predicated region
    $region9: #{tpu_custom_call.1} parent=5 // pred_check
      _
    $region10: #{tpu_custom_call.1} parent=5 // pred_check_branch
      %138 = sbr.rel (%p135) target = $region12
    $region11: #{tpu_custom_call.1} parent=5 // pred_region
      %s139 = ssub.s32 %s9, 1
      // Predicated region
      $region13: #{tpu_custom_call.1} parent=11 // pred_check
        %p140 = pneg %p73
      $region14: #{tpu_custom_call.1} parent=11 // pred_check_branch
        %142 = sbr.rel (%p140) target = $region16
      $region15: #{tpu_custom_call.1} parent=11 // pred_region
        %s143 = smul.u32 4, %s19
        %p144 = scmp.lt.s32.totalorder %s143, 3
        %s145 = scalar_select %p144, %s143, 3
        %s146 = scalar_lea.vmem %s1, %s145
        %s147 = smul.u32 4, %s19
      $region16: #{tpu_custom_call.1} parent=11 // pred_fallthru
        _
      // Predicated region
      $region17: #{tpu_custom_call.1} parent=11 // pred_check
        %p148 = pneg %p99
      $region18: #{tpu_custom_call.1} parent=11 // pred_check_branch
        %150 = sbr.rel (%p148) target = $region20
      $region19: #{tpu_custom_call.1} parent=11 // pred_region
        %s151 = smul.u32 4, %s19
        %p152 = scmp.lt.s32.totalorder %s151, 3
        %s153 = scalar_select %p152, %s151, 3
        %s154 = scalar_lea.vmem %s2, %s153
        %s155 = smul.u32 4, %s19
      $region20: #{tpu_custom_call.1} parent=11 // pred_fallthru
        _
    $region12: #{tpu_custom_call.1} parent=5 // pred_fallthru
      _
    %p156 = scmp.lt.s32.totalorder %s9, 2
    // Predicated region
    $region21: #{tpu_custom_call.1} parent=5 // pred_check
      %p157 = pneg %p156
    $region22: #{tpu_custom_call.1} parent=5 // pred_check_branch
      %159 = sbr.rel (%p157) target = $region24
    $region23: #{tpu_custom_call.1} parent=5 // pred_region
      // Predicated region
      $region25: #{tpu_custom_call.1} parent=23 // pred_check
        %p160 = pneg %p41
      $region26: #{tpu_custom_call.1} parent=23 // pred_check_branch
        %162 = sbr.rel (%p160) target = $region28
      $region27: #{tpu_custom_call.1} parent=23 // pred_region
        %s163 = smul.u32 2, %s16
        %p164 = scmp.lt.s32.totalorder %s163, 3
        %s165 = scalar_select %p164, %s163, 3
        %s166 = smul.addr %s165, 8
        %s167 = scalar_lea.vmem %s0, %s166
        %s168 = smul.u32 2, %s16
      $region28: #{tpu_custom_call.1} parent=23 // pred_fallthru
        _
    $region24: #{tpu_custom_call.1} parent=5 // pred_fallthru
      _
    %p169 = scmp.le.s32.totalorder 1, %s9
    %p170 = scmp.lt.s32.totalorder %s9, 3
    %p171 = pnand %p169, %p170
    %p172 = pneg %p171
    // Predicated region
    $region29: #{tpu_custom_call.1} parent=5 // pred_check
      _
    $region30: #{tpu_custom_call.1} parent=5 // pred_check_branch
      %174 = sbr.rel (%p171) target = $region32
    $region31: #{tpu_custom_call.1} parent=5 // pred_region
      %s175 = ssub.s32 %s9, 1
      %s176 = smul.u32 2, %s18
      %p177 = scmp.lt.s32.totalorder %s176, 3
      %s178 = scalar_select %p177, %s176, 3
      %s179 = smul.addr %s178, 8
      %s180 = scalar_lea.vmem %s0, %s179
      %p181 = pneg %p47
      %p182 = pneg %p44
      %s183 = smul.u32 4, %s19
      %p184 = scmp.lt.s32.totalorder %s183, 3
      %s185 = scalar_select %p184, %s183, 3
      %s186 = scalar_lea.vmem %s1, %s185
      %p187 = pneg %p73
      %p188 = pneg %p70
      %s189 = smul.u32 4, %s19
      %p190 = scmp.lt.s32.totalorder %s189, 3
      %s191 = scalar_select %p190, %s189, 3
      %s192 = scalar_lea.vmem %s2, %s191
      %p193 = pneg %p99
      %p194 = pneg %p96
      %p195 = pneg %p125
      %p196 = pneg %p122
      %s197 = smul.u32 2, %s18
      %p198 = scmp.lt.s32.totalorder %s197, 3
      %s199 = scalar_select %p198, %s197, 3
      %s200 = smul.addr %s199, 8
      %s201 = scalar_lea.vmem %s3, %s200
      %s202 = smul.u32 2, %s18
      %p203 = scmp.lt.s32.totalorder %s202, 3
      %s204 = scalar_select %p203, %s202, 3
      %s205 = smul.addr %s204, 8
      %s206 = scalar_lea.vmem %s0, %s205
      %s207 = smul.u32 2, %s18
      %s208 = smul.u32 4, %s19
      %p209 = scmp.lt.s32.totalorder %s208, 3
      %s210 = scalar_select %p209, %s208, 3
      %s211 = scalar_lea.vmem %s1, %s210
      %s212 = smul.u32 4, %s19
      %s213 = smul.u32 4, %s19
      %p214 = scmp.lt.s32.totalorder %s213, 3
      %s215 = scalar_select %p214, %s213, 3
      %s216 = scalar_lea.vmem %s2, %s215
      %s217 = smul.u32 4, %s19
      %s218 = smul.u32 2, %s18
      %p219 = scmp.lt.s32.totalorder %s218, 3
      %s220 = scalar_select %p219, %s218, 3
      %s221 = smul.addr %s220, 8
      %s222 = scalar_lea.vmem %s3, %s221
      %s223 = smul.u32 2, %s18
      %p224 = scmp.eq.s32.totalorder %s19, 0
      // Predicated region
      $region33: #{tpu_custom_call.1} parent=31 // pred_check
        %p225 = pneg %p224
      $region34: #{tpu_custom_call.1} parent=31 // pred_check_branch
        %227 = sbr.rel (%p225) target = $region36
      $region35: #{tpu_custom_call.1} parent=31 // pred_region
        %228 = vst [vmem:[#allocation2] sm:$0xff] 0.0
        %229 = vst [vmem:[#allocation2 + $0x8] sm:$0xff] 0.0
        %230 = vst [vmem:[#allocation3] sm:$0xff] 0.0
        %231 = vst [vmem:[#allocation3 + $0x8] sm:$0xff] 0.0
      $region36: #{tpu_custom_call.1} parent=31 // pred_fallthru
        _
      %v232 = vld [vmem:[%s206] sm:$0xff]
      %v233 = vld [vmem:[%s206 + $0x8] sm:$0xff]
      %v234 = vmul.f32 %v232, 19.0
      %v235 = vmul.f32 %v233, 19.0
      %v236 = vld [vmem:[%s211] sm:$0x3]
      %v237 = vld [vmem:[%s216] sm:$0x3]
      %239 = vset.pattern.permute.xlu0 0
      %240 = vperm.xlu0 %239, %v232
      %v241 = vpop.permute.xlu0 %240
      %244 = vset.pattern.permute.xlu0 0
      %245 = vperm.xlu0 %244, %v233
      %v246 = vpop.permute.xlu0 %245
      %v249 = vlaneseq
      %v250 = vshrl.u32 %v249, 7
      %v251 = vsub.s32 0, %v250
      %v252 = vrot.slane %v237, %v251
      %v253 = vlaneseq
      %v254 = vshrl.u32 %v253, 7
      %v255 = vsub.s32 1, %v254
      %v256 = vrot.slane %v237, %v255
      %vm259 = vcmp.eq.f32.partialorder %v241, %v252
      %vm260 = vcmp.eq.f32.partialorder %v241, %v256
      %vm261 = vcmp.eq.f32.partialorder %v246, %v252
      %vm262 = vcmp.eq.f32.partialorder %v246, %v256
      %264 = vset.pattern.permute.xlu0 0
      %265 = vperm.xlu0 %264, %v234
      %v266 = vpop.permute.xlu0 %265
      %269 = vset.pattern.permute.xlu0 0
      %270 = vperm.xlu0 %269, %v235
      %v271 = vpop.permute.xlu0 %270
      %v274 = vlaneseq
      %v275 = vshrl.u32 %v274, 7
      %v276 = vsub.s32 0, %v275
      %v277 = vrot.slane %v236, %v276
      %v278 = vlaneseq
      %v279 = vshrl.u32 %v278, 7
      %v280 = vsub.s32 1, %v279
      %v281 = vrot.slane %v236, %v280
      %v284 = vmul.f32 %v266, %v277
      %v285 = vmul.f32 %v266, %v281
      %v286 = vmul.f32 %v271, %v277
      %v287 = vmul.f32 %v271, %v281
      %v288 = vadd.f32 %v284, -18.0
      %v289 = vadd.f32 %v285, -18.0
      %v290 = vadd.f32 %v286, -18.0
      %v291 = vadd.f32 %v287, -18.0
      %v292 = vmin.f32 %v288, 1.0
      %v293 = vmin.f32 %v289, 1.0
      %v294 = vmin.f32 %v290, 1.0
      %v295 = vmin.f32 %v291, 1.0
      %v296 = vmax.f32 %v292, 0.0
      %v297 = vmax.f32 %v293, 0.0
      %v298 = vmax.f32 %v294, 0.0
      %v299 = vmax.f32 %v295, 0.0
      %v300 = vsel %vm259, %v296, 0.0
      %v301 = vsel %vm260, %v297, 0.0
      %v302 = vsel %vm261, %v298, 0.0
      %v303 = vsel %vm262, %v299, 0.0
      %v304 = vadd.f32 %v296, %v297
      %305 = vadd.xlane.f32.xlu0 %v304
      %v306 = vpop.xlane.xlu0 %305
      %v307 = vadd.f32 %v298, %v299
      %308 = vadd.xlane.f32.xlu0 %v307
      %v309 = vpop.xlane.xlu0 %308
      %v310 = vadd.f32 %v300, %v301
      %311 = vadd.xlane.f32.xlu0 %v310
      %v312 = vpop.xlane.xlu0 %311
      %v313 = vadd.f32 %v302, %v303
      %314 = vadd.xlane.f32.xlu0 %v313
      %v315 = vpop.xlane.xlu0 %314
      %v316 = vld [vmem:[#allocation3] sm:$0xff]
      %v317 = vld [vmem:[#allocation3 + $0x8] sm:$0xff]
      %v318 = vadd.f32 %v316, %v306
      %v319 = vadd.f32 %v317, %v309
      %vm320 = vcmask 7168
      %321 = vst.msk [vmem:[#allocation3] sm:$0xff] %vm320, %v318
      %322 = vst.msk [vmem:[#allocation3 + $0x8] sm:$0xff] %vm320, %v319
      %v323 = vld [vmem:[#allocation2] sm:$0xff]
      %v324 = vld [vmem:[#allocation2 + $0x8] sm:$0xff]
      %v325 = vadd.f32 %v323, %v312
      %v326 = vadd.f32 %v324, %v315
      %327 = vst.msk [vmem:[#allocation2] sm:$0xff] %vm320, %v325
      %328 = vst.msk [vmem:[#allocation2 + $0x8] sm:$0xff] %vm320, %v326
      %v329 = vsub.f32 19.0, %v284
      %v330 = vsub.f32 19.0, %v285
      %v331 = vsub.f32 19.0, %v286
      %v332 = vsub.f32 19.0, %v287
      %v333 = vadd.f32 %v284, -17.0
      %v334 = vadd.f32 %v285, -17.0
      %v335 = vadd.f32 %v286, -17.0
      %v336 = vadd.f32 %v287, -17.0
      %v337 = vmin.f32 %v329, %v333
      %v338 = vmin.f32 %v330, %v334
      %v339 = vmin.f32 %v331, %v335
      %v340 = vmin.f32 %v332, %v336
      %v341 = vmax.f32 %v337, 0.0
      %v342 = vmax.f32 %v338, 0.0
      %v343 = vmax.f32 %v339, 0.0
      %v344 = vmax.f32 %v340, 0.0
      %v345 = vsel %vm259, %v341, 0.0
      %v346 = vsel %vm260, %v342, 0.0
      %v347 = vsel %vm261, %v343, 0.0
      %v348 = vsel %vm262, %v344, 0.0
      %v349 = vadd.f32 %v341, %v342
      %350 = vadd.xlane.f32.xlu0 %v349
      %v351 = vpop.xlane.xlu0 %350
      %v352 = vadd.f32 %v343, %v344
      %353 = vadd.xlane.f32.xlu0 %v352
      %v354 = vpop.xlane.xlu0 %353
      %v355 = vadd.f32 %v345, %v346
      %356 = vadd.xlane.f32.xlu0 %v355
      %v357 = vpop.xlane.xlu0 %356
      %v358 = vadd.f32 %v347, %v348
      %359 = vadd.xlane.f32.xlu0 %v358
      %v360 = vpop.xlane.xlu0 %359
      %v361 = vld [vmem:[#allocation3] sm:$0xff]
      %v362 = vld [vmem:[#allocation3 + $0x8] sm:$0xff]
      %v363 = vadd.f32 %v361, %v351
      %v364 = vadd.f32 %v362, %v354
      %vm365 = vcmask 15368
      %366 = vst.msk [vmem:[#allocation3] sm:$0xff] %vm365, %v363
      %367 = vst.msk [vmem:[#allocation3 + $0x8] sm:$0xff] %vm365, %v364
      %v368 = vld [vmem:[#allocation2] sm:$0xff]
      %v369 = vld [vmem:[#allocation2 + $0x8] sm:$0xff]
      %v370 = vadd.f32 %v368, %v357
      %v371 = vadd.f32 %v369, %v360
      %372 = vst.msk [vmem:[#allocation2] sm:$0xff] %vm365, %v370
      %373 = vst.msk [vmem:[#allocation2 + $0x8] sm:$0xff] %vm365, %v371
      %v374 = vsub.f32 18.0, %v284
      %v375 = vsub.f32 18.0, %v285
      %v376 = vsub.f32 18.0, %v286
      %v377 = vsub.f32 18.0, %v287
      %v378 = vadd.f32 %v284, -16.0
      %v379 = vadd.f32 %v285, -16.0
      %v380 = vadd.f32 %v286, -16.0
      %v381 = vadd.f32 %v287, -16.0
      %v382 = vmin.f32 %v374, %v378
      %v383 = vmin.f32 %v375, %v379
      %v384 = vmin.f32 %v376, %v380
      %v385 = vmin.f32 %v377, %v381
      %v386 = vmax.f32 %v382, 0.0
      %v387 = vmax.f32 %v383, 0.0
      %v388 = vmax.f32 %v384, 0.0
      %v389 = vmax.f32 %v385, 0.0
      %v390 = vsel %vm259, %v386, 0.0
      %v391 = vsel %vm260, %v387, 0.0
      %v392 = vsel %vm261, %v388, 0.0
      %v393 = vsel %vm262, %v389, 0.0
      %v394 = vadd.f32 %v386, %v387
      %395 = vadd.xlane.f32.xlu0 %v394
      %v396 = vpop.xlane.xlu0 %395
      %v397 = vadd.f32 %v388, %v389
      %398 = vadd.xlane.f32.xlu0 %v397
      %v399 = vpop.xlane.xlu0 %398
      %v400 = vadd.f32 %v390, %v391
      %401 = vadd.xlane.f32.xlu0 %v400
      %v402 = vpop.xlane.xlu0 %401
      %v403 = vadd.f32 %v392, %v393
      %404 = vadd.xlane.f32.xlu0 %v403
      %v405 = vpop.xlane.xlu0 %404
      %v406 = vld [vmem:[#allocation3] sm:$0xff]
      %v407 = vld [vmem:[#allocation3 + $0x8] sm:$0xff]
      %v408 = vadd.f32 %v406, %v396
      %v409 = vadd.f32 %v407, %v399
      %vm410 = vcmask 23568
      %411 = vst.msk [vmem:[#allocation3] sm:$0xff] %vm410, %v408
      %412 = vst.msk [vmem:[#allocation3 + $0x8] sm:$0xff] %vm410, %v409
      %v413 = vld [vmem:[#allocation2] sm:$0xff]
      %v414 = vld [vmem:[#allocation2 + $0x8] sm:$0xff]
      %v415 = vadd.f32 %v413, %v402
      %v416 = vadd.f32 %v414, %v405
      %417 = vst.msk [vmem:[#allocation2] sm:$0xff] %vm410, %v415
      %418 = vst.msk [vmem:[#allocation2 + $0x8] sm:$0xff] %vm410, %v416
      %v419 = vsub.f32 17.0, %v284
      %v420 = vsub.f32 17.0, %v285
      %v421 = vsub.f32 17.0, %v286
      %v422 = vsub.f32 17.0, %v287
      %v423 = vadd.f32 %v284, -15.0
      %v424 = vadd.f32 %v285, -15.0
      %v425 = vadd.f32 %v286, -15.0
      %v426 = vadd.f32 %v287, -15.0
      %v427 = vmin.f32 %v419, %v423
      %v428 = vmin.f32 %v420, %v424
      %v429 = vmin.f32 %v421, %v425
      %v430 = vmin.f32 %v422, %v426
      %v431 = vmax.f32 %v427, 0.0
      %v432 = vmax.f32 %v428, 0.0
      %v433 = vmax.f32 %v429, 0.0
      %v434 = vmax.f32 %v430, 0.0
      %v435 = vsel %vm259, %v431, 0.0
      %v436 = vsel %vm260, %v432, 0.0
      %v437 = vsel %vm261, %v433, 0.0
      %v438 = vsel %vm262, %v434, 0.0
      %v439 = vadd.f32 %v431, %v432
      %440 = vadd.xlane.f32.xlu0 %v439
      %v441 = vpop.xlane.xlu0 %440
      %v442 = vadd.f32 %v433, %v434
      %443 = vadd.xlane.f32.xlu0 %v442
      %v444 = vpop.xlane.xlu0 %443
      %v445 = vadd.f32 %v435, %v436
      %446 = vadd.xlane.f32.xlu0 %v445
      %v447 = vpop.xlane.xlu0 %446
      %v448 = vadd.f32 %v437, %v438
      %449 = vadd.xlane.f32.xlu0 %v448
      %v450 = vpop.xlane.xlu0 %449
      %v451 = vld [vmem:[#allocation3] sm:$0xff]
      %v452 = vld [vmem:[#allocation3 + $0x8] sm:$0xff]
      %v453 = vadd.f32 %v451, %v441
      %v454 = vadd.f32 %v452, %v444
      %vm455 = vcmask 31768
      %456 = vst.msk [vmem:[#allocation3] sm:$0xff] %vm455, %v453
      %457 = vst.msk [vmem:[#allocation3 + $0x8] sm:$0xff] %vm455, %v454
      %v458 = vld [vmem:[#allocation2] sm:$0xff]
      %v459 = vld [vmem:[#allocation2 + $0x8] sm:$0xff]
      %v460 = vadd.f32 %v458, %v447
      %v461 = vadd.f32 %v459, %v450
      %462 = vst.msk [vmem:[#allocation2] sm:$0xff] %vm455, %v460
      %463 = vst.msk [vmem:[#allocation2 + $0x8] sm:$0xff] %vm455, %v461
      %v464 = vsub.f32 16.0, %v284
      %v465 = vsub.f32 16.0, %v285
      %v466 = vsub.f32 16.0, %v286
      %v467 = vsub.f32 16.0, %v287
      %v468 = vadd.f32 %v284, -14.0
      %v469 = vadd.f32 %v285, -14.0
      %v470 = vadd.f32 %v286, -14.0
      %v471 = vadd.f32 %v287, -14.0
      %v472 = vmin.f32 %v464, %v468
      %v473 = vmin.f32 %v465, %v469
      %v474 = vmin.f32 %v466, %v470
      %v475 = vmin.f32 %v467, %v471
      %v476 = vmax.f32 %v472, 0.0
      %v477 = vmax.f32 %v473, 0.0
      %v478 = vmax.f32 %v474, 0.0
      %v479 = vmax.f32 %v475, 0.0
      %v480 = vsel %vm259, %v476, 0.0
      %v481 = vsel %vm260, %v477, 0.0
      %v482 = vsel %vm261, %v478, 0.0
      %v483 = vsel %vm262, %v479, 0.0
      %v484 = vadd.f32 %v476, %v477
      %485 = vadd.xlane.f32.xlu0 %v484
      %v486 = vpop.xlane.xlu0 %485
      %v487 = vadd.f32 %v478, %v479
      %488 = vadd.xlane.f32.xlu0 %v487
      %v489 = vpop.xlane.xlu0 %488
      %v490 = vadd.f32 %v480, %v481
      %491 = vadd.xlane.f32.xlu0 %v490
      %v492 = vpop.xlane.xlu0 %491
      %v493 = vadd.f32 %v482, %v483
      %494 = vadd.xlane.f32.xlu0 %v493
      %v495 = vpop.xlane.xlu0 %494
      %v496 = vld [vmem:[#allocation3] sm:$0xff]
      %v497 = vld [vmem:[#allocation3 + $0x8] sm:$0xff]
      %v498 = vadd.f32 %v496, %v486
      %v499 = vadd.f32 %v497, %v489
      %vm500 = vcmask 39968
      %501 = vst.msk [vmem:[#allocation3] sm:$0xff] %vm500, %v498
      %502 = vst.msk [vmem:[#allocation3 + $0x8] sm:$0xff] %vm500, %v499
      %v503 = vld [vmem:[#allocation2] sm:$0xff]
      %v504 = vld [vmem:[#allocation2 + $0x8] sm:$0xff]
      %v505 = vadd.f32 %v503, %v492
      %v506 = vadd.f32 %v504, %v495
      %507 = vst.msk [vmem:[#allocation2] sm:$0xff] %vm500, %v505
      %508 = vst.msk [vmem:[#allocation2 + $0x8] sm:$0xff] %vm500, %v506
      %v509 = vsub.f32 15.0, %v284
      %v510 = vsub.f32 15.0, %v285
      %v511 = vsub.f32 15.0, %v286
      %v512 = vsub.f32 15.0, %v287
      %v513 = vadd.f32 %v284, -13.0
      %v514 = vadd.f32 %v285, -13.0
      %v515 = vadd.f32 %v286, -13.0
      %v516 = vadd.f32 %v287, -13.0
      %v517 = vmin.f32 %v509, %v513
      %v518 = vmin.f32 %v510, %v514
      %v519 = vmin.f32 %v511, %v515
      %v520 = vmin.f32 %v512, %v516
      %v521 = vmax.f32 %v517, 0.0
      %v522 = vmax.f32 %v518, 0.0
      %v523 = vmax.f32 %v519, 0.0
      %v524 = vmax.f32 %v520, 0.0
      %v525 = vsel %vm259, %v521, 0.0
      %v526 = vsel %vm260, %v522, 0.0
      %v527 = vsel %vm261, %v523, 0.0
      %v528 = vsel %vm262, %v524, 0.0
      %v529 = vadd.f32 %v521, %v522
      %530 = vadd.xlane.f32.xlu0 %v529
      %v531 = vpop.xlane.xlu0 %530
      %v532 = vadd.f32 %v523, %v524
      %533 = vadd.xlane.f32.xlu0 %v532
      %v534 = vpop.xlane.xlu0 %533
      %v535 = vadd.f32 %v525, %v526
      %536 = vadd.xlane.f32.xlu0 %v535
      %v537 = vpop.xlane.xlu0 %536
      %v538 = vadd.f32 %v527, %v528
      %539 = vadd.xlane.f32.xlu0 %v538
      %v540 = vpop.xlane.xlu0 %539
      %v541 = vld [vmem:[#allocation3] sm:$0xff]
      %v542 = vld [vmem:[#allocation3 + $0x8] sm:$0xff]
      %v543 = vadd.f32 %v541, %v531
      %v544 = vadd.f32 %v542, %v534
      %vm545 = vcmask 48168
      %546 = vst.msk [vmem:[#allocation3] sm:$0xff] %vm545, %v543
      %547 = vst.msk [vmem:[#allocation3 + $0x8] sm:$0xff] %vm545, %v544
      %v548 = vld [vmem:[#allocation2] sm:$0xff]
      %v549 = vld [vmem:[#allocation2 + $0x8] sm:$0xff]
      %v550 = vadd.f32 %v548, %v537
      %v551 = vadd.f32 %v549, %v540
      %552 = vst.msk [vmem:[#allocation2] sm:$0xff] %vm545, %v550
      %553 = vst.msk [vmem:[#allocation2 + $0x8] sm:$0xff] %vm545, %v551
      %v554 = vsub.f32 14.0, %v284
      %v555 = vsub.f32 14.0, %v285
      %v556 = vsub.f32 14.0, %v286
      %v557 = vsub.f32 14.0, %v287
      %v558 = vadd.f32 %v284, -12.0
      %v559 = vadd.f32 %v285, -12.0
      %v560 = vadd.f32 %v286, -12.0
      %v561 = vadd.f32 %v287, -12.0
      %v562 = vmin.f32 %v554, %v558
      %v563 = vmin.f32 %v555, %v559
      %v564 = vmin.f32 %v556, %v560
      %v565 = vmin.f32 %v557, %v561
      %v566 = vmax.f32 %v562, 0.0
      %v567 = vmax.f32 %v563, 0.0
      %v568 = vmax.f32 %v564, 0.0
      %v569 = vmax.f32 %v565, 0.0
      %v570 = vsel %vm259, %v566, 0.0
      %v571 = vsel %vm260, %v567, 0.0
      %v572 = vsel %vm261, %v568, 0.0
      %v573 = vsel %vm262, %v569, 0.0
      %v574 = vadd.f32 %v566, %v567
      %575 = vadd.xlane.f32.xlu0 %v574
      %v576 = vpop.xlane.xlu0 %575
      %v577 = vadd.f32 %v568, %v569
      %578 = vadd.xlane.f32.xlu0 %v577
      %v579 = vpop.xlane.xlu0 %578
      %v580 = vadd.f32 %v570, %v571
      %581 = vadd.xlane.f32.xlu0 %v580
      %v582 = vpop.xlane.xlu0 %581
      %v583 = vadd.f32 %v572, %v573
      %584 = vadd.xlane.f32.xlu0 %v583
      %v585 = vpop.xlane.xlu0 %584
      %v586 = vld [vmem:[#allocation3] sm:$0xff]
      %v587 = vld [vmem:[#allocation3 + $0x8] sm:$0xff]
      %v588 = vadd.f32 %v586, %v576
      %v589 = vadd.f32 %v587, %v579
      %vm590 = vcmask 56368
      %591 = vst.msk [vmem:[#allocation3] sm:$0xff] %vm590, %v588
      %592 = vst.msk [vmem:[#allocation3 + $0x8] sm:$0xff] %vm590, %v589
      %v593 = vld [vmem:[#allocation2] sm:$0xff]
      %v594 = vld [vmem:[#allocation2 + $0x8] sm:$0xff]
      %v595 = vadd.f32 %v593, %v582
      %v596 = vadd.f32 %v594, %v585
      %597 = vst.msk [vmem:[#allocation2] sm:$0xff] %vm590, %v595
      %598 = vst.msk [vmem:[#allocation2 + $0x8] sm:$0xff] %vm590, %v596
      %v599 = vsub.f32 13.0, %v284
      %v600 = vsub.f32 13.0, %v285
      %v601 = vsub.f32 13.0, %v286
      %v602 = vsub.f32 13.0, %v287
      %v603 = vadd.f32 %v284, -11.0
      %v604 = vadd.f32 %v285, -11.0
      %v605 = vadd.f32 %v286, -11.0
      %v606 = vadd.f32 %v287, -11.0
      %v607 = vmin.f32 %v599, %v603
      %v608 = vmin.f32 %v600, %v604
      %v609 = vmin.f32 %v601, %v605
      %v610 = vmin.f32 %v602, %v606
      %v611 = vmax.f32 %v607, 0.0
      %v612 = vmax.f32 %v608, 0.0
      %v613 = vmax.f32 %v609, 0.0
      %v614 = vmax.f32 %v610, 0.0
      %v615 = vsel %vm259, %v611, 0.0
      %v616 = vsel %vm260, %v612, 0.0
      %v617 = vsel %vm261, %v613, 0.0
      %v618 = vsel %vm262, %v614, 0.0
      %v619 = vadd.f32 %v611, %v612
      %620 = vadd.xlane.f32.xlu0 %v619
      %v621 = vpop.xlane.xlu0 %620
      %v622 = vadd.f32 %v613, %v614
      %623 = vadd.xlane.f32.xlu0 %v622
      %v624 = vpop.xlane.xlu0 %623
      %v625 = vadd.f32 %v615, %v616
      %626 = vadd.xlane.f32.xlu0 %v625
      %v627 = vpop.xlane.xlu0 %626
      %v628 = vadd.f32 %v617, %v618
      %629 = vadd.xlane.f32.xlu0 %v628
      %v630 = vpop.xlane.xlu0 %629
      %v631 = vld [vmem:[#allocation3] sm:$0xff]
      %v632 = vld [vmem:[#allocation3 + $0x8] sm:$0xff]
      %v633 = vadd.f32 %v631, %v621
      %v634 = vadd.f32 %v632, %v624
      %vm635 = vcmask 64568
      %636 = vst.msk [vmem:[#allocation3] sm:$0xff] %vm635, %v633
      %637 = vst.msk [vmem:[#allocation3 + $0x8] sm:$0xff] %vm635, %v634
      %v638 = vld [vmem:[#allocation2] sm:$0xff]
      %v639 = vld [vmem:[#allocation2 + $0x8] sm:$0xff]
      %v640 = vadd.f32 %v638, %v627
      %v641 = vadd.f32 %v639, %v630
      %642 = vst.msk [vmem:[#allocation2] sm:$0xff] %vm635, %v640
      %643 = vst.msk [vmem:[#allocation2 + $0x8] sm:$0xff] %vm635, %v641
      %v644 = vsub.f32 12.0, %v284
      %v645 = vsub.f32 12.0, %v285
      %v646 = vsub.f32 12.0, %v286
      %v647 = vsub.f32 12.0, %v287
      %v648 = vadd.f32 %v284, -10.0
      %v649 = vadd.f32 %v285, -10.0
      %v650 = vadd.f32 %v286, -10.0
      %v651 = vadd.f32 %v287, -10.0
      %v652 = vmin.f32 %v644, %v648
      %v653 = vmin.f32 %v645, %v649
      %v654 = vmin.f32 %v646, %v650
      %v655 = vmin.f32 %v647, %v651
      %v656 = vmax.f32 %v652, 0.0
      %v657 = vmax.f32 %v653, 0.0
      %v658 = vmax.f32 %v654, 0.0
      %v659 = vmax.f32 %v655, 0.0
      %v660 = vsel %vm259, %v656, 0.0
      %v661 = vsel %vm260, %v657, 0.0
      %v662 = vsel %vm261, %v658, 0.0
      %v663 = vsel %vm262, %v659, 0.0
      %v664 = vadd.f32 %v656, %v657
      %665 = vadd.xlane.f32.xlu0 %v664
      %v666 = vpop.xlane.xlu0 %665
      %v667 = vadd.f32 %v658, %v659
      %668 = vadd.xlane.f32.xlu0 %v667
      %v669 = vpop.xlane.xlu0 %668
      %v670 = vadd.f32 %v660, %v661
      %671 = vadd.xlane.f32.xlu0 %v670
      %v672 = vpop.xlane.xlu0 %671
      %v673 = vadd.f32 %v662, %v663
      %674 = vadd.xlane.f32.xlu0 %v673
      %v675 = vpop.xlane.xlu0 %674
      %v676 = vld [vmem:[#allocation3] sm:$0xff]
      %v677 = vld [vmem:[#allocation3 + $0x8] sm:$0xff]
      %v678 = vadd.f32 %v676, %v666
      %v679 = vadd.f32 %v677, %v669
      %vm680 = vcmask 72768
      %681 = vst.msk [vmem:[#allocation3] sm:$0xff] %vm680, %v678
      %682 = vst.msk [vmem:[#allocation3 + $0x8] sm:$0xff] %vm680, %v679
      %v683 = vld [vmem:[#allocation2] sm:$0xff]
      %v684 = vld [vmem:[#allocation2 + $0x8] sm:$0xff]
      %v685 = vadd.f32 %v683, %v672
      %v686 = vadd.f32 %v684, %v675
      %687 = vst.msk [vmem:[#allocation2] sm:$0xff] %vm680, %v685
      %688 = vst.msk [vmem:[#allocation2 + $0x8] sm:$0xff] %vm680, %v686
      %v689 = vsub.f32 11.0, %v284
      %v690 = vsub.f32 11.0, %v285
      %v691 = vsub.f32 11.0, %v286
      %v692 = vsub.f32 11.0, %v287
      %v693 = vadd.f32 %v284, -9.0
      %v694 = vadd.f32 %v285, -9.0
      %v695 = vadd.f32 %v286, -9.0
      %v696 = vadd.f32 %v287, -9.0
      %v697 = vmin.f32 %v689, %v693
      %v698 = vmin.f32 %v690, %v694
      %v699 = vmin.f32 %v691, %v695
      %v700 = vmin.f32 %v692, %v696
      %v701 = vmax.f32 %v697, 0.0
      %v702 = vmax.f32 %v698, 0.0
      %v703 = vmax.f32 %v699, 0.0
      %v704 = vmax.f32 %v700, 0.0
      %v705 = vsel %vm259, %v701, 0.0
      %v706 = vsel %vm260, %v702, 0.0
      %v707 = vsel %vm261, %v703, 0.0
      %v708 = vsel %vm262, %v704, 0.0
      %v709 = vadd.f32 %v701, %v702
      %710 = vadd.xlane.f32.xlu0 %v709
      %v711 = vpop.xlane.xlu0 %710
      %v712 = vadd.f32 %v703, %v704
      %713 = vadd.xlane.f32.xlu0 %v712
      %v714 = vpop.xlane.xlu0 %713
      %v715 = vadd.f32 %v705, %v706
      %716 = vadd.xlane.f32.xlu0 %v715
      %v717 = vpop.xlane.xlu0 %716
      %v718 = vadd.f32 %v707, %v708
      %719 = vadd.xlane.f32.xlu0 %v718
      %v720 = vpop.xlane.xlu0 %719
      %v721 = vld [vmem:[#allocation3] sm:$0xff]
      %v722 = vld [vmem:[#allocation3 + $0x8] sm:$0xff]
      %v723 = vadd.f32 %v721, %v711
      %v724 = vadd.f32 %v722, %v714
      %vm725 = vcmask 80968
      %726 = vst.msk [vmem:[#allocation3] sm:$0xff] %vm725, %v723
      %727 = vst.msk [vmem:[#allocation3 + $0x8] sm:$0xff] %vm725, %v724
      %v728 = vld [vmem:[#allocation2] sm:$0xff]
      %v729 = vld [vmem:[#allocation2 + $0x8] sm:$0xff]
      %v730 = vadd.f32 %v728, %v717
      %v731 = vadd.f32 %v729, %v720
      %732 = vst.msk [vmem:[#allocation2] sm:$0xff] %vm725, %v730
      %733 = vst.msk [vmem:[#allocation2 + $0x8] sm:$0xff] %vm725, %v731
      %v734 = vsub.f32 10.0, %v284
      %v735 = vsub.f32 10.0, %v285
      %v736 = vsub.f32 10.0, %v286
      %v737 = vsub.f32 10.0, %v287
      %v738 = vadd.f32 %v284, -8.0
      %v739 = vadd.f32 %v285, -8.0
      %v740 = vadd.f32 %v286, -8.0
      %v741 = vadd.f32 %v287, -8.0
      %v742 = vmin.f32 %v734, %v738
      %v743 = vmin.f32 %v735, %v739
      %v744 = vmin.f32 %v736, %v740
      %v745 = vmin.f32 %v737, %v741
      %v746 = vmax.f32 %v742, 0.0
      %v747 = vmax.f32 %v743, 0.0
      %v748 = vmax.f32 %v744, 0.0
      %v749 = vmax.f32 %v745, 0.0
      %v750 = vsel %vm259, %v746, 0.0
      %v751 = vsel %vm260, %v747, 0.0
      %v752 = vsel %vm261, %v748, 0.0
      %v753 = vsel %vm262, %v749, 0.0
      %v754 = vadd.f32 %v746, %v747
      %755 = vadd.xlane.f32.xlu0 %v754
      %v756 = vpop.xlane.xlu0 %755
      %v757 = vadd.f32 %v748, %v749
      %758 = vadd.xlane.f32.xlu0 %v757
      %v759 = vpop.xlane.xlu0 %758
      %v760 = vadd.f32 %v750, %v751
      %761 = vadd.xlane.f32.xlu0 %v760
      %v762 = vpop.xlane.xlu0 %761
      %v763 = vadd.f32 %v752, %v753
      %764 = vadd.xlane.f32.xlu0 %v763
      %v765 = vpop.xlane.xlu0 %764
      %v766 = vld [vmem:[#allocation3] sm:$0xff]
      %v767 = vld [vmem:[#allocation3 + $0x8] sm:$0xff]
      %v768 = vadd.f32 %v766, %v756
      %v769 = vadd.f32 %v767, %v759
      %vm770 = vcmask 89168
      %771 = vst.msk [vmem:[#allocation3] sm:$0xff] %vm770, %v768
      %772 = vst.msk [vmem:[#allocation3 + $0x8] sm:$0xff] %vm770, %v769
      %v773 = vld [vmem:[#allocation2] sm:$0xff]
      %v774 = vld [vmem:[#allocation2 + $0x8] sm:$0xff]
      %v775 = vadd.f32 %v773, %v762
      %v776 = vadd.f32 %v774, %v765
      %777 = vst.msk [vmem:[#allocation2] sm:$0xff] %vm770, %v775
      %778 = vst.msk [vmem:[#allocation2 + $0x8] sm:$0xff] %vm770, %v776
      %v779 = vsub.f32 9.0, %v284
      %v780 = vsub.f32 9.0, %v285
      %v781 = vsub.f32 9.0, %v286
      %v782 = vsub.f32 9.0, %v287
      %v783 = vadd.f32 %v284, -7.0
      %v784 = vadd.f32 %v285, -7.0
      %v785 = vadd.f32 %v286, -7.0
      %v786 = vadd.f32 %v287, -7.0
      %v787 = vmin.f32 %v779, %v783
      %v788 = vmin.f32 %v780, %v784
      %v789 = vmin.f32 %v781, %v785
      %v790 = vmin.f32 %v782, %v786
      %v791 = vmax.f32 %v787, 0.0
      %v792 = vmax.f32 %v788, 0.0
      %v793 = vmax.f32 %v789, 0.0
      %v794 = vmax.f32 %v790, 0.0
      %v795 = vsel %vm259, %v791, 0.0
      %v796 = vsel %vm260, %v792, 0.0
      %v797 = vsel %vm261, %v793, 0.0
      %v798 = vsel %vm262, %v794, 0.0
      %v799 = vadd.f32 %v791, %v792
      %800 = vadd.xlane.f32.xlu0 %v799
      %v801 = vpop.xlane.xlu0 %800
      %v802 = vadd.f32 %v793, %v794
      %803 = vadd.xlane.f32.xlu0 %v802
      %v804 = vpop.xlane.xlu0 %803
      %v805 = vadd.f32 %v795, %v796
      %806 = vadd.xlane.f32.xlu0 %v805
      %v807 = vpop.xlane.xlu0 %806
      %v808 = vadd.f32 %v797, %v798
      %809 = vadd.xlane.f32.xlu0 %v808
      %v810 = vpop.xlane.xlu0 %809
      %v811 = vld [vmem:[#allocation3] sm:$0xff]
      %v812 = vld [vmem:[#allocation3 + $0x8] sm:$0xff]
      %v813 = vadd.f32 %v811, %v801
      %v814 = vadd.f32 %v812, %v804
      %vm815 = vcmask 97368
      %816 = vst.msk [vmem:[#allocation3] sm:$0xff] %vm815, %v813
      %817 = vst.msk [vmem:[#allocation3 + $0x8] sm:$0xff] %vm815, %v814
      %v818 = vld [vmem:[#allocation2] sm:$0xff]
      %v819 = vld [vmem:[#allocation2 + $0x8] sm:$0xff]
      %v820 = vadd.f32 %v818, %v807
      %v821 = vadd.f32 %v819, %v810
      %822 = vst.msk [vmem:[#allocation2] sm:$0xff] %vm815, %v820
      %823 = vst.msk [vmem:[#allocation2 + $0x8] sm:$0xff] %vm815, %v821
      %v824 = vsub.f32 8.0, %v284
      %v825 = vsub.f32 8.0, %v285
      %v826 = vsub.f32 8.0, %v286
      %v827 = vsub.f32 8.0, %v287
      %v828 = vadd.f32 %v284, -6.0
      %v829 = vadd.f32 %v285, -6.0
      %v830 = vadd.f32 %v286, -6.0
      %v831 = vadd.f32 %v287, -6.0
      %v832 = vmin.f32 %v824, %v828
      %v833 = vmin.f32 %v825, %v829
      %v834 = vmin.f32 %v826, %v830
      %v835 = vmin.f32 %v827, %v831
      %v836 = vmax.f32 %v832, 0.0
      %v837 = vmax.f32 %v833, 0.0
      %v838 = vmax.f32 %v834, 0.0
      %v839 = vmax.f32 %v835, 0.0
      %v840 = vsel %vm259, %v836, 0.0
      %v841 = vsel %vm260, %v837, 0.0
      %v842 = vsel %vm261, %v838, 0.0
      %v843 = vsel %vm262, %v839, 0.0
      %v844 = vadd.f32 %v836, %v837
      %845 = vadd.xlane.f32.xlu0 %v844
      %v846 = vpop.xlane.xlu0 %845
      %v847 = vadd.f32 %v838, %v839
      %848 = vadd.xlane.f32.xlu0 %v847
      %v849 = vpop.xlane.xlu0 %848
      %v850 = vadd.f32 %v840, %v841
      %851 = vadd.xlane.f32.xlu0 %v850
      %v852 = vpop.xlane.xlu0 %851
      %v853 = vadd.f32 %v842, %v843
      %854 = vadd.xlane.f32.xlu0 %v853
      %v855 = vpop.xlane.xlu0 %854
      %v856 = vld [vmem:[#allocation3] sm:$0xff]
      %v857 = vld [vmem:[#allocation3 + $0x8] sm:$0xff]
      %v858 = vadd.f32 %v856, %v846
      %v859 = vadd.f32 %v857, %v849
      %vm860 = vcmask 105568
      %861 = vst.msk [vmem:[#allocation3] sm:$0xff] %vm860, %v858
      %862 = vst.msk [vmem:[#allocation3 + $0x8] sm:$0xff] %vm860, %v859
      %v863 = vld [vmem:[#allocation2] sm:$0xff]
      %v864 = vld [vmem:[#allocation2 + $0x8] sm:$0xff]
      %v865 = vadd.f32 %v863, %v852
      %v866 = vadd.f32 %v864, %v855
      %867 = vst.msk [vmem:[#allocation2] sm:$0xff] %vm860, %v865
      %868 = vst.msk [vmem:[#allocation2 + $0x8] sm:$0xff] %vm860, %v866
      %v869 = vsub.f32 7.0, %v284
      %v870 = vsub.f32 7.0, %v285
      %v871 = vsub.f32 7.0, %v286
      %v872 = vsub.f32 7.0, %v287
      %v873 = vadd.f32 %v284, -5.0
      %v874 = vadd.f32 %v285, -5.0
      %v875 = vadd.f32 %v286, -5.0
      %v876 = vadd.f32 %v287, -5.0
      %v877 = vmin.f32 %v869, %v873
      %v878 = vmin.f32 %v870, %v874
      %v879 = vmin.f32 %v871, %v875
      %v880 = vmin.f32 %v872, %v876
      %v881 = vmax.f32 %v877, 0.0
      %v882 = vmax.f32 %v878, 0.0
      %v883 = vmax.f32 %v879, 0.0
      %v884 = vmax.f32 %v880, 0.0
      %v885 = vsel %vm259, %v881, 0.0
      %v886 = vsel %vm260, %v882, 0.0
      %v887 = vsel %vm261, %v883, 0.0
      %v888 = vsel %vm262, %v884, 0.0
      %v889 = vadd.f32 %v881, %v882
      %890 = vadd.xlane.f32.xlu0 %v889
      %v891 = vpop.xlane.xlu0 %890
      %v892 = vadd.f32 %v883, %v884
      %893 = vadd.xlane.f32.xlu0 %v892
      %v894 = vpop.xlane.xlu0 %893
      %v895 = vadd.f32 %v885, %v886
      %896 = vadd.xlane.f32.xlu0 %v895
      %v897 = vpop.xlane.xlu0 %896
      %v898 = vadd.f32 %v887, %v888
      %899 = vadd.xlane.f32.xlu0 %v898
      %v900 = vpop.xlane.xlu0 %899
      %v901 = vld [vmem:[#allocation3] sm:$0xff]
      %v902 = vld [vmem:[#allocation3 + $0x8] sm:$0xff]
      %v903 = vadd.f32 %v901, %v891
      %v904 = vadd.f32 %v902, %v894
      %vm905 = vcmask 113768
      %906 = vst.msk [vmem:[#allocation3] sm:$0xff] %vm905, %v903
      %907 = vst.msk [vmem:[#allocation3 + $0x8] sm:$0xff] %vm905, %v904
      %v908 = vld [vmem:[#allocation2] sm:$0xff]
      %v909 = vld [vmem:[#allocation2 + $0x8] sm:$0xff]
      %v910 = vadd.f32 %v908, %v897
      %v911 = vadd.f32 %v909, %v900
      %912 = vst.msk [vmem:[#allocation2] sm:$0xff] %vm905, %v910
      %913 = vst.msk [vmem:[#allocation2 + $0x8] sm:$0xff] %vm905, %v911
      %v914 = vsub.f32 6.0, %v284
      %v915 = vsub.f32 6.0, %v285
      %v916 = vsub.f32 6.0, %v286
      %v917 = vsub.f32 6.0, %v287
      %v918 = vadd.f32 %v284, -4.0
      %v919 = vadd.f32 %v285, -4.0
      %v920 = vadd.f32 %v286, -4.0
      %v921 = vadd.f32 %v287, -4.0
      %v922 = vmin.f32 %v914, %v918
      %v923 = vmin.f32 %v915, %v919
      %v924 = vmin.f32 %v916, %v920
      %v925 = vmin.f32 %v917, %v921
      %v926 = vmax.f32 %v922, 0.0
      %v927 = vmax.f32 %v923, 0.0
      %v928 = vmax.f32 %v924, 0.0
      %v929 = vmax.f32 %v925, 0.0
      %v930 = vsel %vm259, %v926, 0.0
      %v931 = vsel %vm260, %v927, 0.0
      %v932 = vsel %vm261, %v928, 0.0
      %v933 = vsel %vm262, %v929, 0.0
      %v934 = vadd.f32 %v926, %v927
      %935 = vadd.xlane.f32.xlu0 %v934
      %v936 = vpop.xlane.xlu0 %935
      %v937 = vadd.f32 %v928, %v929
      %938 = vadd.xlane.f32.xlu0 %v937
      %v939 = vpop.xlane.xlu0 %938
      %v940 = vadd.f32 %v930, %v931
      %941 = vadd.xlane.f32.xlu0 %v940
      %v942 = vpop.xlane.xlu0 %941
      %v943 = vadd.f32 %v932, %v933
      %944 = vadd.xlane.f32.xlu0 %v943
      %v945 = vpop.xlane.xlu0 %944
      %v946 = vld [vmem:[#allocation3] sm:$0xff]
      %v947 = vld [vmem:[#allocation3 + $0x8] sm:$0xff]
      %v948 = vadd.f32 %v946, %v936
      %v949 = vadd.f32 %v947, %v939
      %vm950 = vcmask 121968
      %951 = vst.msk [vmem:[#allocation3] sm:$0xff] %vm950, %v948
      %952 = vst.msk [vmem:[#allocation3 + $0x8] sm:$0xff] %vm950, %v949
      %v953 = vld [vmem:[#allocation2] sm:$0xff]
      %v954 = vld [vmem:[#allocation2 + $0x8] sm:$0xff]
      %v955 = vadd.f32 %v953, %v942
      %v956 = vadd.f32 %v954, %v945
      %957 = vst.msk [vmem:[#allocation2] sm:$0xff] %vm950, %v955
      %958 = vst.msk [vmem:[#allocation2 + $0x8] sm:$0xff] %vm950, %v956
      %v959 = vsub.f32 5.0, %v284
      %v960 = vsub.f32 5.0, %v285
      %v961 = vsub.f32 5.0, %v286
      %v962 = vsub.f32 5.0, %v287
      %v963 = vadd.f32 %v284, -3.0
      %v964 = vadd.f32 %v285, -3.0
      %v965 = vadd.f32 %v286, -3.0
      %v966 = vadd.f32 %v287, -3.0
      %v967 = vmin.f32 %v959, %v963
      %v968 = vmin.f32 %v960, %v964
      %v969 = vmin.f32 %v961, %v965
      %v970 = vmin.f32 %v962, %v966
      %v971 = vmax.f32 %v967, 0.0
      %v972 = vmax.f32 %v968, 0.0
      %v973 = vmax.f32 %v969, 0.0
      %v974 = vmax.f32 %v970, 0.0
      %v975 = vsel %vm259, %v971, 0.0
      %v976 = vsel %vm260, %v972, 0.0
      %v977 = vsel %vm261, %v973, 0.0
      %v978 = vsel %vm262, %v974, 0.0
      %v979 = vadd.f32 %v971, %v972
      %980 = vadd.xlane.f32.xlu0 %v979
      %v981 = vpop.xlane.xlu0 %980
      %v982 = vadd.f32 %v973, %v974
      %983 = vadd.xlane.f32.xlu0 %v982
      %v984 = vpop.xlane.xlu0 %983
      %v985 = vadd.f32 %v975, %v976
      %986 = vadd.xlane.f32.xlu0 %v985
      %v987 = vpop.xlane.xlu0 %986
      %v988 = vadd.f32 %v977, %v978
      %989 = vadd.xlane.f32.xlu0 %v988
      %v990 = vpop.xlane.xlu0 %989
      %v991 = vld [vmem:[#allocation3] sm:$0xff]
      %v992 = vld [vmem:[#allocation3 + $0x8] sm:$0xff]
      %v993 = vadd.f32 %v991, %v981
      %v994 = vadd.f32 %v992, %v984
      %vm995 = vcmask 130168
      %996 = vst.msk [vmem:[#allocation3] sm:$0xff] %vm995, %v993
      %997 = vst.msk [vmem:[#allocation3 + $0x8] sm:$0xff] %vm995, %v994
      %v998 = vld [vmem:[#allocation2] sm:$0xff]
      %v999 = vld [vmem:[#allocation2 + $0x8] sm:$0xff]
      %v1000 = vadd.f32 %v998, %v987
      %v1001 = vadd.f32 %v999, %v990
      %1002 = vst.msk [vmem:[#allocation2] sm:$0xff] %vm995, %v1000
      %1003 = vst.msk [vmem:[#allocation2 + $0x8] sm:$0xff] %vm995, %v1001
      %v1004 = vsub.f32 4.0, %v284
      %v1005 = vsub.f32 4.0, %v285
      %v1006 = vsub.f32 4.0, %v286
      %v1007 = vsub.f32 4.0, %v287
      %v1008 = vadd.f32 %v284, -2.0
      %v1009 = vadd.f32 %v285, -2.0
      %v1010 = vadd.f32 %v286, -2.0
      %v1011 = vadd.f32 %v287, -2.0
      %v1012 = vmin.f32 %v1004, %v1008
      %v1013 = vmin.f32 %v1005, %v1009
      %v1014 = vmin.f32 %v1006, %v1010
      %v1015 = vmin.f32 %v1007, %v1011
      %v1016 = vmax.f32 %v1012, 0.0
      %v1017 = vmax.f32 %v1013, 0.0
      %v1018 = vmax.f32 %v1014, 0.0
      %v1019 = vmax.f32 %v1015, 0.0
      %v1020 = vsel %vm259, %v1016, 0.0
      %v1021 = vsel %vm260, %v1017, 0.0
      %v1022 = vsel %vm261, %v1018, 0.0
      %v1023 = vsel %vm262, %v1019, 0.0
      %v1024 = vadd.f32 %v1016, %v1017
      %1025 = vadd.xlane.f32.xlu0 %v1024
      %v1026 = vpop.xlane.xlu0 %1025
      %v1027 = vadd.f32 %v1018, %v1019
      %1028 = vadd.xlane.f32.xlu0 %v1027
      %v1029 = vpop.xlane.xlu0 %1028
      %v1030 = vadd.f32 %v1020, %v1021
      %1031 = vadd.xlane.f32.xlu0 %v1030
      %v1032 = vpop.xlane.xlu0 %1031
      %v1033 = vadd.f32 %v1022, %v1023
      %1034 = vadd.xlane.f32.xlu0 %v1033
      %v1035 = vpop.xlane.xlu0 %1034
      %v1036 = vld [vmem:[#allocation3] sm:$0xff]
      %v1037 = vld [vmem:[#allocation3 + $0x8] sm:$0xff]
      %v1038 = vadd.f32 %v1036, %v1026
      %v1039 = vadd.f32 %v1037, %v1029
      %vm1040 = vcmask 138368
      %1041 = vst.msk [vmem:[#allocation3] sm:$0xff] %vm1040, %v1038
      %1042 = vst.msk [vmem:[#allocation3 + $0x8] sm:$0xff] %vm1040, %v1039
      %v1043 = vld [vmem:[#allocation2] sm:$0xff]
      %v1044 = vld [vmem:[#allocation2 + $0x8] sm:$0xff]
      %v1045 = vadd.f32 %v1043, %v1032
      %v1046 = vadd.f32 %v1044, %v1035
      %1047 = vst.msk [vmem:[#allocation2] sm:$0xff] %vm1040, %v1045
      %1048 = vst.msk [vmem:[#allocation2 + $0x8] sm:$0xff] %vm1040, %v1046
      %v1049 = vsub.f32 3.0, %v284
      %v1050 = vsub.f32 3.0, %v285
      %v1051 = vsub.f32 3.0, %v286
      %v1052 = vsub.f32 3.0, %v287
      %v1053 = vadd.f32 %v284, -1.0
      %v1054 = vadd.f32 %v285, -1.0
      %v1055 = vadd.f32 %v286, -1.0
      %v1056 = vadd.f32 %v287, -1.0
      %v1057 = vmin.f32 %v1049, %v1053
      %v1058 = vmin.f32 %v1050, %v1054
      %v1059 = vmin.f32 %v1051, %v1055
      %v1060 = vmin.f32 %v1052, %v1056
      %v1061 = vmax.f32 %v1057, 0.0
      %v1062 = vmax.f32 %v1058, 0.0
      %v1063 = vmax.f32 %v1059, 0.0
      %v1064 = vmax.f32 %v1060, 0.0
      %v1065 = vsel %vm259, %v1061, 0.0
      %v1066 = vsel %vm260, %v1062, 0.0
      %v1067 = vsel %vm261, %v1063, 0.0
      %v1068 = vsel %vm262, %v1064, 0.0
      %v1069 = vadd.f32 %v1061, %v1062
      %1070 = vadd.xlane.f32.xlu0 %v1069
      %v1071 = vpop.xlane.xlu0 %1070
      %v1072 = vadd.f32 %v1063, %v1064
      %1073 = vadd.xlane.f32.xlu0 %v1072
      %v1074 = vpop.xlane.xlu0 %1073
      %v1075 = vadd.f32 %v1065, %v1066
      %1076 = vadd.xlane.f32.xlu0 %v1075
      %v1077 = vpop.xlane.xlu0 %1076
      %v1078 = vadd.f32 %v1067, %v1068
      %1079 = vadd.xlane.f32.xlu0 %v1078
      %v1080 = vpop.xlane.xlu0 %1079
      %v1081 = vld [vmem:[#allocation3] sm:$0xff]
      %v1082 = vld [vmem:[#allocation3 + $0x8] sm:$0xff]
      %v1083 = vadd.f32 %v1081, %v1071
      %v1084 = vadd.f32 %v1082, %v1074
      %vm1085 = vcmask 146568
      %1086 = vst.msk [vmem:[#allocation3] sm:$0xff] %vm1085, %v1083
      %1087 = vst.msk [vmem:[#allocation3 + $0x8] sm:$0xff] %vm1085, %v1084
      %v1088 = vld [vmem:[#allocation2] sm:$0xff]
      %v1089 = vld [vmem:[#allocation2 + $0x8] sm:$0xff]
      %v1090 = vadd.f32 %v1088, %v1077
      %v1091 = vadd.f32 %v1089, %v1080
      %1092 = vst.msk [vmem:[#allocation2] sm:$0xff] %vm1085, %v1090
      %1093 = vst.msk [vmem:[#allocation2 + $0x8] sm:$0xff] %vm1085, %v1091
      %v1094 = vsub.f32 2.0, %v284
      %v1095 = vsub.f32 2.0, %v285
      %v1096 = vsub.f32 2.0, %v286
      %v1097 = vsub.f32 2.0, %v287
      %v1098 = vadd.f32 %v284, 0.0
      %v1099 = vadd.f32 %v285, 0.0
      %v1100 = vadd.f32 %v286, 0.0
      %v1101 = vadd.f32 %v287, 0.0
      %v1102 = vmin.f32 %v1094, %v1098
      %v1103 = vmin.f32 %v1095, %v1099
      %v1104 = vmin.f32 %v1096, %v1100
      %v1105 = vmin.f32 %v1097, %v1101
      %v1106 = vmax.f32 %v1102, 0.0
      %v1107 = vmax.f32 %v1103, 0.0
      %v1108 = vmax.f32 %v1104, 0.0
      %v1109 = vmax.f32 %v1105, 0.0
      %v1110 = vsel %vm259, %v1106, 0.0
      %v1111 = vsel %vm260, %v1107, 0.0
      %v1112 = vsel %vm261, %v1108, 0.0
      %v1113 = vsel %vm262, %v1109, 0.0
      %v1114 = vadd.f32 %v1106, %v1107
      %1115 = vadd.xlane.f32.xlu0 %v1114
      %v1116 = vpop.xlane.xlu0 %1115
      %v1117 = vadd.f32 %v1108, %v1109
      %1118 = vadd.xlane.f32.xlu0 %v1117
      %v1119 = vpop.xlane.xlu0 %1118
      %v1120 = vadd.f32 %v1110, %v1111
      %1121 = vadd.xlane.f32.xlu0 %v1120
      %v1122 = vpop.xlane.xlu0 %1121
      %v1123 = vadd.f32 %v1112, %v1113
      %1124 = vadd.xlane.f32.xlu0 %v1123
      %v1125 = vpop.xlane.xlu0 %1124
      %v1126 = vld [vmem:[#allocation3] sm:$0xff]
      %v1127 = vld [vmem:[#allocation3 + $0x8] sm:$0xff]
      %v1128 = vadd.f32 %v1126, %v1116
      %v1129 = vadd.f32 %v1127, %v1119
      %vm1130 = vcmask 154768
      %1131 = vst.msk [vmem:[#allocation3] sm:$0xff] %vm1130, %v1128
      %1132 = vst.msk [vmem:[#allocation3 + $0x8] sm:$0xff] %vm1130, %v1129
      %v1133 = vld [vmem:[#allocation2] sm:$0xff]
      %v1134 = vld [vmem:[#allocation2 + $0x8] sm:$0xff]
      %v1135 = vadd.f32 %v1133, %v1122
      %v1136 = vadd.f32 %v1134, %v1125
      %1137 = vst.msk [vmem:[#allocation2] sm:$0xff] %vm1130, %v1135
      %1138 = vst.msk [vmem:[#allocation2 + $0x8] sm:$0xff] %vm1130, %v1136
      %v1139 = vsub.f32 1.0, %v284
      %v1140 = vsub.f32 1.0, %v285
      %v1141 = vsub.f32 1.0, %v286
      %v1142 = vsub.f32 1.0, %v287
      %v1143 = vmin.f32 %v1139, 1.0
      %v1144 = vmin.f32 %v1140, 1.0
      %v1145 = vmin.f32 %v1141, 1.0
      %v1146 = vmin.f32 %v1142, 1.0
      %v1147 = vmax.f32 %v1143, 0.0
      %v1148 = vmax.f32 %v1144, 0.0
      %v1149 = vmax.f32 %v1145, 0.0
      %v1150 = vmax.f32 %v1146, 0.0
      %v1151 = vsel %vm259, %v1147, 0.0
      %v1152 = vsel %vm260, %v1148, 0.0
      %v1153 = vsel %vm261, %v1149, 0.0
      %v1154 = vsel %vm262, %v1150, 0.0
      %v1155 = vadd.f32 %v1147, %v1148
      %1156 = vadd.xlane.f32.xlu0 %v1155
      %v1157 = vpop.xlane.xlu0 %1156
      %v1158 = vadd.f32 %v1149, %v1150
      %1159 = vadd.xlane.f32.xlu0 %v1158
      %v1160 = vpop.xlane.xlu0 %1159
      %v1161 = vadd.f32 %v1151, %v1152
      %1162 = vadd.xlane.f32.xlu0 %v1161
      %v1163 = vpop.xlane.xlu0 %1162
      %v1164 = vadd.f32 %v1153, %v1154
      %1165 = vadd.xlane.f32.xlu0 %v1164
      %v1166 = vpop.xlane.xlu0 %1165
      %v1167 = vld [vmem:[#allocation3] sm:$0xff]
      %v1168 = vld [vmem:[#allocation3 + $0x8] sm:$0xff]
      %v1169 = vadd.f32 %v1167, %v1157
      %v1170 = vadd.f32 %v1168, %v1160
      %vm1171 = vcmask 162968
      %1172 = vst.msk [vmem:[#allocation3] sm:$0xff] %vm1171, %v1169
      %1173 = vst.msk [vmem:[#allocation3 + $0x8] sm:$0xff] %vm1171, %v1170
      %v1174 = vld [vmem:[#allocation2] sm:$0xff]
      %v1175 = vld [vmem:[#allocation2 + $0x8] sm:$0xff]
      %v1176 = vadd.f32 %v1174, %v1163
      %v1177 = vadd.f32 %v1175, %v1166
      %1178 = vst.msk [vmem:[#allocation2] sm:$0xff] %vm1171, %v1176
      %1179 = vst.msk [vmem:[#allocation2 + $0x8] sm:$0xff] %vm1171, %v1177
      %v1180 = vld [vmem:[%s211 + $0x2] sm:$0x3]
      %v1181 = vld [vmem:[%s216 + $0x2] sm:$0x3]
      %v1183 = vlaneseq
      %v1184 = vshrl.u32 %v1183, 7
      %v1185 = vsub.s32 0, %v1184
      %v1186 = vrot.slane %v1181, %v1185
      %v1187 = vlaneseq
      %v1188 = vshrl.u32 %v1187, 7
      %v1189 = vsub.s32 1, %v1188
      %v1190 = vrot.slane %v1181, %v1189
      %vm1193 = vcmp.eq.f32.partialorder %v241, %v1186
      %vm1194 = vcmp.eq.f32.partialorder %v241, %v1190
      %vm1195 = vcmp.eq.f32.partialorder %v246, %v1186
      %vm1196 = vcmp.eq.f32.partialorder %v246, %v1190
      %v1198 = vlaneseq
      %v1199 = vshrl.u32 %v1198, 7
      %v1200 = vsub.s32 0, %v1199
      %v1201 = vrot.slane %v1180, %v1200
      %v1202 = vlaneseq
      %v1203 = vshrl.u32 %v1202, 7
      %v1204 = vsub.s32 1, %v1203
      %v1205 = vrot.slane %v1180, %v1204
      %v1208 = vmul.f32 %v266, %v1201
      %v1209 = vmul.f32 %v266, %v1205
      %v1210 = vmul.f32 %v271, %v1201
      %v1211 = vmul.f32 %v271, %v1205
      %v1212 = vadd.f32 %v1208, -18.0
      %v1213 = vadd.f32 %v1209, -18.0
      %v1214 = vadd.f32 %v1210, -18.0
      %v1215 = vadd.f32 %v1211, -18.0
      %v1216 = vmin.f32 %v1212, 1.0
      %v1217 = vmin.f32 %v1213, 1.0
      %v1218 = vmin.f32 %v1214, 1.0
      %v1219 = vmin.f32 %v1215, 1.0
      %v1220 = vmax.f32 %v1216, 0.0
      %v1221 = vmax.f32 %v1217, 0.0
      %v1222 = vmax.f32 %v1218, 0.0
      %v1223 = vmax.f32 %v1219, 0.0
      %v1224 = vsel %vm1193, %v1220, 0.0
      %v1225 = vsel %vm1194, %v1221, 0.0
      %v1226 = vsel %vm1195, %v1222, 0.0
      %v1227 = vsel %vm1196, %v1223, 0.0
      %v1228 = vadd.f32 %v1220, %v1221
      %1229 = vadd.xlane.f32.xlu0 %v1228
      %v1230 = vpop.xlane.xlu0 %1229
      %v1231 = vadd.f32 %v1222, %v1223
      %1232 = vadd.xlane.f32.xlu0 %v1231
      %v1233 = vpop.xlane.xlu0 %1232
      %v1234 = vadd.f32 %v1224, %v1225
      %1235 = vadd.xlane.f32.xlu0 %v1234
      %v1236 = vpop.xlane.xlu0 %1235
      %v1237 = vadd.f32 %v1226, %v1227
      %1238 = vadd.xlane.f32.xlu0 %v1237
      %v1239 = vpop.xlane.xlu0 %1238
      %v1240 = vld [vmem:[#allocation3] sm:$0xff]
      %v1241 = vld [vmem:[#allocation3 + $0x8] sm:$0xff]
      %v1242 = vadd.f32 %v1240, %v1230
      %v1243 = vadd.f32 %v1241, %v1233
      %1244 = vst.msk [vmem:[#allocation3] sm:$0xff] %vm320, %v1242
      %1245 = vst.msk [vmem:[#allocation3 + $0x8] sm:$0xff] %vm320, %v1243
      %v1246 = vld [vmem:[#allocation2] sm:$0xff]
      %v1247 = vld [vmem:[#allocation2 + $0x8] sm:$0xff]
      %v1248 = vadd.f32 %v1246, %v1236
      %v1249 = vadd.f32 %v1247, %v1239
      %1250 = vst.msk [vmem:[#allocation2] sm:$0xff] %vm320, %v1248
      %1251 = vst.msk [vmem:[#allocation2 + $0x8] sm:$0xff] %vm320, %v1249
      %v1252 = vsub.f32 19.0, %v1208
      %v1253 = vsub.f32 19.0, %v1209
      %v1254 = vsub.f32 19.0, %v1210
      %v1255 = vsub.f32 19.0, %v1211
      %v1256 = vadd.f32 %v1208, -17.0
      %v1257 = vadd.f32 %v1209, -17.0
      %v1258 = vadd.f32 %v1210, -17.0
      %v1259 = vadd.f32 %v1211, -17.0
      %v1260 = vmin.f32 %v1252, %v1256
      %v1261 = vmin.f32 %v1253, %v1257
      %v1262 = vmin.f32 %v1254, %v1258
      %v1263 = vmin.f32 %v1255, %v1259
      %v1264 = vmax.f32 %v1260, 0.0
      %v1265 = vmax.f32 %v1261, 0.0
      %v1266 = vmax.f32 %v1262, 0.0
      %v1267 = vmax.f32 %v1263, 0.0
      %v1268 = vsel %vm1193, %v1264, 0.0
      %v1269 = vsel %vm1194, %v1265, 0.0
      %v1270 = vsel %vm1195, %v1266, 0.0
      %v1271 = vsel %vm1196, %v1267, 0.0
      %v1272 = vadd.f32 %v1264, %v1265
      %1273 = vadd.xlane.f32.xlu0 %v1272
      %v1274 = vpop.xlane.xlu0 %1273
      %v1275 = vadd.f32 %v1266, %v1267
      %1276 = vadd.xlane.f32.xlu0 %v1275
      %v1277 = vpop.xlane.xlu0 %1276
      %v1278 = vadd.f32 %v1268, %v1269
      %1279 = vadd.xlane.f32.xlu0 %v1278
      %v1280 = vpop.xlane.xlu0 %1279
      %v1281 = vadd.f32 %v1270, %v1271
      %1282 = vadd.xlane.f32.xlu0 %v1281
      %v1283 = vpop.xlane.xlu0 %1282
      %v1284 = vld [vmem:[#allocation3] sm:$0xff]
      %v1285 = vld [vmem:[#allocation3 + $0x8] sm:$0xff]
      %v1286 = vadd.f32 %v1284, %v1274
      %v1287 = vadd.f32 %v1285, %v1277
      %1288 = vst.msk [vmem:[#allocation3] sm:$0xff] %vm365, %v1286
      %1289 = vst.msk [vmem:[#allocation3 + $0x8] sm:$0xff] %vm365, %v1287
      %v1290 = vld [vmem:[#allocation2] sm:$0xff]
      %v1291 = vld [vmem:[#allocation2 + $0x8] sm:$0xff]
      %v1292 = vadd.f32 %v1290, %v1280
      %v1293 = vadd.f32 %v1291, %v1283
      %1294 = vst.msk [vmem:[#allocation2] sm:$0xff] %vm365, %v1292
      %1295 = vst.msk [vmem:[#allocation2 + $0x8] sm:$0xff] %vm365, %v1293
      %v1296 = vsub.f32 18.0, %v1208
      %v1297 = vsub.f32 18.0, %v1209
      %v1298 = vsub.f32 18.0, %v1210
      %v1299 = vsub.f32 18.0, %v1211
      %v1300 = vadd.f32 %v1208, -16.0
      %v1301 = vadd.f32 %v1209, -16.0
      %v1302 = vadd.f32 %v1210, -16.0
      %v1303 = vadd.f32 %v1211, -16.0
      %v1304 = vmin.f32 %v1296, %v1300
      %v1305 = vmin.f32 %v1297, %v1301
      %v1306 = vmin.f32 %v1298, %v1302
      %v1307 = vmin.f32 %v1299, %v1303
      %v1308 = vmax.f32 %v1304, 0.0
      %v1309 = vmax.f32 %v1305, 0.0
      %v1310 = vmax.f32 %v1306, 0.0
      %v1311 = vmax.f32 %v1307, 0.0
      %v1312 = vsel %vm1193, %v1308, 0.0
      %v1313 = vsel %vm1194, %v1309, 0.0
      %v1314 = vsel %vm1195, %v1310, 0.0
      %v1315 = vsel %vm1196, %v1311, 0.0
      %v1316 = vadd.f32 %v1308, %v1309
      %1317 = vadd.xlane.f32.xlu0 %v1316
      %v1318 = vpop.xlane.xlu0 %1317
      %v1319 = vadd.f32 %v1310, %v1311
      %1320 = vadd.xlane.f32.xlu0 %v1319
      %v1321 = vpop.xlane.xlu0 %1320
      %v1322 = vadd.f32 %v1312, %v1313
      %1323 = vadd.xlane.f32.xlu0 %v1322
      %v1324 = vpop.xlane.xlu0 %1323
      %v1325 = vadd.f32 %v1314, %v1315
      %1326 = vadd.xlane.f32.xlu0 %v1325
      %v1327 = vpop.xlane.xlu0 %1326
      %v1328 = vld [vmem:[#allocation3] sm:$0xff]
      %v1329 = vld [vmem:[#allocation3 + $0x8] sm:$0xff]
      %v1330 = vadd.f32 %v1328, %v1318
      %v1331 = vadd.f32 %v1329, %v1321
      %1332 = vst.msk [vmem:[#allocation3] sm:$0xff] %vm410, %v1330
      %1333 = vst.msk [vmem:[#allocation3 + $0x8] sm:$0xff] %vm410, %v1331
      %v1334 = vld [vmem:[#allocation2] sm:$0xff]
      %v1335 = vld [vmem:[#allocation2 + $0x8] sm:$0xff]
      %v1336 = vadd.f32 %v1334, %v1324
      %v1337 = vadd.f32 %v1335, %v1327
      %1338 = vst.msk [vmem:[#allocation2] sm:$0xff] %vm410, %v1336
      %1339 = vst.msk [vmem:[#allocation2 + $0x8] sm:$0xff] %vm410, %v1337
      %v1340 = vsub.f32 17.0, %v1208
      %v1341 = vsub.f32 17.0, %v1209
      %v1342 = vsub.f32 17.0, %v1210
      %v1343 = vsub.f32 17.0, %v1211
      %v1344 = vadd.f32 %v1208, -15.0
      %v1345 = vadd.f32 %v1209, -15.0
      %v1346 = vadd.f32 %v1210, -15.0
      %v1347 = vadd.f32 %v1211, -15.0
      %v1348 = vmin.f32 %v1340, %v1344
      %v1349 = vmin.f32 %v1341, %v1345
      %v1350 = vmin.f32 %v1342, %v1346
      %v1351 = vmin.f32 %v1343, %v1347
      %v1352 = vmax.f32 %v1348, 0.0
      %v1353 = vmax.f32 %v1349, 0.0
      %v1354 = vmax.f32 %v1350, 0.0
      %v1355 = vmax.f32 %v1351, 0.0
      %v1356 = vsel %vm1193, %v1352, 0.0
      %v1357 = vsel %vm1194, %v1353, 0.0
      %v1358 = vsel %vm1195, %v1354, 0.0
      %v1359 = vsel %vm1196, %v1355, 0.0
      %v1360 = vadd.f32 %v1352, %v1353
      %1361 = vadd.xlane.f32.xlu0 %v1360
      %v1362 = vpop.xlane.xlu0 %1361
      %v1363 = vadd.f32 %v1354, %v1355
      %1364 = vadd.xlane.f32.xlu0 %v1363
      %v1365 = vpop.xlane.xlu0 %1364
      %v1366 = vadd.f32 %v1356, %v1357
      %1367 = vadd.xlane.f32.xlu0 %v1366
      %v1368 = vpop.xlane.xlu0 %1367
      %v1369 = vadd.f32 %v1358, %v1359
      %1370 = vadd.xlane.f32.xlu0 %v1369
      %v1371 = vpop.xlane.xlu0 %1370
      %v1372 = vld [vmem:[#allocation3] sm:$0xff]
      %v1373 = vld [vmem:[#allocation3 + $0x8] sm:$0xff]
      %v1374 = vadd.f32 %v1372, %v1362
      %v1375 = vadd.f32 %v1373, %v1365
      %1376 = vst.msk [vmem:[#allocation3] sm:$0xff] %vm455, %v1374
      %1377 = vst.msk [vmem:[#allocation3 + $0x8] sm:$0xff] %vm455, %v1375
      %v1378 = vld [vmem:[#allocation2] sm:$0xff]
      %v1379 = vld [vmem:[#allocation2 + $0x8] sm:$0xff]
      %v1380 = vadd.f32 %v1378, %v1368
      %v1381 = vadd.f32 %v1379, %v1371
      %1382 = vst.msk [vmem:[#allocation2] sm:$0xff] %vm455, %v1380
      %1383 = vst.msk [vmem:[#allocation2 + $0x8] sm:$0xff] %vm455, %v1381
      %v1384 = vsub.f32 16.0, %v1208
      %v1385 = vsub.f32 16.0, %v1209
      %v1386 = vsub.f32 16.0, %v1210
      %v1387 = vsub.f32 16.0, %v1211
      %v1388 = vadd.f32 %v1208, -14.0
      %v1389 = vadd.f32 %v1209, -14.0
      %v1390 = vadd.f32 %v1210, -14.0
      %v1391 = vadd.f32 %v1211, -14.0
      %v1392 = vmin.f32 %v1384, %v1388
      %v1393 = vmin.f32 %v1385, %v1389
      %v1394 = vmin.f32 %v1386, %v1390
      %v1395 = vmin.f32 %v1387, %v1391
      %v1396 = vmax.f32 %v1392, 0.0
      %v1397 = vmax.f32 %v1393, 0.0
      %v1398 = vmax.f32 %v1394, 0.0
      %v1399 = vmax.f32 %v1395, 0.0
      %v1400 = vsel %vm1193, %v1396, 0.0
      %v1401 = vsel %vm1194, %v1397, 0.0
      %v1402 = vsel %vm1195, %v1398, 0.0
      %v1403 = vsel %vm1196, %v1399, 0.0
      %v1404 = vadd.f32 %v1396, %v1397
      %1405 = vadd.xlane.f32.xlu0 %v1404
      %v1406 = vpop.xlane.xlu0 %1405
      %v1407 = vadd.f32 %v1398, %v1399
      %1408 = vadd.xlane.f32.xlu0 %v1407
      %v1409 = vpop.xlane.xlu0 %1408
      %v1410 = vadd.f32 %v1400, %v1401
      %1411 = vadd.xlane.f32.xlu0 %v1410
      %v1412 = vpop.xlane.xlu0 %1411
      %v1413 = vadd.f32 %v1402, %v1403
      %1414 = vadd.xlane.f32.xlu0 %v1413
      %v1415 = vpop.xlane.xlu0 %1414
      %v1416 = vld [vmem:[#allocation3] sm:$0xff]
      %v1417 = vld [vmem:[#allocation3 + $0x8] sm:$0xff]
      %v1418 = vadd.f32 %v1416, %v1406
      %v1419 = vadd.f32 %v1417, %v1409
      %1420 = vst.msk [vmem:[#allocation3] sm:$0xff] %vm500, %v1418
      %1421 = vst.msk [vmem:[#allocation3 + $0x8] sm:$0xff] %vm500, %v1419
      %v1422 = vld [vmem:[#allocation2] sm:$0xff]
      %v1423 = vld [vmem:[#allocation2 + $0x8] sm:$0xff]
      %v1424 = vadd.f32 %v1422, %v1412
      %v1425 = vadd.f32 %v1423, %v1415
      %1426 = vst.msk [vmem:[#allocation2] sm:$0xff] %vm500, %v1424
      %1427 = vst.msk [vmem:[#allocation2 + $0x8] sm:$0xff] %vm500, %v1425
      %v1428 = vsub.f32 15.0, %v1208
      %v1429 = vsub.f32 15.0, %v1209
      %v1430 = vsub.f32 15.0, %v1210
      %v1431 = vsub.f32 15.0, %v1211
      %v1432 = vadd.f32 %v1208, -13.0
      %v1433 = vadd.f32 %v1209, -13.0
      %v1434 = vadd.f32 %v1210, -13.0
      %v1435 = vadd.f32 %v1211, -13.0
      %v1436 = vmin.f32 %v1428, %v1432
      %v1437 = vmin.f32 %v1429, %v1433
      %v1438 = vmin.f32 %v1430, %v1434
      %v1439 = vmin.f32 %v1431, %v1435
      %v1440 = vmax.f32 %v1436, 0.0
      %v1441 = vmax.f32 %v1437, 0.0
      %v1442 = vmax.f32 %v1438, 0.0
      %v1443 = vmax.f32 %v1439, 0.0
      %v1444 = vsel %vm1193, %v1440, 0.0
      %v1445 = vsel %vm1194, %v1441, 0.0
      %v1446 = vsel %vm1195, %v1442, 0.0
      %v1447 = vsel %vm1196, %v1443, 0.0
      %v1448 = vadd.f32 %v1440, %v1441
      %1449 = vadd.xlane.f32.xlu0 %v1448
      %v1450 = vpop.xlane.xlu0 %1449
      %v1451 = vadd.f32 %v1442, %v1443
      %1452 = vadd.xlane.f32.xlu0 %v1451
      %v1453 = vpop.xlane.xlu0 %1452
      %v1454 = vadd.f32 %v1444, %v1445
      %1455 = vadd.xlane.f32.xlu0 %v1454
      %v1456 = vpop.xlane.xlu0 %1455
      %v1457 = vadd.f32 %v1446, %v1447
      %1458 = vadd.xlane.f32.xlu0 %v1457
      %v1459 = vpop.xlane.xlu0 %1458
      %v1460 = vld [vmem:[#allocation3] sm:$0xff]
      %v1461 = vld [vmem:[#allocation3 + $0x8] sm:$0xff]
      %v1462 = vadd.f32 %v1460, %v1450
      %v1463 = vadd.f32 %v1461, %v1453
      %1464 = vst.msk [vmem:[#allocation3] sm:$0xff] %vm545, %v1462
      %1465 = vst.msk [vmem:[#allocation3 + $0x8] sm:$0xff] %vm545, %v1463
      %v1466 = vld [vmem:[#allocation2] sm:$0xff]
      %v1467 = vld [vmem:[#allocation2 + $0x8] sm:$0xff]
      %v1468 = vadd.f32 %v1466, %v1456
      %v1469 = vadd.f32 %v1467, %v1459
      %1470 = vst.msk [vmem:[#allocation2] sm:$0xff] %vm545, %v1468
      %1471 = vst.msk [vmem:[#allocation2 + $0x8] sm:$0xff] %vm545, %v1469
      %v1472 = vsub.f32 14.0, %v1208
      %v1473 = vsub.f32 14.0, %v1209
      %v1474 = vsub.f32 14.0, %v1210
      %v1475 = vsub.f32 14.0, %v1211
      %v1476 = vadd.f32 %v1208, -12.0
      %v1477 = vadd.f32 %v1209, -12.0
      %v1478 = vadd.f32 %v1210, -12.0
      %v1479 = vadd.f32 %v1211, -12.0
      %v1480 = vmin.f32 %v1472, %v1476
      %v1481 = vmin.f32 %v1473, %v1477
      %v1482 = vmin.f32 %v1474, %v1478
      %v1483 = vmin.f32 %v1475, %v1479
      %v1484 = vmax.f32 %v1480, 0.0
      %v1485 = vmax.f32 %v1481, 0.0
      %v1486 = vmax.f32 %v1482, 0.0
      %v1487 = vmax.f32 %v1483, 0.0
      %v1488 = vsel %vm1193, %v1484, 0.0
      %v1489 = vsel %vm1194, %v1485, 0.0
      %v1490 = vsel %vm1195, %v1486, 0.0
      %v1491 = vsel %vm1196, %v1487, 0.0
      %v1492 = vadd.f32 %v1484, %v1485
      %1493 = vadd.xlane.f32.xlu0 %v1492
      %v1494 = vpop.xlane.xlu0 %1493
      %v1495 = vadd.f32 %v1486, %v1487
      %1496 = vadd.xlane.f32.xlu0 %v1495
      %v1497 = vpop.xlane.xlu0 %1496
      %v1498 = vadd.f32 %v1488, %v1489
      %1499 = vadd.xlane.f32.xlu0 %v1498
      %v1500 = vpop.xlane.xlu0 %1499
      %v1501 = vadd.f32 %v1490, %v1491
      %1502 = vadd.xlane.f32.xlu0 %v1501
      %v1503 = vpop.xlane.xlu0 %1502
      %v1504 = vld [vmem:[#allocation3] sm:$0xff]
      %v1505 = vld [vmem:[#allocation3 + $0x8] sm:$0xff]
      %v1506 = vadd.f32 %v1504, %v1494
      %v1507 = vadd.f32 %v1505, %v1497
      %1508 = vst.msk [vmem:[#allocation3] sm:$0xff] %vm590, %v1506
      %1509 = vst.msk [vmem:[#allocation3 + $0x8] sm:$0xff] %vm590, %v1507
      %v1510 = vld [vmem:[#allocation2] sm:$0xff]
      %v1511 = vld [vmem:[#allocation2 + $0x8] sm:$0xff]
      %v1512 = vadd.f32 %v1510, %v1500
      %v1513 = vadd.f32 %v1511, %v1503
      %1514 = vst.msk [vmem:[#allocation2] sm:$0xff] %vm590, %v1512
      %1515 = vst.msk [vmem:[#allocation2 + $0x8] sm:$0xff] %vm590, %v1513
      %v1516 = vsub.f32 13.0, %v1208
      %v1517 = vsub.f32 13.0, %v1209
      %v1518 = vsub.f32 13.0, %v1210
      %v1519 = vsub.f32 13.0, %v1211
      %v1520 = vadd.f32 %v1208, -11.0
      %v1521 = vadd.f32 %v1209, -11.0
      %v1522 = vadd.f32 %v1210, -11.0
      %v1523 = vadd.f32 %v1211, -11.0
      %v1524 = vmin.f32 %v1516, %v1520
      %v1525 = vmin.f32 %v1517, %v1521
      %v1526 = vmin.f32 %v1518, %v1522
      %v1527 = vmin.f32 %v1519, %v1523
      %v1528 = vmax.f32 %v1524, 0.0
      %v1529 = vmax.f32 %v1525, 0.0
      %v1530 = vmax.f32 %v1526, 0.0
      %v1531 = vmax.f32 %v1527, 0.0
      %v1532 = vsel %vm1193, %v1528, 0.0
      %v1533 = vsel %vm1194, %v1529, 0.0
      %v1534 = vsel %vm1195, %v1530, 0.0
      %v1535 = vsel %vm1196, %v1531, 0.0
      %v1536 = vadd.f32 %v1528, %v1529
      %1537 = vadd.xlane.f32.xlu0 %v1536
      %v1538 = vpop.xlane.xlu0 %1537
      %v1539 = vadd.f32 %v1530, %v1531
      %1540 = vadd.xlane.f32.xlu0 %v1539
      %v1541 = vpop.xlane.xlu0 %1540
      %v1542 = vadd.f32 %v1532, %v1533
      %1543 = vadd.xlane.f32.xlu0 %v1542
      %v1544 = vpop.xlane.xlu0 %1543
      %v1545 = vadd.f32 %v1534, %v1535
      %1546 = vadd.xlane.f32.xlu0 %v1545
      %v1547 = vpop.xlane.xlu0 %1546
      %v1548 = vld [vmem:[#allocation3] sm:$0xff]
      %v1549 = vld [vmem:[#allocation3 + $0x8] sm:$0xff]
      %v1550 = vadd.f32 %v1548, %v1538
      %v1551 = vadd.f32 %v1549, %v1541
      %1552 = vst.msk [vmem:[#allocation3] sm:$0xff] %vm635, %v1550
      %1553 = vst.msk [vmem:[#allocation3 + $0x8] sm:$0xff] %vm635, %v1551
      %v1554 = vld [vmem:[#allocation2] sm:$0xff]
      %v1555 = vld [vmem:[#allocation2 + $0x8] sm:$0xff]
      %v1556 = vadd.f32 %v1554, %v1544
      %v1557 = vadd.f32 %v1555, %v1547
      %1558 = vst.msk [vmem:[#allocation2] sm:$0xff] %vm635, %v1556
      %1559 = vst.msk [vmem:[#allocation2 + $0x8] sm:$0xff] %vm635, %v1557
      %v1560 = vsub.f32 12.0, %v1208
      %v1561 = vsub.f32 12.0, %v1209
      %v1562 = vsub.f32 12.0, %v1210
      %v1563 = vsub.f32 12.0, %v1211
      %v1564 = vadd.f32 %v1208, -10.0
      %v1565 = vadd.f32 %v1209, -10.0
      %v1566 = vadd.f32 %v1210, -10.0
      %v1567 = vadd.f32 %v1211, -10.0
      %v1568 = vmin.f32 %v1560, %v1564
      %v1569 = vmin.f32 %v1561, %v1565
      %v1570 = vmin.f32 %v1562, %v1566
      %v1571 = vmin.f32 %v1563, %v1567
      %v1572 = vmax.f32 %v1568, 0.0
      %v1573 = vmax.f32 %v1569, 0.0
      %v1574 = vmax.f32 %v1570, 0.0
      %v1575 = vmax.f32 %v1571, 0.0
      %v1576 = vsel %vm1193, %v1572, 0.0
      %v1577 = vsel %vm1194, %v1573, 0.0
      %v1578 = vsel %vm1195, %v1574, 0.0
      %v1579 = vsel %vm1196, %v1575, 0.0
      %v1580 = vadd.f32 %v1572, %v1573
      %1581 = vadd.xlane.f32.xlu0 %v1580
      %v1582 = vpop.xlane.xlu0 %1581
      %v1583 = vadd.f32 %v1574, %v1575
      %1584 = vadd.xlane.f32.xlu0 %v1583
      %v1585 = vpop.xlane.xlu0 %1584
      %v1586 = vadd.f32 %v1576, %v1577
      %1587 = vadd.xlane.f32.xlu0 %v1586
      %v1588 = vpop.xlane.xlu0 %1587
      %v1589 = vadd.f32 %v1578, %v1579
      %1590 = vadd.xlane.f32.xlu0 %v1589
      %v1591 = vpop.xlane.xlu0 %1590
      %v1592 = vld [vmem:[#allocation3] sm:$0xff]
      %v1593 = vld [vmem:[#allocation3 + $0x8] sm:$0xff]
      %v1594 = vadd.f32 %v1592, %v1582
      %v1595 = vadd.f32 %v1593, %v1585
      %1596 = vst.msk [vmem:[#allocation3] sm:$0xff] %vm680, %v1594
      %1597 = vst.msk [vmem:[#allocation3 + $0x8] sm:$0xff] %vm680, %v1595
      %v1598 = vld [vmem:[#allocation2] sm:$0xff]
      %v1599 = vld [vmem:[#allocation2 + $0x8] sm:$0xff]
      %v1600 = vadd.f32 %v1598, %v1588
      %v1601 = vadd.f32 %v1599, %v1591
      %1602 = vst.msk [vmem:[#allocation2] sm:$0xff] %vm680, %v1600
      %1603 = vst.msk [vmem:[#allocation2 + $0x8] sm:$0xff] %vm680, %v1601
      %v1604 = vsub.f32 11.0, %v1208
      %v1605 = vsub.f32 11.0, %v1209
      %v1606 = vsub.f32 11.0, %v1210
      %v1607 = vsub.f32 11.0, %v1211
      %v1608 = vadd.f32 %v1208, -9.0
      %v1609 = vadd.f32 %v1209, -9.0
      %v1610 = vadd.f32 %v1210, -9.0
      %v1611 = vadd.f32 %v1211, -9.0
      %v1612 = vmin.f32 %v1604, %v1608
      %v1613 = vmin.f32 %v1605, %v1609
      %v1614 = vmin.f32 %v1606, %v1610
      %v1615 = vmin.f32 %v1607, %v1611
      %v1616 = vmax.f32 %v1612, 0.0
      %v1617 = vmax.f32 %v1613, 0.0
      %v1618 = vmax.f32 %v1614, 0.0
      %v1619 = vmax.f32 %v1615, 0.0
      %v1620 = vsel %vm1193, %v1616, 0.0
      %v1621 = vsel %vm1194, %v1617, 0.0
      %v1622 = vsel %vm1195, %v1618, 0.0
      %v1623 = vsel %vm1196, %v1619, 0.0
      %v1624 = vadd.f32 %v1616, %v1617
      %1625 = vadd.xlane.f32.xlu0 %v1624
      %v1626 = vpop.xlane.xlu0 %1625
      %v1627 = vadd.f32 %v1618, %v1619
      %1628 = vadd.xlane.f32.xlu0 %v1627
      %v1629 = vpop.xlane.xlu0 %1628
      %v1630 = vadd.f32 %v1620, %v1621
      %1631 = vadd.xlane.f32.xlu0 %v1630
      %v1632 = vpop.xlane.xlu0 %1631
      %v1633 = vadd.f32 %v1622, %v1623
      %1634 = vadd.xlane.f32.xlu0 %v1633
      %v1635 = vpop.xlane.xlu0 %1634
      %v1636 = vld [vmem:[#allocation3] sm:$0xff]
      %v1637 = vld [vmem:[#allocation3 + $0x8] sm:$0xff]
      %v1638 = vadd.f32 %v1636, %v1626
      %v1639 = vadd.f32 %v1637, %v1629
      %1640 = vst.msk [vmem:[#allocation3] sm:$0xff] %vm725, %v1638
      %1641 = vst.msk [vmem:[#allocation3 + $0x8] sm:$0xff] %vm725, %v1639
      %v1642 = vld [vmem:[#allocation2] sm:$0xff]
      %v1643 = vld [vmem:[#allocation2 + $0x8] sm:$0xff]
      %v1644 = vadd.f32 %v1642, %v1632
      %v1645 = vadd.f32 %v1643, %v1635
      %1646 = vst.msk [vmem:[#allocation2] sm:$0xff] %vm725, %v1644
      %1647 = vst.msk [vmem:[#allocation2 + $0x8] sm:$0xff] %vm725, %v1645
      %v1648 = vsub.f32 10.0, %v1208
      %v1649 = vsub.f32 10.0, %v1209
      %v1650 = vsub.f32 10.0, %v1210
      %v1651 = vsub.f32 10.0, %v1211
      %v1652 = vadd.f32 %v1208, -8.0
      %v1653 = vadd.f32 %v1209, -8.0
      %v1654 = vadd.f32 %v1210, -8.0
      %v1655 = vadd.f32 %v1211, -8.0
      %v1656 = vmin.f32 %v1648, %v1652
      %v1657 = vmin.f32 %v1649, %v1653
      %v1658 = vmin.f32 %v1650, %v1654
      %v1659 = vmin.f32 %v1651, %v1655
      %v1660 = vmax.f32 %v1656, 0.0
      %v1661 = vmax.f32 %v1657, 0.0
      %v1662 = vmax.f32 %v1658, 0.0
      %v1663 = vmax.f32 %v1659, 0.0
      %v1664 = vsel %vm1193, %v1660, 0.0
      %v1665 = vsel %vm1194, %v1661, 0.0
      %v1666 = vsel %vm1195, %v1662, 0.0
      %v1667 = vsel %vm1196, %v1663, 0.0
      %v1668 = vadd.f32 %v1660, %v1661
      %1669 = vadd.xlane.f32.xlu0 %v1668
      %v1670 = vpop.xlane.xlu0 %1669
      %v1671 = vadd.f32 %v1662, %v1663
      %1672 = vadd.xlane.f32.xlu0 %v1671
      %v1673 = vpop.xlane.xlu0 %1672
      %v1674 = vadd.f32 %v1664, %v1665
      %1675 = vadd.xlane.f32.xlu0 %v1674
      %v1676 = vpop.xlane.xlu0 %1675
      %v1677 = vadd.f32 %v1666, %v1667
      %1678 = vadd.xlane.f32.xlu0 %v1677
      %v1679 = vpop.xlane.xlu0 %1678
      %v1680 = vld [vmem:[#allocation3] sm:$0xff]
      %v1681 = vld [vmem:[#allocation3 + $0x8] sm:$0xff]
      %v1682 = vadd.f32 %v1680, %v1670
      %v1683 = vadd.f32 %v1681, %v1673
      %1684 = vst.msk [vmem:[#allocation3] sm:$0xff] %vm770, %v1682
      %1685 = vst.msk [vmem:[#allocation3 + $0x8] sm:$0xff] %vm770, %v1683
      %v1686 = vld [vmem:[#allocation2] sm:$0xff]
      %v1687 = vld [vmem:[#allocation2 + $0x8] sm:$0xff]
      %v1688 = vadd.f32 %v1686, %v1676
      %v1689 = vadd.f32 %v1687, %v1679
      %1690 = vst.msk [vmem:[#allocation2] sm:$0xff] %vm770, %v1688
      %1691 = vst.msk [vmem:[#allocation2 + $0x8] sm:$0xff] %vm770, %v1689
      %v1692 = vsub.f32 9.0, %v1208
      %v1693 = vsub.f32 9.0, %v1209
      %v1694 = vsub.f32 9.0, %v1210
      %v1695 = vsub.f32 9.0, %v1211
      %v1696 = vadd.f32 %v1208, -7.0
      %v1697 = vadd.f32 %v1209, -7.0
      %v1698 = vadd.f32 %v1210, -7.0
      %v1699 = vadd.f32 %v1211, -7.0
      %v1700 = vmin.f32 %v1692, %v1696
      %v1701 = vmin.f32 %v1693, %v1697
      %v1702 = vmin.f32 %v1694, %v1698
      %v1703 = vmin.f32 %v1695, %v1699
      %v1704 = vmax.f32 %v1700, 0.0
      %v1705 = vmax.f32 %v1701, 0.0
      %v1706 = vmax.f32 %v1702, 0.0
      %v1707 = vmax.f32 %v1703, 0.0
      %v1708 = vsel %vm1193, %v1704, 0.0
      %v1709 = vsel %vm1194, %v1705, 0.0
      %v1710 = vsel %vm1195, %v1706, 0.0
      %v1711 = vsel %vm1196, %v1707, 0.0
      %v1712 = vadd.f32 %v1704, %v1705
      %1713 = vadd.xlane.f32.xlu0 %v1712
      %v1714 = vpop.xlane.xlu0 %1713
      %v1715 = vadd.f32 %v1706, %v1707
      %1716 = vadd.xlane.f32.xlu0 %v1715
      %v1717 = vpop.xlane.xlu0 %1716
      %v1718 = vadd.f32 %v1708, %v1709
      %1719 = vadd.xlane.f32.xlu0 %v1718
      %v1720 = vpop.xlane.xlu0 %1719
      %v1721 = vadd.f32 %v1710, %v1711
      %1722 = vadd.xlane.f32.xlu0 %v1721
      %v1723 = vpop.xlane.xlu0 %1722
      %v1724 = vld [vmem:[#allocation3] sm:$0xff]
      %v1725 = vld [vmem:[#allocation3 + $0x8] sm:$0xff]
      %v1726 = vadd.f32 %v1724, %v1714
      %v1727 = vadd.f32 %v1725, %v1717
      %1728 = vst.msk [vmem:[#allocation3] sm:$0xff] %vm815, %v1726
      %1729 = vst.msk [vmem:[#allocation3 + $0x8] sm:$0xff] %vm815, %v1727
      %v1730 = vld [vmem:[#allocation2] sm:$0xff]
      %v1731 = vld [vmem:[#allocation2 + $0x8] sm:$0xff]
      %v1732 = vadd.f32 %v1730, %v1720
      %v1733 = vadd.f32 %v1731, %v1723
      %1734 = vst.msk [vmem:[#allocation2] sm:$0xff] %vm815, %v1732
      %1735 = vst.msk [vmem:[#allocation2 + $0x8] sm:$0xff] %vm815, %v1733
      %v1736 = vsub.f32 8.0, %v1208
      %v1737 = vsub.f32 8.0, %v1209
      %v1738 = vsub.f32 8.0, %v1210
      %v1739 = vsub.f32 8.0, %v1211
      %v1740 = vadd.f32 %v1208, -6.0
      %v1741 = vadd.f32 %v1209, -6.0
      %v1742 = vadd.f32 %v1210, -6.0
      %v1743 = vadd.f32 %v1211, -6.0
      %v1744 = vmin.f32 %v1736, %v1740
      %v1745 = vmin.f32 %v1737, %v1741
      %v1746 = vmin.f32 %v1738, %v1742
      %v1747 = vmin.f32 %v1739, %v1743
      %v1748 = vmax.f32 %v1744, 0.0
      %v1749 = vmax.f32 %v1745, 0.0
      %v1750 = vmax.f32 %v1746, 0.0
      %v1751 = vmax.f32 %v1747, 0.0
      %v1752 = vsel %vm1193, %v1748, 0.0
      %v1753 = vsel %vm1194, %v1749, 0.0
      %v1754 = vsel %vm1195, %v1750, 0.0
      %v1755 = vsel %vm1196, %v1751, 0.0
      %v1756 = vadd.f32 %v1748, %v1749
      %1757 = vadd.xlane.f32.xlu0 %v1756
      %v1758 = vpop.xlane.xlu0 %1757
      %v1759 = vadd.f32 %v1750, %v1751
      %1760 = vadd.xlane.f32.xlu0 %v1759
      %v1761 = vpop.xlane.xlu0 %1760
      %v1762 = vadd.f32 %v1752, %v1753
      %1763 = vadd.xlane.f32.xlu0 %v1762
      %v1764 = vpop.xlane.xlu0 %1763
      %v1765 = vadd.f32 %v1754, %v1755
      %1766 = vadd.xlane.f32.xlu0 %v1765
      %v1767 = vpop.xlane.xlu0 %1766
      %v1768 = vld [vmem:[#allocation3] sm:$0xff]
      %v1769 = vld [vmem:[#allocation3 + $0x8] sm:$0xff]
      %v1770 = vadd.f32 %v1768, %v1758
      %v1771 = vadd.f32 %v1769, %v1761
      %1772 = vst.msk [vmem:[#allocation3] sm:$0xff] %vm860, %v1770
      %1773 = vst.msk [vmem:[#allocation3 + $0x8] sm:$0xff] %vm860, %v1771
      %v1774 = vld [vmem:[#allocation2] sm:$0xff]
      %v1775 = vld [vmem:[#allocation2 + $0x8] sm:$0xff]
      %v1776 = vadd.f32 %v1774, %v1764
      %v1777 = vadd.f32 %v1775, %v1767
      %1778 = vst.msk [vmem:[#allocation2] sm:$0xff] %vm860, %v1776
      %1779 = vst.msk [vmem:[#allocation2 + $0x8] sm:$0xff] %vm860, %v1777
      %v1780 = vsub.f32 7.0, %v1208
      %v1781 = vsub.f32 7.0, %v1209
      %v1782 = vsub.f32 7.0, %v1210
      %v1783 = vsub.f32 7.0, %v1211
      %v1784 = vadd.f32 %v1208, -5.0
      %v1785 = vadd.f32 %v1209, -5.0
      %v1786 = vadd.f32 %v1210, -5.0
      %v1787 = vadd.f32 %v1211, -5.0
      %v1788 = vmin.f32 %v1780, %v1784
      %v1789 = vmin.f32 %v1781, %v1785
      %v1790 = vmin.f32 %v1782, %v1786
      %v1791 = vmin.f32 %v1783, %v1787
      %v1792 = vmax.f32 %v1788, 0.0
      %v1793 = vmax.f32 %v1789, 0.0
      %v1794 = vmax.f32 %v1790, 0.0
      %v1795 = vmax.f32 %v1791, 0.0
      %v1796 = vsel %vm1193, %v1792, 0.0
      %v1797 = vsel %vm1194, %v1793, 0.0
      %v1798 = vsel %vm1195, %v1794, 0.0
      %v1799 = vsel %vm1196, %v1795, 0.0
      %v1800 = vadd.f32 %v1792, %v1793
      %1801 = vadd.xlane.f32.xlu0 %v1800
      %v1802 = vpop.xlane.xlu0 %1801
      %v1803 = vadd.f32 %v1794, %v1795
      %1804 = vadd.xlane.f32.xlu0 %v1803
      %v1805 = vpop.xlane.xlu0 %1804
      %v1806 = vadd.f32 %v1796, %v1797
      %1807 = vadd.xlane.f32.xlu0 %v1806
      %v1808 = vpop.xlane.xlu0 %1807
      %v1809 = vadd.f32 %v1798, %v1799
      %1810 = vadd.xlane.f32.xlu0 %v1809
      %v1811 = vpop.xlane.xlu0 %1810
      %v1812 = vld [vmem:[#allocation3] sm:$0xff]
      %v1813 = vld [vmem:[#allocation3 + $0x8] sm:$0xff]
      %v1814 = vadd.f32 %v1812, %v1802
      %v1815 = vadd.f32 %v1813, %v1805
      %1816 = vst.msk [vmem:[#allocation3] sm:$0xff] %vm905, %v1814
      %1817 = vst.msk [vmem:[#allocation3 + $0x8] sm:$0xff] %vm905, %v1815
      %v1818 = vld [vmem:[#allocation2] sm:$0xff]
      %v1819 = vld [vmem:[#allocation2 + $0x8] sm:$0xff]
      %v1820 = vadd.f32 %v1818, %v1808
      %v1821 = vadd.f32 %v1819, %v1811
      %1822 = vst.msk [vmem:[#allocation2] sm:$0xff] %vm905, %v1820
      %1823 = vst.msk [vmem:[#allocation2 + $0x8] sm:$0xff] %vm905, %v1821
      %v1824 = vsub.f32 6.0, %v1208
      %v1825 = vsub.f32 6.0, %v1209
      %v1826 = vsub.f32 6.0, %v1210
      %v1827 = vsub.f32 6.0, %v1211
      %v1828 = vadd.f32 %v1208, -4.0
      %v1829 = vadd.f32 %v1209, -4.0
      %v1830 = vadd.f32 %v1210, -4.0
      %v1831 = vadd.f32 %v1211, -4.0
      %v1832 = vmin.f32 %v1824, %v1828
      %v1833 = vmin.f32 %v1825, %v1829
      %v1834 = vmin.f32 %v1826, %v1830
      %v1835 = vmin.f32 %v1827, %v1831
      %v1836 = vmax.f32 %v1832, 0.0
      %v1837 = vmax.f32 %v1833, 0.0
      %v1838 = vmax.f32 %v1834, 0.0
      %v1839 = vmax.f32 %v1835, 0.0
      %v1840 = vsel %vm1193, %v1836, 0.0
      %v1841 = vsel %vm1194, %v1837, 0.0
      %v1842 = vsel %vm1195, %v1838, 0.0
      %v1843 = vsel %vm1196, %v1839, 0.0
      %v1844 = vadd.f32 %v1836, %v1837
      %1845 = vadd.xlane.f32.xlu0 %v1844
      %v1846 = vpop.xlane.xlu0 %1845
      %v1847 = vadd.f32 %v1838, %v1839
      %1848 = vadd.xlane.f32.xlu0 %v1847
      %v1849 = vpop.xlane.xlu0 %1848
      %v1850 = vadd.f32 %v1840, %v1841
      %1851 = vadd.xlane.f32.xlu0 %v1850
      %v1852 = vpop.xlane.xlu0 %1851
      %v1853 = vadd.f32 %v1842, %v1843
      %1854 = vadd.xlane.f32.xlu0 %v1853
      %v1855 = vpop.xlane.xlu0 %1854
      %v1856 = vld [vmem:[#allocation3] sm:$0xff]
      %v1857 = vld [vmem:[#allocation3 + $0x8] sm:$0xff]
      %v1858 = vadd.f32 %v1856, %v1846
      %v1859 = vadd.f32 %v1857, %v1849
      %1860 = vst.msk [vmem:[#allocation3] sm:$0xff] %vm950, %v1858
      %1861 = vst.msk [vmem:[#allocation3 + $0x8] sm:$0xff] %vm950, %v1859
      %v1862 = vld [vmem:[#allocation2] sm:$0xff]
      %v1863 = vld [vmem:[#allocation2 + $0x8] sm:$0xff]
      %v1864 = vadd.f32 %v1862, %v1852
      %v1865 = vadd.f32 %v1863, %v1855
      %1866 = vst.msk [vmem:[#allocation2] sm:$0xff] %vm950, %v1864
      %1867 = vst.msk [vmem:[#allocation2 + $0x8] sm:$0xff] %vm950, %v1865
      %v1868 = vsub.f32 5.0, %v1208
      %v1869 = vsub.f32 5.0, %v1209
      %v1870 = vsub.f32 5.0, %v1210
      %v1871 = vsub.f32 5.0, %v1211
      %v1872 = vadd.f32 %v1208, -3.0
      %v1873 = vadd.f32 %v1209, -3.0
      %v1874 = vadd.f32 %v1210, -3.0
      %v1875 = vadd.f32 %v1211, -3.0
      %v1876 = vmin.f32 %v1868, %v1872
      %v1877 = vmin.f32 %v1869, %v1873
      %v1878 = vmin.f32 %v1870, %v1874
      %v1879 = vmin.f32 %v1871, %v1875
      %v1880 = vmax.f32 %v1876, 0.0
      %v1881 = vmax.f32 %v1877, 0.0
      %v1882 = vmax.f32 %v1878, 0.0
      %v1883 = vmax.f32 %v1879, 0.0
      %v1884 = vsel %vm1193, %v1880, 0.0
      %v1885 = vsel %vm1194, %v1881, 0.0
      %v1886 = vsel %vm1195, %v1882, 0.0
      %v1887 = vsel %vm1196, %v1883, 0.0
      %v1888 = vadd.f32 %v1880, %v1881
      %1889 = vadd.xlane.f32.xlu0 %v1888
      %v1890 = vpop.xlane.xlu0 %1889
      %v1891 = vadd.f32 %v1882, %v1883
      %1892 = vadd.xlane.f32.xlu0 %v1891
      %v1893 = vpop.xlane.xlu0 %1892
      %v1894 = vadd.f32 %v1884, %v1885
      %1895 = vadd.xlane.f32.xlu0 %v1894
      %v1896 = vpop.xlane.xlu0 %1895
      %v1897 = vadd.f32 %v1886, %v1887
      %1898 = vadd.xlane.f32.xlu0 %v1897
      %v1899 = vpop.xlane.xlu0 %1898
      %v1900 = vld [vmem:[#allocation3] sm:$0xff]
      %v1901 = vld [vmem:[#allocation3 + $0x8] sm:$0xff]
      %v1902 = vadd.f32 %v1900, %v1890
      %v1903 = vadd.f32 %v1901, %v1893
      %1904 = vst.msk [vmem:[#allocation3] sm:$0xff] %vm995, %v1902
      %1905 = vst.msk [vmem:[#allocation3 + $0x8] sm:$0xff] %vm995, %v1903
      %v1906 = vld [vmem:[#allocation2] sm:$0xff]
      %v1907 = vld [vmem:[#allocation2 + $0x8] sm:$0xff]
      %v1908 = vadd.f32 %v1906, %v1896
      %v1909 = vadd.f32 %v1907, %v1899
      %1910 = vst.msk [vmem:[#allocation2] sm:$0xff] %vm995, %v1908
      %1911 = vst.msk [vmem:[#allocation2 + $0x8] sm:$0xff] %vm995, %v1909
      %v1912 = vsub.f32 4.0, %v1208
      %v1913 = vsub.f32 4.0, %v1209
      %v1914 = vsub.f32 4.0, %v1210
      %v1915 = vsub.f32 4.0, %v1211
      %v1916 = vadd.f32 %v1208, -2.0
      %v1917 = vadd.f32 %v1209, -2.0
      %v1918 = vadd.f32 %v1210, -2.0
      %v1919 = vadd.f32 %v1211, -2.0
      %v1920 = vmin.f32 %v1912, %v1916
      %v1921 = vmin.f32 %v1913, %v1917
      %v1922 = vmin.f32 %v1914, %v1918
      %v1923 = vmin.f32 %v1915, %v1919
      %v1924 = vmax.f32 %v1920, 0.0
      %v1925 = vmax.f32 %v1921, 0.0
      %v1926 = vmax.f32 %v1922, 0.0
      %v1927 = vmax.f32 %v1923, 0.0
      %v1928 = vsel %vm1193, %v1924, 0.0
      %v1929 = vsel %vm1194, %v1925, 0.0
      %v1930 = vsel %vm1195, %v1926, 0.0
      %v1931 = vsel %vm1196, %v1927, 0.0
      %v1932 = vadd.f32 %v1924, %v1925
      %1933 = vadd.xlane.f32.xlu0 %v1932
      %v1934 = vpop.xlane.xlu0 %1933
      %v1935 = vadd.f32 %v1926, %v1927
      %1936 = vadd.xlane.f32.xlu0 %v1935
      %v1937 = vpop.xlane.xlu0 %1936
      %v1938 = vadd.f32 %v1928, %v1929
      %1939 = vadd.xlane.f32.xlu0 %v1938
      %v1940 = vpop.xlane.xlu0 %1939
      %v1941 = vadd.f32 %v1930, %v1931
      %1942 = vadd.xlane.f32.xlu0 %v1941
      %v1943 = vpop.xlane.xlu0 %1942
      %v1944 = vld [vmem:[#allocation3] sm:$0xff]
      %v1945 = vld [vmem:[#allocation3 + $0x8] sm:$0xff]
      %v1946 = vadd.f32 %v1944, %v1934
      %v1947 = vadd.f32 %v1945, %v1937
      %1948 = vst.msk [vmem:[#allocation3] sm:$0xff] %vm1040, %v1946
      %1949 = vst.msk [vmem:[#allocation3 + $0x8] sm:$0xff] %vm1040, %v1947
      %v1950 = vld [vmem:[#allocation2] sm:$0xff]
      %v1951 = vld [vmem:[#allocation2 + $0x8] sm:$0xff]
      %v1952 = vadd.f32 %v1950, %v1940
      %v1953 = vadd.f32 %v1951, %v1943
      %1954 = vst.msk [vmem:[#allocation2] sm:$0xff] %vm1040, %v1952
      %1955 = vst.msk [vmem:[#allocation2 + $0x8] sm:$0xff] %vm1040, %v1953
      %v1956 = vsub.f32 3.0, %v1208
      %v1957 = vsub.f32 3.0, %v1209
      %v1958 = vsub.f32 3.0, %v1210
      %v1959 = vsub.f32 3.0, %v1211
      %v1960 = vadd.f32 %v1208, -1.0
      %v1961 = vadd.f32 %v1209, -1.0
      %v1962 = vadd.f32 %v1210, -1.0
      %v1963 = vadd.f32 %v1211, -1.0
      %v1964 = vmin.f32 %v1956, %v1960
      %v1965 = vmin.f32 %v1957, %v1961
      %v1966 = vmin.f32 %v1958, %v1962
      %v1967 = vmin.f32 %v1959, %v1963
      %v1968 = vmax.f32 %v1964, 0.0
      %v1969 = vmax.f32 %v1965, 0.0
      %v1970 = vmax.f32 %v1966, 0.0
      %v1971 = vmax.f32 %v1967, 0.0
      %v1972 = vsel %vm1193, %v1968, 0.0
      %v1973 = vsel %vm1194, %v1969, 0.0
      %v1974 = vsel %vm1195, %v1970, 0.0
      %v1975 = vsel %vm1196, %v1971, 0.0
      %v1976 = vadd.f32 %v1968, %v1969
      %1977 = vadd.xlane.f32.xlu0 %v1976
      %v1978 = vpop.xlane.xlu0 %1977
      %v1979 = vadd.f32 %v1970, %v1971
      %1980 = vadd.xlane.f32.xlu0 %v1979
      %v1981 = vpop.xlane.xlu0 %1980
      %v1982 = vadd.f32 %v1972, %v1973
      %1983 = vadd.xlane.f32.xlu0 %v1982
      %v1984 = vpop.xlane.xlu0 %1983
      %v1985 = vadd.f32 %v1974, %v1975
      %1986 = vadd.xlane.f32.xlu0 %v1985
      %v1987 = vpop.xlane.xlu0 %1986
      %v1988 = vld [vmem:[#allocation3] sm:$0xff]
      %v1989 = vld [vmem:[#allocation3 + $0x8] sm:$0xff]
      %v1990 = vadd.f32 %v1988, %v1978
      %v1991 = vadd.f32 %v1989, %v1981
      %1992 = vst.msk [vmem:[#allocation3] sm:$0xff] %vm1085, %v1990
      %1993 = vst.msk [vmem:[#allocation3 + $0x8] sm:$0xff] %vm1085, %v1991
      %v1994 = vld [vmem:[#allocation2] sm:$0xff]
      %v1995 = vld [vmem:[#allocation2 + $0x8] sm:$0xff]
      %v1996 = vadd.f32 %v1994, %v1984
      %v1997 = vadd.f32 %v1995, %v1987
      %1998 = vst.msk [vmem:[#allocation2] sm:$0xff] %vm1085, %v1996
      %1999 = vst.msk [vmem:[#allocation2 + $0x8] sm:$0xff] %vm1085, %v1997
      %v2000 = vsub.f32 2.0, %v1208
      %v2001 = vsub.f32 2.0, %v1209
      %v2002 = vsub.f32 2.0, %v1210
      %v2003 = vsub.f32 2.0, %v1211
      %v2004 = vadd.f32 %v1208, 0.0
      %v2005 = vadd.f32 %v1209, 0.0
      %v2006 = vadd.f32 %v1210, 0.0
      %v2007 = vadd.f32 %v1211, 0.0
      %v2008 = vmin.f32 %v2000, %v2004
      %v2009 = vmin.f32 %v2001, %v2005
      %v2010 = vmin.f32 %v2002, %v2006
      %v2011 = vmin.f32 %v2003, %v2007
      %v2012 = vmax.f32 %v2008, 0.0
      %v2013 = vmax.f32 %v2009, 0.0
      %v2014 = vmax.f32 %v2010, 0.0
      %v2015 = vmax.f32 %v2011, 0.0
      %v2016 = vsel %vm1193, %v2012, 0.0
      %v2017 = vsel %vm1194, %v2013, 0.0
      %v2018 = vsel %vm1195, %v2014, 0.0
      %v2019 = vsel %vm1196, %v2015, 0.0
      %v2020 = vadd.f32 %v2012, %v2013
      %2021 = vadd.xlane.f32.xlu0 %v2020
      %v2022 = vpop.xlane.xlu0 %2021
      %v2023 = vadd.f32 %v2014, %v2015
      %2024 = vadd.xlane.f32.xlu0 %v2023
      %v2025 = vpop.xlane.xlu0 %2024
      %v2026 = vadd.f32 %v2016, %v2017
      %2027 = vadd.xlane.f32.xlu0 %v2026
      %v2028 = vpop.xlane.xlu0 %2027
      %v2029 = vadd.f32 %v2018, %v2019
      %2030 = vadd.xlane.f32.xlu0 %v2029
      %v2031 = vpop.xlane.xlu0 %2030
      %v2032 = vld [vmem:[#allocation3] sm:$0xff]
      %v2033 = vld [vmem:[#allocation3 + $0x8] sm:$0xff]
      %v2034 = vadd.f32 %v2032, %v2022
      %v2035 = vadd.f32 %v2033, %v2025
      %2036 = vst.msk [vmem:[#allocation3] sm:$0xff] %vm1130, %v2034
      %2037 = vst.msk [vmem:[#allocation3 + $0x8] sm:$0xff] %vm1130, %v2035
      %v2038 = vld [vmem:[#allocation2] sm:$0xff]
      %v2039 = vld [vmem:[#allocation2 + $0x8] sm:$0xff]
      %v2040 = vadd.f32 %v2038, %v2028
      %v2041 = vadd.f32 %v2039, %v2031
      %2042 = vst.msk [vmem:[#allocation2] sm:$0xff] %vm1130, %v2040
      %2043 = vst.msk [vmem:[#allocation2 + $0x8] sm:$0xff] %vm1130, %v2041
      %v2044 = vsub.f32 1.0, %v1208
      %v2045 = vsub.f32 1.0, %v1209
      %v2046 = vsub.f32 1.0, %v1210
      %v2047 = vsub.f32 1.0, %v1211
      %v2048 = vmin.f32 %v2044, 1.0
      %v2049 = vmin.f32 %v2045, 1.0
      %v2050 = vmin.f32 %v2046, 1.0
      %v2051 = vmin.f32 %v2047, 1.0
      %v2052 = vmax.f32 %v2048, 0.0
      %v2053 = vmax.f32 %v2049, 0.0
      %v2054 = vmax.f32 %v2050, 0.0
      %v2055 = vmax.f32 %v2051, 0.0
      %v2056 = vsel %vm1193, %v2052, 0.0
      %v2057 = vsel %vm1194, %v2053, 0.0
      %v2058 = vsel %vm1195, %v2054, 0.0
      %v2059 = vsel %vm1196, %v2055, 0.0
      %v2060 = vadd.f32 %v2052, %v2053
      %2061 = vadd.xlane.f32.xlu0 %v2060
      %v2062 = vpop.xlane.xlu0 %2061
      %v2063 = vadd.f32 %v2054, %v2055
      %2064 = vadd.xlane.f32.xlu0 %v2063
      %v2065 = vpop.xlane.xlu0 %2064
      %v2066 = vadd.f32 %v2056, %v2057
      %2067 = vadd.xlane.f32.xlu0 %v2066
      %v2068 = vpop.xlane.xlu0 %2067
      %v2069 = vadd.f32 %v2058, %v2059
      %2070 = vadd.xlane.f32.xlu0 %v2069
      %v2071 = vpop.xlane.xlu0 %2070
      %v2072 = vld [vmem:[#allocation3] sm:$0xff]
      %v2073 = vld [vmem:[#allocation3 + $0x8] sm:$0xff]
      %v2074 = vadd.f32 %v2072, %v2062
      %v2075 = vadd.f32 %v2073, %v2065
      %2076 = vst.msk [vmem:[#allocation3] sm:$0xff] %vm1171, %v2074
      %2077 = vst.msk [vmem:[#allocation3 + $0x8] sm:$0xff] %vm1171, %v2075
      %v2078 = vld [vmem:[#allocation2] sm:$0xff]
      %v2079 = vld [vmem:[#allocation2 + $0x8] sm:$0xff]
      %v2080 = vadd.f32 %v2078, %v2068
      %v2081 = vadd.f32 %v2079, %v2071
      %2082 = vst.msk [vmem:[#allocation2] sm:$0xff] %vm1171, %v2080
      %2083 = vst.msk [vmem:[#allocation2 + $0x8] sm:$0xff] %vm1171, %v2081
      // Predicated region
      $region37: #{tpu_custom_call.1} parent=31 // pred_check
        %p2084 = pneg %p224
      $region38: #{tpu_custom_call.1} parent=31 // pred_check_branch
        %2086 = sbr.rel (%p2084) target = $region40
      $region39: #{tpu_custom_call.1} parent=31 // pred_region
        %v2087 = vld [vmem:[#allocation2] sm:$0xff]
        %v2088 = vld [vmem:[#allocation2 + $0x8] sm:$0xff]
        %v2089 = vld [vmem:[#allocation3] sm:$0xff]
        %v2090 = vld [vmem:[#allocation3 + $0x8] sm:$0xff]
        %v2091 = vadd.f32 %v2087, 0.0
        %v2092 = vadd.f32 %v2088, 0.0
        %v2093 = vadd.f32 %v2089, 0.0
        %v2094 = vadd.f32 %v2090, 0.0
        %v2095 = vadd.f32 %v2093, 1e-16
        %v2096 = vadd.f32 %v2094, 1e-16
        %v2097 = vrcp.pop %v2095
        %v2098 = vmul.f32 %v2091, %v2097
        %v2099 = vrcp.pop %v2096
        %v2100 = vmul.f32 %v2092, %v2099
        %v2101 = vmul.f32 %v2098, %v2087
        %v2102 = vmul.f32 %v2100, %v2088
        %v2103 = vadd.f32 %v2101, 0.0
        %v2104 = vadd.f32 %v2102, 0.0
        %2107 = vrot.lane.b32.xlu0 %v2087, 127
        %v2108 = vpop.permute.xlu0 %2107
        %2109 = vrot.lane.b32.xlu0 %v2088, 127
        %v2110 = vpop.permute.xlu0 %2109
        %v2113 = vadd.f32 %v2091, %v2108
        %v2114 = vadd.f32 %v2092, %v2110
        %2117 = vrot.lane.b32.xlu0 %v2089, 127
        %v2118 = vpop.permute.xlu0 %2117
        %2119 = vrot.lane.b32.xlu0 %v2090, 127
        %v2120 = vpop.permute.xlu0 %2119
        %v2123 = vadd.f32 %v2093, %v2118
        %v2124 = vadd.f32 %v2094, %v2120
        %v2125 = vadd.f32 %v2123, 1e-16
        %v2126 = vadd.f32 %v2124, 1e-16
        %v2127 = vrcp.pop %v2125
        %v2128 = vmul.f32 %v2113, %v2127
        %v2129 = vrcp.pop %v2126
        %v2130 = vmul.f32 %v2114, %v2129
        %v2131 = vmul.f32 %v2128, %v2108
        %v2132 = vmul.f32 %v2130, %v2110
        %v2133 = vadd.f32 %v2103, %v2131
        %v2134 = vadd.f32 %v2104, %v2132
        %2135 = vrot.lane.b32.xlu0 %v2087, 126
        %v2136 = vpop.permute.xlu0 %2135
        %2137 = vrot.lane.b32.xlu0 %v2088, 126
        %v2138 = vpop.permute.xlu0 %2137
        %v2141 = vadd.f32 %v2113, %v2136
        %v2142 = vadd.f32 %v2114, %v2138
        %2143 = vrot.lane.b32.xlu0 %v2089, 126
        %v2144 = vpop.permute.xlu0 %2143
        %2145 = vrot.lane.b32.xlu0 %v2090, 126
        %v2146 = vpop.permute.xlu0 %2145
        %v2149 = vadd.f32 %v2123, %v2144
        %v2150 = vadd.f32 %v2124, %v2146
        %v2151 = vadd.f32 %v2149, 1e-16
        %v2152 = vadd.f32 %v2150, 1e-16
        %v2153 = vrcp.pop %v2151
        %v2154 = vmul.f32 %v2141, %v2153
        %v2155 = vrcp.pop %v2152
        %v2156 = vmul.f32 %v2142, %v2155
        %v2157 = vmul.f32 %v2154, %v2136
        %v2158 = vmul.f32 %v2156, %v2138
        %v2159 = vadd.f32 %v2133, %v2157
        %v2160 = vadd.f32 %v2134, %v2158
        %2161 = vrot.lane.b32.xlu0 %v2087, 125
        %v2162 = vpop.permute.xlu0 %2161
        %2163 = vrot.lane.b32.xlu0 %v2088, 125
        %v2164 = vpop.permute.xlu0 %2163
        %v2167 = vadd.f32 %v2141, %v2162
        %v2168 = vadd.f32 %v2142, %v2164
        %2169 = vrot.lane.b32.xlu0 %v2089, 125
        %v2170 = vpop.permute.xlu0 %2169
        %2171 = vrot.lane.b32.xlu0 %v2090, 125
        %v2172 = vpop.permute.xlu0 %2171
        %v2175 = vadd.f32 %v2149, %v2170
        %v2176 = vadd.f32 %v2150, %v2172
        %v2177 = vadd.f32 %v2175, 1e-16
        %v2178 = vadd.f32 %v2176, 1e-16
        %v2179 = vrcp.pop %v2177
        %v2180 = vmul.f32 %v2167, %v2179
        %v2181 = vrcp.pop %v2178
        %v2182 = vmul.f32 %v2168, %v2181
        %v2183 = vmul.f32 %v2180, %v2162
        %v2184 = vmul.f32 %v2182, %v2164
        %v2185 = vadd.f32 %v2159, %v2183
        %v2186 = vadd.f32 %v2160, %v2184
        %2187 = vrot.lane.b32.xlu0 %v2087, 124
        %v2188 = vpop.permute.xlu0 %2187
        %2189 = vrot.lane.b32.xlu0 %v2088, 124
        %v2190 = vpop.permute.xlu0 %2189
        %v2193 = vadd.f32 %v2167, %v2188
        %v2194 = vadd.f32 %v2168, %v2190
        %2195 = vrot.lane.b32.xlu0 %v2089, 124
        %v2196 = vpop.permute.xlu0 %2195
        %2197 = vrot.lane.b32.xlu0 %v2090, 124
        %v2198 = vpop.permute.xlu0 %2197
        %v2201 = vadd.f32 %v2175, %v2196
        %v2202 = vadd.f32 %v2176, %v2198
        %v2203 = vadd.f32 %v2201, 1e-16
        %v2204 = vadd.f32 %v2202, 1e-16
        %v2205 = vrcp.pop %v2203
        %v2206 = vmul.f32 %v2193, %v2205
        %v2207 = vrcp.pop %v2204
        %v2208 = vmul.f32 %v2194, %v2207
        %v2209 = vmul.f32 %v2206, %v2188
        %v2210 = vmul.f32 %v2208, %v2190
        %v2211 = vadd.f32 %v2185, %v2209
        %v2212 = vadd.f32 %v2186, %v2210
        %2213 = vrot.lane.b32.xlu0 %v2087, 123
        %v2214 = vpop.permute.xlu0 %2213
        %2215 = vrot.lane.b32.xlu0 %v2088, 123
        %v2216 = vpop.permute.xlu0 %2215
        %v2219 = vadd.f32 %v2193, %v2214
        %v2220 = vadd.f32 %v2194, %v2216
        %2221 = vrot.lane.b32.xlu0 %v2089, 123
        %v2222 = vpop.permute.xlu0 %2221
        %2223 = vrot.lane.b32.xlu0 %v2090, 123
        %v2224 = vpop.permute.xlu0 %2223
        %v2227 = vadd.f32 %v2201, %v2222
        %v2228 = vadd.f32 %v2202, %v2224
        %v2229 = vadd.f32 %v2227, 1e-16
        %v2230 = vadd.f32 %v2228, 1e-16
        %v2231 = vrcp.pop %v2229
        %v2232 = vmul.f32 %v2219, %v2231
        %v2233 = vrcp.pop %v2230
        %v2234 = vmul.f32 %v2220, %v2233
        %v2235 = vmul.f32 %v2232, %v2214
        %v2236 = vmul.f32 %v2234, %v2216
        %v2237 = vadd.f32 %v2211, %v2235
        %v2238 = vadd.f32 %v2212, %v2236
        %2239 = vrot.lane.b32.xlu0 %v2087, 122
        %v2240 = vpop.permute.xlu0 %2239
        %2241 = vrot.lane.b32.xlu0 %v2088, 122
        %v2242 = vpop.permute.xlu0 %2241
        %v2245 = vadd.f32 %v2219, %v2240
        %v2246 = vadd.f32 %v2220, %v2242
        %2247 = vrot.lane.b32.xlu0 %v2089, 122
        %v2248 = vpop.permute.xlu0 %2247
        %2249 = vrot.lane.b32.xlu0 %v2090, 122
        %v2250 = vpop.permute.xlu0 %2249
        %v2253 = vadd.f32 %v2227, %v2248
        %v2254 = vadd.f32 %v2228, %v2250
        %v2255 = vadd.f32 %v2253, 1e-16
        %v2256 = vadd.f32 %v2254, 1e-16
        %v2257 = vrcp.pop %v2255
        %v2258 = vmul.f32 %v2245, %v2257
        %v2259 = vrcp.pop %v2256
        %v2260 = vmul.f32 %v2246, %v2259
        %v2261 = vmul.f32 %v2258, %v2240
        %v2262 = vmul.f32 %v2260, %v2242
        %v2263 = vadd.f32 %v2237, %v2261
        %v2264 = vadd.f32 %v2238, %v2262
        %2265 = vrot.lane.b32.xlu0 %v2087, 121
        %v2266 = vpop.permute.xlu0 %2265
        %2267 = vrot.lane.b32.xlu0 %v2088, 121
        %v2268 = vpop.permute.xlu0 %2267
        %v2271 = vadd.f32 %v2245, %v2266
        %v2272 = vadd.f32 %v2246, %v2268
        %2273 = vrot.lane.b32.xlu0 %v2089, 121
        %v2274 = vpop.permute.xlu0 %2273
        %2275 = vrot.lane.b32.xlu0 %v2090, 121
        %v2276 = vpop.permute.xlu0 %2275
        %v2279 = vadd.f32 %v2253, %v2274
        %v2280 = vadd.f32 %v2254, %v2276
        %v2281 = vadd.f32 %v2279, 1e-16
        %v2282 = vadd.f32 %v2280, 1e-16
        %v2283 = vrcp.pop %v2281
        %v2284 = vmul.f32 %v2271, %v2283
        %v2285 = vrcp.pop %v2282
        %v2286 = vmul.f32 %v2272, %v2285
        %v2287 = vmul.f32 %v2284, %v2266
        %v2288 = vmul.f32 %v2286, %v2268
        %v2289 = vadd.f32 %v2263, %v2287
        %v2290 = vadd.f32 %v2264, %v2288
        %2291 = vrot.lane.b32.xlu0 %v2087, 120
        %v2292 = vpop.permute.xlu0 %2291
        %2293 = vrot.lane.b32.xlu0 %v2088, 120
        %v2294 = vpop.permute.xlu0 %2293
        %v2297 = vadd.f32 %v2271, %v2292
        %v2298 = vadd.f32 %v2272, %v2294
        %2299 = vrot.lane.b32.xlu0 %v2089, 120
        %v2300 = vpop.permute.xlu0 %2299
        %2301 = vrot.lane.b32.xlu0 %v2090, 120
        %v2302 = vpop.permute.xlu0 %2301
        %v2305 = vadd.f32 %v2279, %v2300
        %v2306 = vadd.f32 %v2280, %v2302
        %v2307 = vadd.f32 %v2305, 1e-16
        %v2308 = vadd.f32 %v2306, 1e-16
        %v2309 = vrcp.pop %v2307
        %v2310 = vmul.f32 %v2297, %v2309
        %v2311 = vrcp.pop %v2308
        %v2312 = vmul.f32 %v2298, %v2311
        %v2313 = vmul.f32 %v2310, %v2292
        %v2314 = vmul.f32 %v2312, %v2294
        %v2315 = vadd.f32 %v2289, %v2313
        %v2316 = vadd.f32 %v2290, %v2314
        %2317 = vrot.lane.b32.xlu0 %v2087, 119
        %v2318 = vpop.permute.xlu0 %2317
        %2319 = vrot.lane.b32.xlu0 %v2088, 119
        %v2320 = vpop.permute.xlu0 %2319
        %v2323 = vadd.f32 %v2297, %v2318
        %v2324 = vadd.f32 %v2298, %v2320
        %2325 = vrot.lane.b32.xlu0 %v2089, 119
        %v2326 = vpop.permute.xlu0 %2325
        %2327 = vrot.lane.b32.xlu0 %v2090, 119
        %v2328 = vpop.permute.xlu0 %2327
        %v2331 = vadd.f32 %v2305, %v2326
        %v2332 = vadd.f32 %v2306, %v2328
        %v2333 = vadd.f32 %v2331, 1e-16
        %v2334 = vadd.f32 %v2332, 1e-16
        %v2335 = vrcp.pop %v2333
        %v2336 = vmul.f32 %v2323, %v2335
        %v2337 = vrcp.pop %v2334
        %v2338 = vmul.f32 %v2324, %v2337
        %v2339 = vmul.f32 %v2336, %v2318
        %v2340 = vmul.f32 %v2338, %v2320
        %v2341 = vadd.f32 %v2315, %v2339
        %v2342 = vadd.f32 %v2316, %v2340
        %2343 = vrot.lane.b32.xlu0 %v2087, 118
        %v2344 = vpop.permute.xlu0 %2343
        %2345 = vrot.lane.b32.xlu0 %v2088, 118
        %v2346 = vpop.permute.xlu0 %2345
        %v2349 = vadd.f32 %v2323, %v2344
        %v2350 = vadd.f32 %v2324, %v2346
        %2351 = vrot.lane.b32.xlu0 %v2089, 118
        %v2352 = vpop.permute.xlu0 %2351
        %2353 = vrot.lane.b32.xlu0 %v2090, 118
        %v2354 = vpop.permute.xlu0 %2353
        %v2357 = vadd.f32 %v2331, %v2352
        %v2358 = vadd.f32 %v2332, %v2354
        %v2359 = vadd.f32 %v2357, 1e-16
        %v2360 = vadd.f32 %v2358, 1e-16
        %v2361 = vrcp.pop %v2359
        %v2362 = vmul.f32 %v2349, %v2361
        %v2363 = vrcp.pop %v2360
        %v2364 = vmul.f32 %v2350, %v2363
        %v2365 = vmul.f32 %v2362, %v2344
        %v2366 = vmul.f32 %v2364, %v2346
        %v2367 = vadd.f32 %v2341, %v2365
        %v2368 = vadd.f32 %v2342, %v2366
        %2369 = vrot.lane.b32.xlu0 %v2087, 117
        %v2370 = vpop.permute.xlu0 %2369
        %2371 = vrot.lane.b32.xlu0 %v2088, 117
        %v2372 = vpop.permute.xlu0 %2371
        %v2375 = vadd.f32 %v2349, %v2370
        %v2376 = vadd.f32 %v2350, %v2372
        %2377 = vrot.lane.b32.xlu0 %v2089, 117
        %v2378 = vpop.permute.xlu0 %2377
        %2379 = vrot.lane.b32.xlu0 %v2090, 117
        %v2380 = vpop.permute.xlu0 %2379
        %v2383 = vadd.f32 %v2357, %v2378
        %v2384 = vadd.f32 %v2358, %v2380
        %v2385 = vadd.f32 %v2383, 1e-16
        %v2386 = vadd.f32 %v2384, 1e-16
        %v2387 = vrcp.pop %v2385
        %v2388 = vmul.f32 %v2375, %v2387
        %v2389 = vrcp.pop %v2386
        %v2390 = vmul.f32 %v2376, %v2389
        %v2391 = vmul.f32 %v2388, %v2370
        %v2392 = vmul.f32 %v2390, %v2372
        %v2393 = vadd.f32 %v2367, %v2391
        %v2394 = vadd.f32 %v2368, %v2392
        %2395 = vrot.lane.b32.xlu0 %v2087, 116
        %v2396 = vpop.permute.xlu0 %2395
        %2397 = vrot.lane.b32.xlu0 %v2088, 116
        %v2398 = vpop.permute.xlu0 %2397
        %v2401 = vadd.f32 %v2375, %v2396
        %v2402 = vadd.f32 %v2376, %v2398
        %2403 = vrot.lane.b32.xlu0 %v2089, 116
        %v2404 = vpop.permute.xlu0 %2403
        %2405 = vrot.lane.b32.xlu0 %v2090, 116
        %v2406 = vpop.permute.xlu0 %2405
        %v2409 = vadd.f32 %v2383, %v2404
        %v2410 = vadd.f32 %v2384, %v2406
        %v2411 = vadd.f32 %v2409, 1e-16
        %v2412 = vadd.f32 %v2410, 1e-16
        %v2413 = vrcp.pop %v2411
        %v2414 = vmul.f32 %v2401, %v2413
        %v2415 = vrcp.pop %v2412
        %v2416 = vmul.f32 %v2402, %v2415
        %v2417 = vmul.f32 %v2414, %v2396
        %v2418 = vmul.f32 %v2416, %v2398
        %v2419 = vadd.f32 %v2393, %v2417
        %v2420 = vadd.f32 %v2394, %v2418
        %2421 = vrot.lane.b32.xlu0 %v2087, 115
        %v2422 = vpop.permute.xlu0 %2421
        %2423 = vrot.lane.b32.xlu0 %v2088, 115
        %v2424 = vpop.permute.xlu0 %2423
        %v2427 = vadd.f32 %v2401, %v2422
        %v2428 = vadd.f32 %v2402, %v2424
        %2429 = vrot.lane.b32.xlu0 %v2089, 115
        %v2430 = vpop.permute.xlu0 %2429
        %2431 = vrot.lane.b32.xlu0 %v2090, 115
        %v2432 = vpop.permute.xlu0 %2431
        %v2435 = vadd.f32 %v2409, %v2430
        %v2436 = vadd.f32 %v2410, %v2432
        %v2437 = vadd.f32 %v2435, 1e-16
        %v2438 = vadd.f32 %v2436, 1e-16
        %v2439 = vrcp.pop %v2437
        %v2440 = vmul.f32 %v2427, %v2439
        %v2441 = vrcp.pop %v2438
        %v2442 = vmul.f32 %v2428, %v2441
        %v2443 = vmul.f32 %v2440, %v2422
        %v2444 = vmul.f32 %v2442, %v2424
        %v2445 = vadd.f32 %v2419, %v2443
        %v2446 = vadd.f32 %v2420, %v2444
        %2447 = vrot.lane.b32.xlu0 %v2087, 114
        %v2448 = vpop.permute.xlu0 %2447
        %2449 = vrot.lane.b32.xlu0 %v2088, 114
        %v2450 = vpop.permute.xlu0 %2449
        %v2453 = vadd.f32 %v2427, %v2448
        %v2454 = vadd.f32 %v2428, %v2450
        %2455 = vrot.lane.b32.xlu0 %v2089, 114
        %v2456 = vpop.permute.xlu0 %2455
        %2457 = vrot.lane.b32.xlu0 %v2090, 114
        %v2458 = vpop.permute.xlu0 %2457
        %v2461 = vadd.f32 %v2435, %v2456
        %v2462 = vadd.f32 %v2436, %v2458
        %v2463 = vadd.f32 %v2461, 1e-16
        %v2464 = vadd.f32 %v2462, 1e-16
        %v2465 = vrcp.pop %v2463
        %v2466 = vmul.f32 %v2453, %v2465
        %v2467 = vrcp.pop %v2464
        %v2468 = vmul.f32 %v2454, %v2467
        %v2469 = vmul.f32 %v2466, %v2448
        %v2470 = vmul.f32 %v2468, %v2450
        %v2471 = vadd.f32 %v2445, %v2469
        %v2472 = vadd.f32 %v2446, %v2470
        %2473 = vrot.lane.b32.xlu0 %v2087, 113
        %v2474 = vpop.permute.xlu0 %2473
        %2475 = vrot.lane.b32.xlu0 %v2088, 113
        %v2476 = vpop.permute.xlu0 %2475
        %v2479 = vadd.f32 %v2453, %v2474
        %v2480 = vadd.f32 %v2454, %v2476
        %2481 = vrot.lane.b32.xlu0 %v2089, 113
        %v2482 = vpop.permute.xlu0 %2481
        %2483 = vrot.lane.b32.xlu0 %v2090, 113
        %v2484 = vpop.permute.xlu0 %2483
        %v2487 = vadd.f32 %v2461, %v2482
        %v2488 = vadd.f32 %v2462, %v2484
        %v2489 = vadd.f32 %v2487, 1e-16
        %v2490 = vadd.f32 %v2488, 1e-16
        %v2491 = vrcp.pop %v2489
        %v2492 = vmul.f32 %v2479, %v2491
        %v2493 = vrcp.pop %v2490
        %v2494 = vmul.f32 %v2480, %v2493
        %v2495 = vmul.f32 %v2492, %v2474
        %v2496 = vmul.f32 %v2494, %v2476
        %v2497 = vadd.f32 %v2471, %v2495
        %v2498 = vadd.f32 %v2472, %v2496
        %2499 = vrot.lane.b32.xlu0 %v2087, 112
        %v2500 = vpop.permute.xlu0 %2499
        %2501 = vrot.lane.b32.xlu0 %v2088, 112
        %v2502 = vpop.permute.xlu0 %2501
        %v2505 = vadd.f32 %v2479, %v2500
        %v2506 = vadd.f32 %v2480, %v2502
        %2507 = vrot.lane.b32.xlu0 %v2089, 112
        %v2508 = vpop.permute.xlu0 %2507
        %2509 = vrot.lane.b32.xlu0 %v2090, 112
        %v2510 = vpop.permute.xlu0 %2509
        %v2513 = vadd.f32 %v2487, %v2508
        %v2514 = vadd.f32 %v2488, %v2510
        %v2515 = vadd.f32 %v2513, 1e-16
        %v2516 = vadd.f32 %v2514, 1e-16
        %v2517 = vrcp.pop %v2515
        %v2518 = vmul.f32 %v2505, %v2517
        %v2519 = vrcp.pop %v2516
        %v2520 = vmul.f32 %v2506, %v2519
        %v2521 = vmul.f32 %v2518, %v2500
        %v2522 = vmul.f32 %v2520, %v2502
        %v2523 = vadd.f32 %v2497, %v2521
        %v2524 = vadd.f32 %v2498, %v2522
        %2525 = vrot.lane.b32.xlu0 %v2087, 111
        %v2526 = vpop.permute.xlu0 %2525
        %2527 = vrot.lane.b32.xlu0 %v2088, 111
        %v2528 = vpop.permute.xlu0 %2527
        %v2531 = vadd.f32 %v2505, %v2526
        %v2532 = vadd.f32 %v2506, %v2528
        %2533 = vrot.lane.b32.xlu0 %v2089, 111
        %v2534 = vpop.permute.xlu0 %2533
        %2535 = vrot.lane.b32.xlu0 %v2090, 111
        %v2536 = vpop.permute.xlu0 %2535
        %v2539 = vadd.f32 %v2513, %v2534
        %v2540 = vadd.f32 %v2514, %v2536
        %v2541 = vadd.f32 %v2539, 1e-16
        %v2542 = vadd.f32 %v2540, 1e-16
        %v2543 = vrcp.pop %v2541
        %v2544 = vmul.f32 %v2531, %v2543
        %v2545 = vrcp.pop %v2542
        %v2546 = vmul.f32 %v2532, %v2545
        %v2547 = vmul.f32 %v2544, %v2526
        %v2548 = vmul.f32 %v2546, %v2528
        %v2549 = vadd.f32 %v2523, %v2547
        %v2550 = vadd.f32 %v2524, %v2548
        %2551 = vrot.lane.b32.xlu0 %v2087, 110
        %v2552 = vpop.permute.xlu0 %2551
        %2553 = vrot.lane.b32.xlu0 %v2088, 110
        %v2554 = vpop.permute.xlu0 %2553
        %v2557 = vadd.f32 %v2531, %v2552
        %v2558 = vadd.f32 %v2532, %v2554
        %2559 = vrot.lane.b32.xlu0 %v2089, 110
        %v2560 = vpop.permute.xlu0 %2559
        %2561 = vrot.lane.b32.xlu0 %v2090, 110
        %v2562 = vpop.permute.xlu0 %2561
        %v2565 = vadd.f32 %v2539, %v2560
        %v2566 = vadd.f32 %v2540, %v2562
        %v2567 = vadd.f32 %v2565, 1e-16
        %v2568 = vadd.f32 %v2566, 1e-16
        %v2569 = vrcp.pop %v2567
        %v2570 = vmul.f32 %v2557, %v2569
        %v2571 = vrcp.pop %v2568
        %v2572 = vmul.f32 %v2558, %v2571
        %v2573 = vmul.f32 %v2570, %v2552
        %v2574 = vmul.f32 %v2572, %v2554
        %v2575 = vadd.f32 %v2549, %v2573
        %v2576 = vadd.f32 %v2550, %v2574
        %v2577 = vsub.f32 %v2089, 212.0
        %v2578 = vsub.f32 %v2090, 212.0
        %2579 = vrot.lane.b32.xlu0 %v2087, 109
        %v2580 = vpop.permute.xlu0 %2579
        %2581 = vrot.lane.b32.xlu0 %v2088, 109
        %v2582 = vpop.permute.xlu0 %2581
        %v2585 = vadd.f32 %v2557, %v2580
        %v2586 = vadd.f32 %v2558, %v2582
        %2589 = vrot.lane.b32.xlu0 %v2577, 109
        %v2590 = vpop.permute.xlu0 %2589
        %2591 = vrot.lane.b32.xlu0 %v2578, 109
        %v2592 = vpop.permute.xlu0 %2591
        %v2595 = vadd.f32 %v2565, %v2590
        %v2596 = vadd.f32 %v2566, %v2592
        %v2597 = vadd.f32 %v2595, 1e-16
        %v2598 = vadd.f32 %v2596, 1e-16
        %v2599 = vrcp.pop %v2597
        %v2600 = vmul.f32 %v2585, %v2599
        %v2601 = vrcp.pop %v2598
        %v2602 = vmul.f32 %v2586, %v2601
        %v2603 = vmul.f32 %v2600, %v2580
        %v2604 = vmul.f32 %v2602, %v2582
        %v2605 = vadd.f32 %v2575, %v2603
        %v2606 = vadd.f32 %v2576, %v2604
        %v2607 = vrcp.pop %v2585
        %v2608 = vmul.f32 %v2605, %v2607
        %v2609 = vrcp.pop %v2586
        %v2610 = vmul.f32 %v2606, %v2609
        %2611 = vst.msk [vmem:[%s222] sm:$0xff] %vm320, %v2608
        %2612 = vst.msk [vmem:[%s222 + $0x8] sm:$0xff] %vm320, %v2610
      $region40: #{tpu_custom_call.1} parent=31 // pred_fallthru
        _
      %s2613 = smul.u32 2, %s18
      %p2614 = scmp.lt.s32.totalorder %s2613, 3
      %s2615 = scalar_select %p2614, %s2613, 3
      %s2616 = smul.addr %s2615, 8
      %s2617 = scalar_lea.vmem %s3, %s2616
      // Predicated region
      $region41: #{tpu_custom_call.1} parent=31 // pred_check
        %p2618 = pneg %p122
      $region42: #{tpu_custom_call.1} parent=31 // pred_check_branch
        %2620 = sbr.rel (%p2618) target = $region44
      $region43: #{tpu_custom_call.1} parent=31 // pred_region
        %s2621 = smul.u32 2, %s18
      $region44: #{tpu_custom_call.1} parent=31 // pred_fallthru
        _
    $region32: #{tpu_custom_call.1} parent=5 // pred_fallthru
      _
    %p2622 = scmp.le.s32.totalorder 2, %s9
    // Predicated region
    $region45: #{tpu_custom_call.1} parent=5 // pred_check
      %p2623 = pneg %p2622
    $region46: #{tpu_custom_call.1} parent=5 // pred_check_branch
      %2625 = sbr.rel (%p2623) target = $region48
    $region47: #{tpu_custom_call.1} parent=5 // pred_region
      %s2626 = ssub.s32 %s9, 2
      // Predicated region
      $region49: #{tpu_custom_call.1} parent=47 // pred_check
        %p2627 = pneg %p128
      $region50: #{tpu_custom_call.1} parent=47 // pred_check_branch
        %2629 = sbr.rel (%p2627) target = $region52
      $region51: #{tpu_custom_call.1} parent=47 // pred_region
        %s2630 = smul.u32 2, %s20
        %p2631 = scmp.lt.s32.totalorder %s2630, 3
        %s2632 = scalar_select %p2631, %s2630, 3
        %s2633 = smul.addr %s2632, 8
        %s2634 = scalar_lea.vmem %s3, %s2633
      $region52: #{tpu_custom_call.1} parent=47 // pred_fallthru
        _
    $region48: #{tpu_custom_call.1} parent=5 // pred_fallthru
      _
  $region6: #{tpu_custom_call.1} parent=0 // loop_footer
    %s13 = sadd.s32 1, %s9
  $region7: #{tpu_custom_call.1} parent=0 // loop_footer_branch
    %8 = sbr.rel target = $region3
  $region8: #{tpu_custom_call.1} parent=0 // loop_exit
    _

</llo_original>
